<compile_context>
chip_gen: v6e
topology: v6e:2x2x1
jax: 0.10.0
libtpu: 0.0.40
codegen_flags: <defaults>
</compile_context>

<pallas_src>
import functools

import jax
import jax.numpy as jnp
from jax.experimental import pallas as pl
from jax.experimental.pallas import tpu as pltpu

# ---------------- config (scaled-down ValueNN) ----------------
BOARD_SIZE = 8   # BOARD_SIZE
C1 = 16          # conv1 out channels   (orig 256 * 2)
C2 = 32          # conv2 out channels   (orig 512 * 2)
FC = 64          # fc1 / fc2 hidden     (orig 1024 * 2)
BATCH = 2

# TODO(synk): at the original widths (C2=1024, FC=2048) the fc1 weight is
# ~512 MiB and no longer fits VMEM; it would then need a K-tiled reduction
# grid axis ("arbitrary") with a VMEM f32 accumulator, generation-specific
# tile sizes (v7x has only 64 MiB VMEM), and a "parallel" batch grid axis so
# v7x's second TensorCore is fed.  At this toy size a single fused,
# fully-VMEM-resident kernel is strictly fastest on v5e/v6e/v7x.


# ---------------- fused Pallas kernel ----------------
def fused_value_kernel(x_ref, w1_ref, b1_ref, w2_ref, b2_ref,
                       wf1_ref, bf1_ref, wf2_ref, bf2_ref, wvt_ref, bv_ref,
                       o_ref,
                       pad_ref, lhs2_ref, feat_ref,
                       *, N, H, W, C1, C2):
    """Entire ValueNN forward, everything resident in VMEM.

    x_ref:    (N*H*W, 1)         input board, Cin == 1 (row = n*H*W + h*W + w)
    w1_ref:   (9, C1)            conv1 weights, tap-major (row = dy*3 + dx)
    b1_ref:   (1, C1)
    w2_ref:   (9*C1, C2)         conv2 weights, row = (dy*3 + dx)*C1 + cin
    b2_ref:   (1, C2)
    wf1_ref:  (H*W*C2, FC)       fc1 weights, rows pre-permuted to NHWC order
    bf1_ref:  (1, FC)
    wf2_ref:  (FC, FC)
    bf2_ref:  (1, FC)
    wvt_ref:  (1, FC)            fc_value weights, transposed
    bv_ref:   (1, 1)
    o_ref:    (N, 1)
    scratch:  pad  (N,H+2,W+2,C1)  shared padded buffer (conv1 input, then
                                   conv1 activations) — zeroed once, border
                                   stays zero for both convs
              lhs2 (N*H*W, 9*C1)   conv2 im2col slab
              feat (N, H*W*C2)     flattened features for fc1
    """
    f32 = jnp.float32
    S = H * W

    # ---- conv1 (Cin = 1) + ReLU: 9 VPU broadcast FMAs, no MXU --------------
    # Zero the shared padded buffer ONCE; only the interior is rewritten
    # later, so the zero border is reused by conv2 too.
    pad_ref[...] = jnp.zeros_like(pad_ref)
    # Broadcast the single input channel across C1 lanes once.
    xb = jnp.broadcast_to(x_ref[...], (N * S, C1))          # (N*S, C1)
    pad_ref[:, 1:H + 1, 1:W + 1, :] = xb.reshape(N, H, W, C1)

    acc1 = jnp.zeros((N * S, C1), f32)
    for dy in range(3):
        for dx in range(3):
            t = dy * 3 + dx
            patch = pad_ref[:, dy:dy + H, dx:dx + W, :].reshape(N * S, C1)
            acc1 = acc1 + patch * w1_ref[t:t + 1, :]         # VPU FMA
    acc1 = jnp.maximum(acc1 + b1_ref[...], 0.0)              # (N*S, C1)

    # ---- conv2 + ReLU: one im2col matmul over the whole batch --------------
    # Reuse the same padded buffer; border is still zero from the single
    # zeroing above, only the interior changes.
    pad_ref[:, 1:H + 1, 1:W + 1, :] = acc1.reshape(N, H, W, C1)
    for dy in range(3):
        for dx in range(3):
            t = dy * 3 + dx
            patch = pad_ref[:, dy:dy + H, dx:dx + W, :].reshape(N * S, C1)
            lhs2_ref[:, t * C1:(t + 1) * C1] = patch
    # (N*S, 9*C1) @ (9*C1, C2): single MXU call, K = 9*C1, all rows live.
    acc2 = jnp.dot(lhs2_ref[...], w2_ref[...], preferred_element_type=f32)
    acc2 = jnp.maximum(acc2 + b2_ref[...], 0.0)              # (N*S, C2)

    # ---- flatten: NHWC order; PyTorch's NCHW flatten order is matched by the
    # one-time row permutation of w_fc1 done at parameter-prep time.
    # Loop over spatial positions only (S iterations), writing an (N, C2)
    # slab per step; the (N*S, C2) -> (N, S, C2) reshape is a pure
    # leading-dim split (no lane relayout).
    acc2_3d = acc2.reshape(N, S, C2)
    for s in range(S):
        feat_ref[:, s * C2:(s + 1) * C2] = acc2_3d[:, s, :]

    # ---- fc1 -> relu -> fc2 -> relu -> fc_value -> tanh ---------------------
    h = jnp.dot(feat_ref[...], wf1_ref[...], preferred_element_type=f32)
    h = jnp.maximum(h + bf1_ref[...], 0.0)                   # (N, FC)
    h = jnp.dot(h, wf2_ref[...], preferred_element_type=f32)
    h = jnp.maximum(h + bf2_ref[...], 0.0)                   # (N, FC)
    # Single output unit: VPU multiply + lane reduction instead of a
    # 1-column MXU matmul.
    v = jnp.sum(h * wvt_ref[...], axis=1, keepdims=True) + bv_ref[...]
    o_ref[...] = jnp.tanh(v)                                 # (N, 1)


# ---------------- wrapper ----------------
def value_nn_forward(x_nchw, kp):
    N = x_nchw.shape[0]
    H = W = BOARD_SIZE
    # Cin == 1: NCHW -> (N*H*W, 1) is a pure reshape (no transpose / pad here;
    # padding happens inside the kernel).
    x = x_nchw.astype(jnp.float32).reshape(N * H * W, 1)
    kernel = functools.partial(fused_value_kernel, N=N, H=H, W=W, C1=C1, C2=C2)
    vmem = pltpu.MemorySpace.VMEM
    return pl.pallas_call(
        kernel,
        out_shape=jax.ShapeDtypeStruct((N, 1), jnp.float32),
        in_specs=[pl.BlockSpec(memory_space=vmem)] * 11,
        out_specs=pl.BlockSpec(memory_space=vmem),
        scratch_shapes=[
            pltpu.VMEM((N, H + 2, W + 2, C1), jnp.float32),   # shared padded buf
            pltpu.VMEM((N * H * W, 9 * C1), jnp.float32),     # im2col slab
            pltpu.VMEM((N, H * W * C2), jnp.float32),         # flat features
        ],
    )(x, kp["w1"], kp["b1"], kp["w2"], kp["b2"],
      kp["w_fc1"], kp["b_fc1"], kp["w_fc2"], kp["b_fc2"],
      kp["w_val_t"], kp["b_val"])


# ---------------- parameters ----------------
def init_params(key):
    ks = jax.random.split(key, 10)
    board = BOARD_SIZE

    def nrm(k, shape, fan_in):
        return jax.random.normal(k, shape, jnp.float32) * (1.0 / jnp.sqrt(fan_in))

    return {
        # conv weights in HWIO layout; fc weights as (in, out)
        "w1": nrm(ks[0], (3, 3, 1, C1), 9 * 1),
        "b1": nrm(ks[1], (C1,), 9 * 1),
        "w2": nrm(ks[2], (3, 3, C1, C2), 9 * C1),
        "b2": nrm(ks[3], (C2,), 9 * C1),
        "w_fc1": nrm(ks[4], (C2 * board * board, FC), C2 * board * board),
        "b_fc1": nrm(ks[5], (FC,), C2 * board * board),
        "w_fc2": nrm(ks[6], (FC, FC), FC),
        "b_fc2": nrm(ks[7], (FC,), FC),
        "w_val": nrm(ks[8], (FC, 1), FC),
        "b_val": nrm(ks[9], (1,), FC),
    }


def prepare_params(p):
    """One-time host-side re-layout so the kernel needs no runtime transposes.

    w_fc1 rows are permuted from NCHW-flatten order (PyTorch .view) to
    NHWC-flatten order so the kernel's natural (h, w, c) flatten is correct.
    """
    S = BOARD_SIZE * BOARD_SIZE
    wf1_nhwc = (p["w_fc1"].reshape(C2, S, FC)
                .transpose(1, 0, 2)
                .reshape(S * C2, FC))
    return {
        "w1": p["w1"].reshape(9, C1),
        "b1": p["b1"].reshape(1, C1),
        "w2": p["w2"].reshape(9 * C1, C2),
        "b2": p["b2"].reshape(1, C2),
        "w_fc1": wf1_nhwc,
        "b_fc1": p["b_fc1"].reshape(1, FC),
        "w_fc2": p["w_fc2"],
        "b_fc2": p["b_fc2"].reshape(1, FC),
        "w_val_t": p["w_val"].reshape(1, FC),
        "b_val": p["b_val"].reshape(1, 1),
    }


# ---------------- pure-JAX reference (validates fusion + w_fc1 permutation) --
def value_nn_reference(x_nchw, p):
    hp = jax.lax.Precision.HIGHEST
    x = jnp.transpose(x_nchw, (0, 2, 3, 1)).astype(jnp.float32)
    x = jax.lax.conv_general_dilated(
        x, p["w1"], (1, 1), "SAME",
        dimension_numbers=("NHWC", "HWIO", "NHWC"), precision=hp)
    x = jax.nn.relu(x + p["b1"])
    x = jax.lax.conv_general_dilated(
        x, p["w2"], (1, 1), "SAME",
        dimension_numbers=("NHWC", "HWIO", "NHWC"), precision=hp)
    x = jax.nn.relu(x + p["b2"])
    n = x.shape[0]
    x = jnp.transpose(x, (0, 3, 1, 2)).reshape(n, -1)   # PyTorch NCHW flatten
    x = jax.nn.relu(jnp.dot(x, p["w_fc1"], precision=hp) + p["b_fc1"])
    x = jax.nn.relu(jnp.dot(x, p["w_fc2"], precision=hp) + p["b_fc2"])
    return jnp.tanh(jnp.dot(x, p["w_val"], precision=hp) + p["b_val"])


if __name__ == "__main__":
    key = jax.random.PRNGKey(0)
    k_in, k_par = jax.random.split(key)
    params = init_params(k_par)
    kparams = prepare_params(params)   # one-time re-layout, zero runtime cost
    # board tensor batch, NCHW like the PyTorch module input
    x = jax.random.normal(k_in, (BATCH, 1, BOARD_SIZE, BOARD_SIZE), jnp.float32)

    out = jax.block_until_ready(jax.jit(value_nn_forward)(x, kparams))
    ref = jax.block_until_ready(value_nn_reference(x, params))

    assert out.shape == (BATCH, 1), out.shape
    assert jnp.allclose(out, ref, atol=1e-4, rtol=1e-4), (out, ref)
    print("KERNEL_OK")
</pallas_src>

<mosaic_0001>
module attributes {stable_mosaic.version = 11 : i64} {
  func.func @fused_value_kernel(%arg0: memref<128x1xf32, #tpu.memory_space<vmem>>, %arg1: memref<9x16xf32, #tpu.memory_space<vmem>>, %arg2: memref<1x16xf32, #tpu.memory_space<vmem>>, %arg3: memref<144x32xf32, #tpu.memory_space<vmem>>, %arg4: memref<1x32xf32, #tpu.memory_space<vmem>>, %arg5: memref<2048x64xf32, #tpu.memory_space<vmem>>, %arg6: memref<1x64xf32, #tpu.memory_space<vmem>>, %arg7: memref<64x64xf32, #tpu.memory_space<vmem>>, %arg8: memref<1x64xf32, #tpu.memory_space<vmem>>, %arg9: memref<1x64xf32, #tpu.memory_space<vmem>>, %arg10: memref<1x1xf32, #tpu.memory_space<vmem>>, %arg11: memref<2x1xf32, #tpu.memory_space<vmem>>, %arg12: memref<2x10x10x16xf32, #tpu.memory_space<vmem>>, %arg13: memref<128x144xf32, #tpu.memory_space<vmem>>, %arg14: memref<2x2048xf32, #tpu.memory_space<vmem>>) attributes {dimension_semantics = [], scalar_prefetch = 0 : i64, scratch_operands = 3 : i64, tpu.core_type = #tpu.core_type<tc>} {
    %cst = arith.constant 0.000000e+00 : f32
    %0 = vector.broadcast %cst : f32 to vector<2x10x10x16xf32>
    %c0 = arith.constant 0 : index
    %c0_0 = arith.constant 0 : index
    %c0_1 = arith.constant 0 : index
    %c0_2 = arith.constant 0 : index
    %1 = vector.load %arg12[%c0, %c0_0, %c0_1, %c0_2] : memref<2x10x10x16xf32, #tpu.memory_space<vmem>>, vector<2x10x10x16xf32>
    tpu.vector_store %arg12[%c0, %c0_0, %c0_1, %c0_2], %0 {strides = array<i32>} : memref<2x10x10x16xf32, #tpu.memory_space<vmem>>, vector<2x10x10x16xf32>,
    %c0_3 = arith.constant 0 : index
    %c0_4 = arith.constant 0 : index
    %2 = vector.load %arg0[%c0_3, %c0_4] : memref<128x1xf32, #tpu.memory_space<vmem>>, vector<128x1xf32>
    %3 = vector.shape_cast %2 : vector<128x1xf32> to vector<128x1xf32>
    %4 = vector.broadcast %3 : vector<128x1xf32> to vector<128x16xf32>
    %5 = vector.shape_cast %4 : vector<128x16xf32> to vector<2x8x8x16xf32>
    %c0_5 = arith.constant 0 : index
    %c1 = arith.constant 1 : index
    %c1_6 = arith.constant 1 : index
    %c0_7 = arith.constant 0 : index
    %6 = vector.load %arg12[%c0_5, %c1, %c1_6, %c0_7] : memref<2x10x10x16xf32, #tpu.memory_space<vmem>>, vector<2x8x8x16xf32>
    tpu.vector_store %arg12[%c0_5, %c1, %c1_6, %c0_7], %5 {strides = array<i32>} : memref<2x10x10x16xf32, #tpu.memory_space<vmem>>, vector<2x8x8x16xf32>,
    %cst_8 = arith.constant 0.000000e+00 : f32
    %7 = vector.broadcast %cst_8 : f32 to vector<128x16xf32>
    %c0_9 = arith.constant 0 : index
    %c0_10 = arith.constant 0 : index
    %c0_11 = arith.constant 0 : index
    %c0_12 = arith.constant 0 : index
    %8 = vector.load %arg12[%c0_9, %c0_10, %c0_11, %c0_12] : memref<2x10x10x16xf32, #tpu.memory_space<vmem>>, vector<2x8x8x16xf32>
    %9 = vector.shape_cast %8 : vector<2x8x8x16xf32> to vector<128x16xf32>
    %c0_13 = arith.constant 0 : index
    %c0_14 = arith.constant 0 : index
    %10 = vector.load %arg1[%c0_13, %c0_14] : memref<9x16xf32, #tpu.memory_space<vmem>>, vector<1x16xf32>
    %11 = vector.broadcast %10 : vector<1x16xf32> to vector<128x16xf32>
    %12 = arith.mulf %9, %11 : vector<128x16xf32>
    %13 = arith.addf %7, %12 : vector<128x16xf32>
    %c0_15 = arith.constant 0 : index
    %c0_16 = arith.constant 0 : index
    %c1_17 = arith.constant 1 : index
    %c0_18 = arith.constant 0 : index
    %14 = vector.load %arg12[%c0_15, %c0_16, %c1_17, %c0_18] : memref<2x10x10x16xf32, #tpu.memory_space<vmem>>, vector<2x8x8x16xf32>
    %15 = vector.shape_cast %14 : vector<2x8x8x16xf32> to vector<128x16xf32>
    %c1_19 = arith.constant 1 : index
    %c0_20 = arith.constant 0 : index
    %16 = vector.load %arg1[%c1_19, %c0_20] : memref<9x16xf32, #tpu.memory_space<vmem>>, vector<1x16xf32>
    %17 = vector.broadcast %16 : vector<1x16xf32> to vector<128x16xf32>
    %18 = arith.mulf %15, %17 : vector<128x16xf32>
    %19 = arith.addf %13, %18 : vector<128x16xf32>
    %c0_21 = arith.constant 0 : index
    %c0_22 = arith.constant 0 : index
    %c2 = arith.constant 2 : index
    %c0_23 = arith.constant 0 : index
    %20 = vector.load %arg12[%c0_21, %c0_22, %c2, %c0_23] : memref<2x10x10x16xf32, #tpu.memory_space<vmem>>, vector<2x8x8x16xf32>
    %21 = vector.shape_cast %20 : vector<2x8x8x16xf32> to vector<128x16xf32>
    %c2_24 = arith.constant 2 : index
    %c0_25 = arith.constant 0 : index
    %22 = vector.load %arg1[%c2_24, %c0_25] : memref<9x16xf32, #tpu.memory_space<vmem>>, vector<1x16xf32>
    %23 = vector.broadcast %22 : vector<1x16xf32> to vector<128x16xf32>
    %24 = arith.mulf %21, %23 : vector<128x16xf32>
    %25 = arith.addf %19, %24 : vector<128x16xf32>
    %c0_26 = arith.constant 0 : index
    %c1_27 = arith.constant 1 : index
    %c0_28 = arith.constant 0 : index
    %c0_29 = arith.constant 0 : index
    %26 = vector.load %arg12[%c0_26, %c1_27, %c0_28, %c0_29] : memref<2x10x10x16xf32, #tpu.memory_space<vmem>>, vector<2x8x8x16xf32>
    %27 = vector.shape_cast %26 : vector<2x8x8x16xf32> to vector<128x16xf32>
    %c3 = arith.constant 3 : index
    %c0_30 = arith.constant 0 : index
    %28 = vector.load %arg1[%c3, %c0_30] : memref<9x16xf32, #tpu.memory_space<vmem>>, vector<1x16xf32>
    %29 = vector.broadcast %28 : vector<1x16xf32> to vector<128x16xf32>
    %30 = arith.mulf %27, %29 : vector<128x16xf32>
    %31 = arith.addf %25, %30 : vector<128x16xf32>
    %c0_31 = arith.constant 0 : index
    %c1_32 = arith.constant 1 : index
    %c1_33 = arith.constant 1 : index
    %c0_34 = arith.constant 0 : index
    %32 = vector.load %arg12[%c0_31, %c1_32, %c1_33, %c0_34] : memref<2x10x10x16xf32, #tpu.memory_space<vmem>>, vector<2x8x8x16xf32>
    %33 = vector.shape_cast %32 : vector<2x8x8x16xf32> to vector<128x16xf32>
    %c4 = arith.constant 4 : index
    %c0_35 = arith.constant 0 : index
    %34 = vector.load %arg1[%c4, %c0_35] : memref<9x16xf32, #tpu.memory_space<vmem>>, vector<1x16xf32>
    %35 = vector.broadcast %34 : vector<1x16xf32> to vector<128x16xf32>
    %36 = arith.mulf %33, %35 : vector<128x16xf32>
    %37 = arith.addf %31, %36 : vector<128x16xf32>
    %c0_36 = arith.constant 0 : index
    %c1_37 = arith.constant 1 : index
    %c2_38 = arith.constant 2 : index
    %c0_39 = arith.constant 0 : index
    %38 = vector.load %arg12[%c0_36, %c1_37, %c2_38, %c0_39] : memref<2x10x10x16xf32, #tpu.memory_space<vmem>>, vector<2x8x8x16xf32>
    %39 = vector.shape_cast %38 : vector<2x8x8x16xf32> to vector<128x16xf32>
    %c5 = arith.constant 5 : index
    %c0_40 = arith.constant 0 : index
    %40 = vector.load %arg1[%c5, %c0_40] : memref<9x16xf32, #tpu.memory_space<vmem>>, vector<1x16xf32>
    %41 = vector.broadcast %40 : vector<1x16xf32> to vector<128x16xf32>
    %42 = arith.mulf %39, %41 : vector<128x16xf32>
    %43 = arith.addf %37, %42 : vector<128x16xf32>
    %c0_41 = arith.constant 0 : index
    %c2_42 = arith.constant 2 : index
    %c0_43 = arith.constant 0 : index
    %c0_44 = arith.constant 0 : index
    %44 = vector.load %arg12[%c0_41, %c2_42, %c0_43, %c0_44] : memref<2x10x10x16xf32, #tpu.memory_space<vmem>>, vector<2x8x8x16xf32>
    %45 = vector.shape_cast %44 : vector<2x8x8x16xf32> to vector<128x16xf32>
    %c6 = arith.constant 6 : index
    %c0_45 = arith.constant 0 : index
    %46 = vector.load %arg1[%c6, %c0_45] : memref<9x16xf32, #tpu.memory_space<vmem>>, vector<1x16xf32>
    %47 = vector.broadcast %46 : vector<1x16xf32> to vector<128x16xf32>
    %48 = arith.mulf %45, %47 : vector<128x16xf32>
    %49 = arith.addf %43, %48 : vector<128x16xf32>
    %c0_46 = arith.constant 0 : index
    %c2_47 = arith.constant 2 : index
    %c1_48 = arith.constant 1 : index
    %c0_49 = arith.constant 0 : index
    %50 = vector.load %arg12[%c0_46, %c2_47, %c1_48, %c0_49] : memref<2x10x10x16xf32, #tpu.memory_space<vmem>>, vector<2x8x8x16xf32>
    %51 = vector.shape_cast %50 : vector<2x8x8x16xf32> to vector<128x16xf32>
    %c7 = arith.constant 7 : index
    %c0_50 = arith.constant 0 : index
    %52 = vector.load %arg1[%c7, %c0_50] : memref<9x16xf32, #tpu.memory_space<vmem>>, vector<1x16xf32>
    %53 = vector.broadcast %52 : vector<1x16xf32> to vector<128x16xf32>
    %54 = arith.mulf %51, %53 : vector<128x16xf32>
    %55 = arith.addf %49, %54 : vector<128x16xf32>
    %c0_51 = arith.constant 0 : index
    %c2_52 = arith.constant 2 : index
    %c2_53 = arith.constant 2 : index
    %c0_54 = arith.constant 0 : index
    %56 = vector.load %arg12[%c0_51, %c2_52, %c2_53, %c0_54] : memref<2x10x10x16xf32, #tpu.memory_space<vmem>>, vector<2x8x8x16xf32>
    %57 = vector.shape_cast %56 : vector<2x8x8x16xf32> to vector<128x16xf32>
    %c8 = arith.constant 8 : index
    %c0_55 = arith.constant 0 : index
    %58 = vector.load %arg1[%c8, %c0_55] : memref<9x16xf32, #tpu.memory_space<vmem>>, vector<1x16xf32>
    %59 = vector.broadcast %58 : vector<1x16xf32> to vector<128x16xf32>
    %60 = arith.mulf %57, %59 : vector<128x16xf32>
    %61 = arith.addf %55, %60 : vector<128x16xf32>
    %c0_56 = arith.constant 0 : index
    %c0_57 = arith.constant 0 : index
    %62 = vector.load %arg2[%c0_56, %c0_57] : memref<1x16xf32, #tpu.memory_space<vmem>>, vector<1x16xf32>
    %63 = vector.broadcast %62 : vector<1x16xf32> to vector<128x16xf32>
    %64 = arith.addf %61, %63 : vector<128x16xf32>
    %cst_58 = arith.constant 0.000000e+00 : f32
    %65 = vector.broadcast %cst_58 : f32 to vector<128x16xf32>
    %66 = arith.maximumf %64, %65 : vector<128x16xf32>
    %67 = vector.shape_cast %66 : vector<128x16xf32> to vector<2x8x8x16xf32>
    %c0_59 = arith.constant 0 : index
    %c1_60 = arith.constant 1 : index
    %c1_61 = arith.constant 1 : index
    %c0_62 = arith.constant 0 : index
    %68 = vector.load %arg12[%c0_59, %c1_60, %c1_61, %c0_62] : memref<2x10x10x16xf32, #tpu.memory_space<vmem>>, vector<2x8x8x16xf32>
    tpu.vector_store %arg12[%c0_59, %c1_60, %c1_61, %c0_62], %67 {strides = array<i32>} : memref<2x10x10x16xf32, #tpu.memory_space<vmem>>, vector<2x8x8x16xf32>,
    %c0_63 = arith.constant 0 : index
    %c0_64 = arith.constant 0 : index
    %c0_65 = arith.constant 0 : index
    %c0_66 = arith.constant 0 : index
    %69 = vector.load %arg12[%c0_63, %c0_64, %c0_65, %c0_66] : memref<2x10x10x16xf32, #tpu.memory_space<vmem>>, vector<2x8x8x16xf32>
    %70 = vector.shape_cast %69 : vector<2x8x8x16xf32> to vector<128x16xf32>
    %c0_67 = arith.constant 0 : index
    %c0_68 = arith.constant 0 : index
    %71 = vector.load %arg13[%c0_67, %c0_68] : memref<128x144xf32, #tpu.memory_space<vmem>>, vector<128x16xf32>
    tpu.vector_store %arg13[%c0_67, %c0_68], %70 {strides = array<i32>} : memref<128x144xf32, #tpu.memory_space<vmem>>, vector<128x16xf32>,
    %c0_69 = arith.constant 0 : index
    %c0_70 = arith.constant 0 : index
    %c1_71 = arith.constant 1 : index
    %c0_72 = arith.constant 0 : index
    %72 = vector.load %arg12[%c0_69, %c0_70, %c1_71, %c0_72] : memref<2x10x10x16xf32, #tpu.memory_space<vmem>>, vector<2x8x8x16xf32>
    %73 = vector.shape_cast %72 : vector<2x8x8x16xf32> to vector<128x16xf32>
    %c0_73 = arith.constant 0 : index
    %c16 = arith.constant 16 : index
    %74 = vector.load %arg13[%c0_73, %c16] : memref<128x144xf32, #tpu.memory_space<vmem>>, vector<128x16xf32>
    tpu.vector_store %arg13[%c0_73, %c16], %73 {strides = array<i32>} : memref<128x144xf32, #tpu.memory_space<vmem>>, vector<128x16xf32>,
    %c0_74 = arith.constant 0 : index
    %c0_75 = arith.constant 0 : index
    %c2_76 = arith.constant 2 : index
    %c0_77 = arith.constant 0 : index
    %75 = vector.load %arg12[%c0_74, %c0_75, %c2_76, %c0_77] : memref<2x10x10x16xf32, #tpu.memory_space<vmem>>, vector<2x8x8x16xf32>
    %76 = vector.shape_cast %75 : vector<2x8x8x16xf32> to vector<128x16xf32>
    %c0_78 = arith.constant 0 : index
    %c32 = arith.constant 32 : index
    %77 = vector.load %arg13[%c0_78, %c32] : memref<128x144xf32, #tpu.memory_space<vmem>>, vector<128x16xf32>
    tpu.vector_store %arg13[%c0_78, %c32], %76 {strides = array<i32>} : memref<128x144xf32, #tpu.memory_space<vmem>>, vector<128x16xf32>,
    %c0_79 = arith.constant 0 : index
    %c1_80 = arith.constant 1 : index
    %c0_81 = arith.constant 0 : index
    %c0_82 = arith.constant 0 : index
    %78 = vector.load %arg12[%c0_79, %c1_80, %c0_81, %c0_82] : memref<2x10x10x16xf32, #tpu.memory_space<vmem>>, vector<2x8x8x16xf32>
    %79 = vector.shape_cast %78 : vector<2x8x8x16xf32> to vector<128x16xf32>
    %c0_83 = arith.constant 0 : index
    %c48 = arith.constant 48 : index
    %80 = vector.load %arg13[%c0_83, %c48] : memref<128x144xf32, #tpu.memory_space<vmem>>, vector<128x16xf32>
    tpu.vector_store %arg13[%c0_83, %c48], %79 {strides = array<i32>} : memref<128x144xf32, #tpu.memory_space<vmem>>, vector<128x16xf32>,
    %c0_84 = arith.constant 0 : index
    %c1_85 = arith.constant 1 : index
    %c1_86 = arith.constant 1 : index
    %c0_87 = arith.constant 0 : index
    %81 = vector.load %arg12[%c0_84, %c1_85, %c1_86, %c0_87] : memref<2x10x10x16xf32, #tpu.memory_space<vmem>>, vector<2x8x8x16xf32>
    %82 = vector.shape_cast %81 : vector<2x8x8x16xf32> to vector<128x16xf32>
    %c0_88 = arith.constant 0 : index
    %c64 = arith.constant 64 : index
    %83 = vector.load %arg13[%c0_88, %c64] : memref<128x144xf32, #tpu.memory_space<vmem>>, vector<128x16xf32>
    tpu.vector_store %arg13[%c0_88, %c64], %82 {strides = array<i32>} : memref<128x144xf32, #tpu.memory_space<vmem>>, vector<128x16xf32>,
    %c0_89 = arith.constant 0 : index
    %c1_90 = arith.constant 1 : index
    %c2_91 = arith.constant 2 : index
    %c0_92 = arith.constant 0 : index
    %84 = vector.load %arg12[%c0_89, %c1_90, %c2_91, %c0_92] : memref<2x10x10x16xf32, #tpu.memory_space<vmem>>, vector<2x8x8x16xf32>
    %85 = vector.shape_cast %84 : vector<2x8x8x16xf32> to vector<128x16xf32>
    %c0_93 = arith.constant 0 : index
    %c80 = arith.constant 80 : index
    %86 = vector.load %arg13[%c0_93, %c80] : memref<128x144xf32, #tpu.memory_space<vmem>>, vector<128x16xf32>
    tpu.vector_store %arg13[%c0_93, %c80], %85 {strides = array<i32>} : memref<128x144xf32, #tpu.memory_space<vmem>>, vector<128x16xf32>,
    %c0_94 = arith.constant 0 : index
    %c2_95 = arith.constant 2 : index
    %c0_96 = arith.constant 0 : index
    %c0_97 = arith.constant 0 : index
    %87 = vector.load %arg12[%c0_94, %c2_95, %c0_96, %c0_97] : memref<2x10x10x16xf32, #tpu.memory_space<vmem>>, vector<2x8x8x16xf32>
    %88 = vector.shape_cast %87 : vector<2x8x8x16xf32> to vector<128x16xf32>
    %c0_98 = arith.constant 0 : index
    %c96 = arith.constant 96 : index
    %89 = vector.load %arg13[%c0_98, %c96] : memref<128x144xf32, #tpu.memory_space<vmem>>, vector<128x16xf32>
    tpu.vector_store %arg13[%c0_98, %c96], %88 {strides = array<i32>} : memref<128x144xf32, #tpu.memory_space<vmem>>, vector<128x16xf32>,
    %c0_99 = arith.constant 0 : index
    %c2_100 = arith.constant 2 : index
    %c1_101 = arith.constant 1 : index
    %c0_102 = arith.constant 0 : index
    %90 = vector.load %arg12[%c0_99, %c2_100, %c1_101, %c0_102] : memref<2x10x10x16xf32, #tpu.memory_space<vmem>>, vector<2x8x8x16xf32>
    %91 = vector.shape_cast %90 : vector<2x8x8x16xf32> to vector<128x16xf32>
    %c0_103 = arith.constant 0 : index
    %c112 = arith.constant 112 : index
    %92 = vector.load %arg13[%c0_103, %c112] : memref<128x144xf32, #tpu.memory_space<vmem>>, vector<128x16xf32>
    tpu.vector_store %arg13[%c0_103, %c112], %91 {strides = array<i32>} : memref<128x144xf32, #tpu.memory_space<vmem>>, vector<128x16xf32>,
    %c0_104 = arith.constant 0 : index
    %c2_105 = arith.constant 2 : index
    %c2_106 = arith.constant 2 : index
    %c0_107 = arith.constant 0 : index
    %93 = vector.load %arg12[%c0_104, %c2_105, %c2_106, %c0_107] : memref<2x10x10x16xf32, #tpu.memory_space<vmem>>, vector<2x8x8x16xf32>
    %94 = vector.shape_cast %93 : vector<2x8x8x16xf32> to vector<128x16xf32>
    %c0_108 = arith.constant 0 : index
    %c128 = arith.constant 128 : index
    %95 = vector.load %arg13[%c0_108, %c128] : memref<128x144xf32, #tpu.memory_space<vmem>>, vector<128x16xf32>
    tpu.vector_store %arg13[%c0_108, %c128], %94 {strides = array<i32>} : memref<128x144xf32, #tpu.memory_space<vmem>>, vector<128x16xf32>,
    %c0_109 = arith.constant 0 : index
    %c0_110 = arith.constant 0 : index
    %96 = vector.load %arg13[%c0_109, %c0_110] : memref<128x144xf32, #tpu.memory_space<vmem>>, vector<128x144xf32>
    %c0_111 = arith.constant 0 : index
    %c0_112 = arith.constant 0 : index
    %97 = vector.load %arg3[%c0_111, %c0_112] : memref<144x32xf32, #tpu.memory_space<vmem>>, vector<144x32xf32>
    %cst_113 = arith.constant dense<0.000000e+00> : vector<128x32xf32>
    %98 = tpu.matmul %96, %97, %cst_113 {dimension_numbers = #tpu.dot_dimension_numbers<[1], [0], [0], [1], [0, 0, 1, 1], [], []>} : vector<128x144xf32>, vector<144x32xf32>, vector<128x32xf32> -> vector<128x32xf32>
    %c0_114 = arith.constant 0 : index
    %c0_115 = arith.constant 0 : index
    %99 = vector.load %arg4[%c0_114, %c0_115] : memref<1x32xf32, #tpu.memory_space<vmem>>, vector<1x32xf32>
    %100 = vector.broadcast %99 : vector<1x32xf32> to vector<128x32xf32>
    %101 = arith.addf %98, %100 : vector<128x32xf32>
    %cst_116 = arith.constant 0.000000e+00 : f32
    %102 = vector.broadcast %cst_116 : f32 to vector<128x32xf32>
    %103 = arith.maximumf %101, %102 : vector<128x32xf32>
    %104 = vector.shape_cast %103 : vector<128x32xf32> to vector<2x64x32xf32>
    %105 = vector.extract_strided_slice %104 {offsets = [0, 0, 0], sizes = [2, 1, 32], strides = [1, 1, 1]} : vector<2x64x32xf32> to vector<2x1x32xf32>
    %106 = vector.shape_cast %105 : vector<2x1x32xf32> to vector<2x32xf32>
    %c0_117 = arith.constant 0 : index
    %c0_118 = arith.constant 0 : index
    %107 = vector.load %arg14[%c0_117, %c0_118] : memref<2x2048xf32, #tpu.memory_space<vmem>>, vector<2x32xf32>
    tpu.vector_store %arg14[%c0_117, %c0_118], %106 {strides = array<i32>} : memref<2x2048xf32, #tpu.memory_space<vmem>>, vector<2x32xf32>,
    %108 = vector.extract_strided_slice %104 {offsets = [0, 1, 0], sizes = [2, 1, 32], strides = [1, 1, 1]} : vector<2x64x32xf32> to vector<2x1x32xf32>
    %109 = vector.shape_cast %108 : vector<2x1x32xf32> to vector<2x32xf32>
    %c0_119 = arith.constant 0 : index
    %c32_120 = arith.constant 32 : index
    %110 = vector.load %arg14[%c0_119, %c32_120] : memref<2x2048xf32, #tpu.memory_space<vmem>>, vector<2x32xf32>
    tpu.vector_store %arg14[%c0_119, %c32_120], %109 {strides = array<i32>} : memref<2x2048xf32, #tpu.memory_space<vmem>>, vector<2x32xf32>,
    %111 = vector.extract_strided_slice %104 {offsets = [0, 2, 0], sizes = [2, 1, 32], strides = [1, 1, 1]} : vector<2x64x32xf32> to vector<2x1x32xf32>
    %112 = vector.shape_cast %111 : vector<2x1x32xf32> to vector<2x32xf32>
    %c0_121 = arith.constant 0 : index
    %c64_122 = arith.constant 64 : index
    %113 = vector.load %arg14[%c0_121, %c64_122] : memref<2x2048xf32, #tpu.memory_space<vmem>>, vector<2x32xf32>
    tpu.vector_store %arg14[%c0_121, %c64_122], %112 {strides = array<i32>} : memref<2x2048xf32, #tpu.memory_space<vmem>>, vector<2x32xf32>,
    %114 = vector.extract_strided_slice %104 {offsets = [0, 3, 0], sizes = [2, 1, 32], strides = [1, 1, 1]} : vector<2x64x32xf32> to vector<2x1x32xf32>
    %115 = vector.shape_cast %114 : vector<2x1x32xf32> to vector<2x32xf32>
    %c0_123 = arith.constant 0 : index
    %c96_124 = arith.constant 96 : index
    %116 = vector.load %arg14[%c0_123, %c96_124] : memref<2x2048xf32, #tpu.memory_space<vmem>>, vector<2x32xf32>
    tpu.vector_store %arg14[%c0_123, %c96_124], %115 {strides = array<i32>} : memref<2x2048xf32, #tpu.memory_space<vmem>>, vector<2x32xf32>,
    %117 = vector.extract_strided_slice %104 {offsets = [0, 4, 0], sizes = [2, 1, 32], strides = [1, 1, 1]} : vector<2x64x32xf32> to vector<2x1x32xf32>
    %118 = vector.shape_cast %117 : vector<2x1x32xf32> to vector<2x32xf32>
    %c0_125 = arith.constant 0 : index
    %c128_126 = arith.constant 128 : index
    %119 = vector.load %arg14[%c0_125, %c128_126] : memref<2x2048xf32, #tpu.memory_space<vmem>>, vector<2x32xf32>
    tpu.vector_store %arg14[%c0_125, %c128_126], %118 {strides = array<i32>} : memref<2x2048xf32, #tpu.memory_space<vmem>>, vector<2x32xf32>,
    %120 = vector.extract_strided_slice %104 {offsets = [0, 5, 0], sizes = [2, 1, 32], strides = [1, 1, 1]} : vector<2x64x32xf32> to vector<2x1x32xf32>
    %121 = vector.shape_cast %120 : vector<2x1x32xf32> to vector<2x32xf32>
    %c0_127 = arith.constant 0 : index
    %c160 = arith.constant 160 : index
    %122 = vector.load %arg14[%c0_127, %c160] : memref<2x2048xf32, #tpu.memory_space<vmem>>, vector<2x32xf32>
    tpu.vector_store %arg14[%c0_127, %c160], %121 {strides = array<i32>} : memref<2x2048xf32, #tpu.memory_space<vmem>>, vector<2x32xf32>,
    %123 = vector.extract_strided_slice %104 {offsets = [0, 6, 0], sizes = [2, 1, 32], strides = [1, 1, 1]} : vector<2x64x32xf32> to vector<2x1x32xf32>
    %124 = vector.shape_cast %123 : vector<2x1x32xf32> to vector<2x32xf32>
    %c0_128 = arith.constant 0 : index
    %c192 = arith.constant 192 : index
    %125 = vector.load %arg14[%c0_128, %c192] : memref<2x2048xf32, #tpu.memory_space<vmem>>, vector<2x32xf32>
    tpu.vector_store %arg14[%c0_128, %c192], %124 {strides = array<i32>} : memref<2x2048xf32, #tpu.memory_space<vmem>>, vector<2x32xf32>,
    %126 = vector.extract_strided_slice %104 {offsets = [0, 7, 0], sizes = [2, 1, 32], strides = [1, 1, 1]} : vector<2x64x32xf32> to vector<2x1x32xf32>
    %127 = vector.shape_cast %126 : vector<2x1x32xf32> to vector<2x32xf32>
    %c0_129 = arith.constant 0 : index
    %c224 = arith.constant 224 : index
    %128 = vector.load %arg14[%c0_129, %c224] : memref<2x2048xf32, #tpu.memory_space<vmem>>, vector<2x32xf32>
    tpu.vector_store %arg14[%c0_129, %c224], %127 {strides = array<i32>} : memref<2x2048xf32, #tpu.memory_space<vmem>>, vector<2x32xf32>,
    %129 = vector.extract_strided_slice %104 {offsets = [0, 8, 0], sizes = [2, 1, 32], strides = [1, 1, 1]} : vector<2x64x32xf32> to vector<2x1x32xf32>
    %130 = vector.shape_cast %129 : vector<2x1x32xf32> to vector<2x32xf32>
    %c0_130 = arith.constant 0 : index
    %c256 = arith.constant 256 : index
    %131 = vector.load %arg14[%c0_130, %c256] : memref<2x2048xf32, #tpu.memory_space<vmem>>, vector<2x32xf32>
    tpu.vector_store %arg14[%c0_130, %c256], %130 {strides = array<i32>} : memref<2x2048xf32, #tpu.memory_space<vmem>>, vector<2x32xf32>,
    %132 = vector.extract_strided_slice %104 {offsets = [0, 9, 0], sizes = [2, 1, 32], strides = [1, 1, 1]} : vector<2x64x32xf32> to vector<2x1x32xf32>
    %133 = vector.shape_cast %132 : vector<2x1x32xf32> to vector<2x32xf32>
    %c0_131 = arith.constant 0 : index
    %c288 = arith.constant 288 : index
    %134 = vector.load %arg14[%c0_131, %c288] : memref<2x2048xf32, #tpu.memory_space<vmem>>, vector<2x32xf32>
    tpu.vector_store %arg14[%c0_131, %c288], %133 {strides = array<i32>} : memref<2x2048xf32, #tpu.memory_space<vmem>>, vector<2x32xf32>,
    %135 = vector.extract_strided_slice %104 {offsets = [0, 10, 0], sizes = [2, 1, 32], strides = [1, 1, 1]} : vector<2x64x32xf32> to vector<2x1x32xf32>
    %136 = vector.shape_cast %135 : vector<2x1x32xf32> to vector<2x32xf32>
    %c0_132 = arith.constant 0 : index
    %c320 = arith.constant 320 : index
    %137 = vector.load %arg14[%c0_132, %c320] : memref<2x2048xf32, #tpu.memory_space<vmem>>, vector<2x32xf32>
    tpu.vector_store %arg14[%c0_132, %c320], %136 {strides = array<i32>} : memref<2x2048xf32, #tpu.memory_space<vmem>>, vector<2x32xf32>,
    %138 = vector.extract_strided_slice %104 {offsets = [0, 11, 0], sizes = [2, 1, 32], strides = [1, 1, 1]} : vector<2x64x32xf32> to vector<2x1x32xf32>
    %139 = vector.shape_cast %138 : vector<2x1x32xf32> to vector<2x32xf32>
    %c0_133 = arith.constant 0 : index
    %c352 = arith.constant 352 : index
    %140 = vector.load %arg14[%c0_133, %c352] : memref<2x2048xf32, #tpu.memory_space<vmem>>, vector<2x32xf32>
    tpu.vector_store %arg14[%c0_133, %c352], %139 {strides = array<i32>} : memref<2x2048xf32, #tpu.memory_space<vmem>>, vector<2x32xf32>,
    %141 = vector.extract_strided_slice %104 {offsets = [0, 12, 0], sizes = [2, 1, 32], strides = [1, 1, 1]} : vector<2x64x32xf32> to vector<2x1x32xf32>
    %142 = vector.shape_cast %141 : vector<2x1x32xf32> to vector<2x32xf32>
    %c0_134 = arith.constant 0 : index
    %c384 = arith.constant 384 : index
    %143 = vector.load %arg14[%c0_134, %c384] : memref<2x2048xf32, #tpu.memory_space<vmem>>, vector<2x32xf32>
    tpu.vector_store %arg14[%c0_134, %c384], %142 {strides = array<i32>} : memref<2x2048xf32, #tpu.memory_space<vmem>>, vector<2x32xf32>,
    %144 = vector.extract_strided_slice %104 {offsets = [0, 13, 0], sizes = [2, 1, 32], strides = [1, 1, 1]} : vector<2x64x32xf32> to vector<2x1x32xf32>
    %145 = vector.shape_cast %144 : vector<2x1x32xf32> to vector<2x32xf32>
    %c0_135 = arith.constant 0 : index
    %c416 = arith.constant 416 : index
    %146 = vector.load %arg14[%c0_135, %c416] : memref<2x2048xf32, #tpu.memory_space<vmem>>, vector<2x32xf32>
    tpu.vector_store %arg14[%c0_135, %c416], %145 {strides = array<i32>} : memref<2x2048xf32, #tpu.memory_space<vmem>>, vector<2x32xf32>,
    %147 = vector.extract_strided_slice %104 {offsets = [0, 14, 0], sizes = [2, 1, 32], strides = [1, 1, 1]} : vector<2x64x32xf32> to vector<2x1x32xf32>
    %148 = vector.shape_cast %147 : vector<2x1x32xf32> to vector<2x32xf32>
    %c0_136 = arith.constant 0 : index
    %c448 = arith.constant 448 : index
    %149 = vector.load %arg14[%c0_136, %c448] : memref<2x2048xf32, #tpu.memory_space<vmem>>, vector<2x32xf32>
    tpu.vector_store %arg14[%c0_136, %c448], %148 {strides = array<i32>} : memref<2x2048xf32, #tpu.memory_space<vmem>>, vector<2x32xf32>,
    %150 = vector.extract_strided_slice %104 {offsets = [0, 15, 0], sizes = [2, 1, 32], strides = [1, 1, 1]} : vector<2x64x32xf32> to vector<2x1x32xf32>
    %151 = vector.shape_cast %150 : vector<2x1x32xf32> to vector<2x32xf32>
    %c0_137 = arith.constant 0 : index
    %c480 = arith.constant 480 : index
    %152 = vector.load %arg14[%c0_137, %c480] : memref<2x2048xf32, #tpu.memory_space<vmem>>, vector<2x32xf32>
    tpu.vector_store %arg14[%c0_137, %c480], %151 {strides = array<i32>} : memref<2x2048xf32, #tpu.memory_space<vmem>>, vector<2x32xf32>,
    %153 = vector.extract_strided_slice %104 {offsets = [0, 16, 0], sizes = [2, 1, 32], strides = [1, 1, 1]} : vector<2x64x32xf32> to vector<2x1x32xf32>
    %154 = vector.shape_cast %153 : vector<2x1x32xf32> to vector<2x32xf32>
    %c0_138 = arith.constant 0 : index
    %c512 = arith.constant 512 : index
    %155 = vector.load %arg14[%c0_138, %c512] : memref<2x2048xf32, #tpu.memory_space<vmem>>, vector<2x32xf32>
    tpu.vector_store %arg14[%c0_138, %c512], %154 {strides = array<i32>} : memref<2x2048xf32, #tpu.memory_space<vmem>>, vector<2x32xf32>,
    %156 = vector.extract_strided_slice %104 {offsets = [0, 17, 0], sizes = [2, 1, 32], strides = [1, 1, 1]} : vector<2x64x32xf32> to vector<2x1x32xf32>
    %157 = vector.shape_cast %156 : vector<2x1x32xf32> to vector<2x32xf32>
    %c0_139 = arith.constant 0 : index
    %c544 = arith.constant 544 : index
    %158 = vector.load %arg14[%c0_139, %c544] : memref<2x2048xf32, #tpu.memory_space<vmem>>, vector<2x32xf32>
    tpu.vector_store %arg14[%c0_139, %c544], %157 {strides = array<i32>} : memref<2x2048xf32, #tpu.memory_space<vmem>>, vector<2x32xf32>,
    %159 = vector.extract_strided_slice %104 {offsets = [0, 18, 0], sizes = [2, 1, 32], strides = [1, 1, 1]} : vector<2x64x32xf32> to vector<2x1x32xf32>
    %160 = vector.shape_cast %159 : vector<2x1x32xf32> to vector<2x32xf32>
    %c0_140 = arith.constant 0 : index
    %c576 = arith.constant 576 : index
    %161 = vector.load %arg14[%c0_140, %c576] : memref<2x2048xf32, #tpu.memory_space<vmem>>, vector<2x32xf32>
    tpu.vector_store %arg14[%c0_140, %c576], %160 {strides = array<i32>} : memref<2x2048xf32, #tpu.memory_space<vmem>>, vector<2x32xf32>,
    %162 = vector.extract_strided_slice %104 {offsets = [0, 19, 0], sizes = [2, 1, 32], strides = [1, 1, 1]} : vector<2x64x32xf32> to vector<2x1x32xf32>
    %163 = vector.shape_cast %162 : vector<2x1x32xf32> to vector<2x32xf32>
    %c0_141 = arith.constant 0 : index
    %c608 = arith.constant 608 : index
    %164 = vector.load %arg14[%c0_141, %c608] : memref<2x2048xf32, #tpu.memory_space<vmem>>, vector<2x32xf32>
    tpu.vector_store %arg14[%c0_141, %c608], %163 {strides = array<i32>} : memref<2x2048xf32, #tpu.memory_space<vmem>>, vector<2x32xf32>,
    %165 = vector.extract_strided_slice %104 {offsets = [0, 20, 0], sizes = [2, 1, 32], strides = [1, 1, 1]} : vector<2x64x32xf32> to vector<2x1x32xf32>
    %166 = vector.shape_cast %165 : vector<2x1x32xf32> to vector<2x32xf32>
    %c0_142 = arith.constant 0 : index
    %c640 = arith.constant 640 : index
    %167 = vector.load %arg14[%c0_142, %c640] : memref<2x2048xf32, #tpu.memory_space<vmem>>, vector<2x32xf32>
    tpu.vector_store %arg14[%c0_142, %c640], %166 {strides = array<i32>} : memref<2x2048xf32, #tpu.memory_space<vmem>>, vector<2x32xf32>,
    %168 = vector.extract_strided_slice %104 {offsets = [0, 21, 0], sizes = [2, 1, 32], strides = [1, 1, 1]} : vector<2x64x32xf32> to vector<2x1x32xf32>
    %169 = vector.shape_cast %168 : vector<2x1x32xf32> to vector<2x32xf32>
    %c0_143 = arith.constant 0 : index
    %c672 = arith.constant 672 : index
    %170 = vector.load %arg14[%c0_143, %c672] : memref<2x2048xf32, #tpu.memory_space<vmem>>, vector<2x32xf32>
    tpu.vector_store %arg14[%c0_143, %c672], %169 {strides = array<i32>} : memref<2x2048xf32, #tpu.memory_space<vmem>>, vector<2x32xf32>,
    %171 = vector.extract_strided_slice %104 {offsets = [0, 22, 0], sizes = [2, 1, 32], strides = [1, 1, 1]} : vector<2x64x32xf32> to vector<2x1x32xf32>
    %172 = vector.shape_cast %171 : vector<2x1x32xf32> to vector<2x32xf32>
    %c0_144 = arith.constant 0 : index
    %c704 = arith.constant 704 : index
    %173 = vector.load %arg14[%c0_144, %c704] : memref<2x2048xf32, #tpu.memory_space<vmem>>, vector<2x32xf32>
    tpu.vector_store %arg14[%c0_144, %c704], %172 {strides = array<i32>} : memref<2x2048xf32, #tpu.memory_space<vmem>>, vector<2x32xf32>,
    %174 = vector.extract_strided_slice %104 {offsets = [0, 23, 0], sizes = [2, 1, 32], strides = [1, 1, 1]} : vector<2x64x32xf32> to vector<2x1x32xf32>
    %175 = vector.shape_cast %174 : vector<2x1x32xf32> to vector<2x32xf32>
    %c0_145 = arith.constant 0 : index
    %c736 = arith.constant 736 : index
    %176 = vector.load %arg14[%c0_145, %c736] : memref<2x2048xf32, #tpu.memory_space<vmem>>, vector<2x32xf32>
    tpu.vector_store %arg14[%c0_145, %c736], %175 {strides = array<i32>} : memref<2x2048xf32, #tpu.memory_space<vmem>>, vector<2x32xf32>,
    %177 = vector.extract_strided_slice %104 {offsets = [0, 24, 0], sizes = [2, 1, 32], strides = [1, 1, 1]} : vector<2x64x32xf32> to vector<2x1x32xf32>
    %178 = vector.shape_cast %177 : vector<2x1x32xf32> to vector<2x32xf32>
    %c0_146 = arith.constant 0 : index
    %c768 = arith.constant 768 : index
    %179 = vector.load %arg14[%c0_146, %c768] : memref<2x2048xf32, #tpu.memory_space<vmem>>, vector<2x32xf32>
    tpu.vector_store %arg14[%c0_146, %c768], %178 {strides = array<i32>} : memref<2x2048xf32, #tpu.memory_space<vmem>>, vector<2x32xf32>,
    %180 = vector.extract_strided_slice %104 {offsets = [0, 25, 0], sizes = [2, 1, 32], strides = [1, 1, 1]} : vector<2x64x32xf32> to vector<2x1x32xf32>
    %181 = vector.shape_cast %180 : vector<2x1x32xf32> to vector<2x32xf32>
    %c0_147 = arith.constant 0 : index
    %c800 = arith.constant 800 : index
    %182 = vector.load %arg14[%c0_147, %c800] : memref<2x2048xf32, #tpu.memory_space<vmem>>, vector<2x32xf32>
    tpu.vector_store %arg14[%c0_147, %c800], %181 {strides = array<i32>} : memref<2x2048xf32, #tpu.memory_space<vmem>>, vector<2x32xf32>,
    %183 = vector.extract_strided_slice %104 {offsets = [0, 26, 0], sizes = [2, 1, 32], strides = [1, 1, 1]} : vector<2x64x32xf32> to vector<2x1x32xf32>
    %184 = vector.shape_cast %183 : vector<2x1x32xf32> to vector<2x32xf32>
    %c0_148 = arith.constant 0 : index
    %c832 = arith.constant 832 : index
    %185 = vector.load %arg14[%c0_148, %c832] : memref<2x2048xf32, #tpu.memory_space<vmem>>, vector<2x32xf32>
    tpu.vector_store %arg14[%c0_148, %c832], %184 {strides = array<i32>} : memref<2x2048xf32, #tpu.memory_space<vmem>>, vector<2x32xf32>,
    %186 = vector.extract_strided_slice %104 {offsets = [0, 27, 0], sizes = [2, 1, 32], strides = [1, 1, 1]} : vector<2x64x32xf32> to vector<2x1x32xf32>
    %187 = vector.shape_cast %186 : vector<2x1x32xf32> to vector<2x32xf32>
    %c0_149 = arith.constant 0 : index
    %c864 = arith.constant 864 : index
    %188 = vector.load %arg14[%c0_149, %c864] : memref<2x2048xf32, #tpu.memory_space<vmem>>, vector<2x32xf32>
    tpu.vector_store %arg14[%c0_149, %c864], %187 {strides = array<i32>} : memref<2x2048xf32, #tpu.memory_space<vmem>>, vector<2x32xf32>,
    %189 = vector.extract_strided_slice %104 {offsets = [0, 28, 0], sizes = [2, 1, 32], strides = [1, 1, 1]} : vector<2x64x32xf32> to vector<2x1x32xf32>
    %190 = vector.shape_cast %189 : vector<2x1x32xf32> to vector<2x32xf32>
    %c0_150 = arith.constant 0 : index
    %c896 = arith.constant 896 : index
    %191 = vector.load %arg14[%c0_150, %c896] : memref<2x2048xf32, #tpu.memory_space<vmem>>, vector<2x32xf32>
    tpu.vector_store %arg14[%c0_150, %c896], %190 {strides = array<i32>} : memref<2x2048xf32, #tpu.memory_space<vmem>>, vector<2x32xf32>,
    %192 = vector.extract_strided_slice %104 {offsets = [0, 29, 0], sizes = [2, 1, 32], strides = [1, 1, 1]} : vector<2x64x32xf32> to vector<2x1x32xf32>
    %193 = vector.shape_cast %192 : vector<2x1x32xf32> to vector<2x32xf32>
    %c0_151 = arith.constant 0 : index
    %c928 = arith.constant 928 : index
    %194 = vector.load %arg14[%c0_151, %c928] : memref<2x2048xf32, #tpu.memory_space<vmem>>, vector<2x32xf32>
    tpu.vector_store %arg14[%c0_151, %c928], %193 {strides = array<i32>} : memref<2x2048xf32, #tpu.memory_space<vmem>>, vector<2x32xf32>,
    %195 = vector.extract_strided_slice %104 {offsets = [0, 30, 0], sizes = [2, 1, 32], strides = [1, 1, 1]} : vector<2x64x32xf32> to vector<2x1x32xf32>
    %196 = vector.shape_cast %195 : vector<2x1x32xf32> to vector<2x32xf32>
    %c0_152 = arith.constant 0 : index
    %c960 = arith.constant 960 : index
    %197 = vector.load %arg14[%c0_152, %c960] : memref<2x2048xf32, #tpu.memory_space<vmem>>, vector<2x32xf32>
    tpu.vector_store %arg14[%c0_152, %c960], %196 {strides = array<i32>} : memref<2x2048xf32, #tpu.memory_space<vmem>>, vector<2x32xf32>,
    %198 = vector.extract_strided_slice %104 {offsets = [0, 31, 0], sizes = [2, 1, 32], strides = [1, 1, 1]} : vector<2x64x32xf32> to vector<2x1x32xf32>
    %199 = vector.shape_cast %198 : vector<2x1x32xf32> to vector<2x32xf32>
    %c0_153 = arith.constant 0 : index
    %c992 = arith.constant 992 : index
    %200 = vector.load %arg14[%c0_153, %c992] : memref<2x2048xf32, #tpu.memory_space<vmem>>, vector<2x32xf32>
    tpu.vector_store %arg14[%c0_153, %c992], %199 {strides = array<i32>} : memref<2x2048xf32, #tpu.memory_space<vmem>>, vector<2x32xf32>,
    %201 = vector.extract_strided_slice %104 {offsets = [0, 32, 0], sizes = [2, 1, 32], strides = [1, 1, 1]} : vector<2x64x32xf32> to vector<2x1x32xf32>
    %202 = vector.shape_cast %201 : vector<2x1x32xf32> to vector<2x32xf32>
    %c0_154 = arith.constant 0 : index
    %c1024 = arith.constant 1024 : index
    %203 = vector.load %arg14[%c0_154, %c1024] : memref<2x2048xf32, #tpu.memory_space<vmem>>, vector<2x32xf32>
    tpu.vector_store %arg14[%c0_154, %c1024], %202 {strides = array<i32>} : memref<2x2048xf32, #tpu.memory_space<vmem>>, vector<2x32xf32>,
    %204 = vector.extract_strided_slice %104 {offsets = [0, 33, 0], sizes = [2, 1, 32], strides = [1, 1, 1]} : vector<2x64x32xf32> to vector<2x1x32xf32>
    %205 = vector.shape_cast %204 : vector<2x1x32xf32> to vector<2x32xf32>
    %c0_155 = arith.constant 0 : index
    %c1056 = arith.constant 1056 : index
    %206 = vector.load %arg14[%c0_155, %c1056] : memref<2x2048xf32, #tpu.memory_space<vmem>>, vector<2x32xf32>
    tpu.vector_store %arg14[%c0_155, %c1056], %205 {strides = array<i32>} : memref<2x2048xf32, #tpu.memory_space<vmem>>, vector<2x32xf32>,
    %207 = vector.extract_strided_slice %104 {offsets = [0, 34, 0], sizes = [2, 1, 32], strides = [1, 1, 1]} : vector<2x64x32xf32> to vector<2x1x32xf32>
    %208 = vector.shape_cast %207 : vector<2x1x32xf32> to vector<2x32xf32>
    %c0_156 = arith.constant 0 : index
    %c1088 = arith.constant 1088 : index
    %209 = vector.load %arg14[%c0_156, %c1088] : memref<2x2048xf32, #tpu.memory_space<vmem>>, vector<2x32xf32>
    tpu.vector_store %arg14[%c0_156, %c1088], %208 {strides = array<i32>} : memref<2x2048xf32, #tpu.memory_space<vmem>>, vector<2x32xf32>,
    %210 = vector.extract_strided_slice %104 {offsets = [0, 35, 0], sizes = [2, 1, 32], strides = [1, 1, 1]} : vector<2x64x32xf32> to vector<2x1x32xf32>
    %211 = vector.shape_cast %210 : vector<2x1x32xf32> to vector<2x32xf32>
    %c0_157 = arith.constant 0 : index
    %c1120 = arith.constant 1120 : index
    %212 = vector.load %arg14[%c0_157, %c1120] : memref<2x2048xf32, #tpu.memory_space<vmem>>, vector<2x32xf32>
    tpu.vector_store %arg14[%c0_157, %c1120], %211 {strides = array<i32>} : memref<2x2048xf32, #tpu.memory_space<vmem>>, vector<2x32xf32>,
    %213 = vector.extract_strided_slice %104 {offsets = [0, 36, 0], sizes = [2, 1, 32], strides = [1, 1, 1]} : vector<2x64x32xf32> to vector<2x1x32xf32>
    %214 = vector.shape_cast %213 : vector<2x1x32xf32> to vector<2x32xf32>
    %c0_158 = arith.constant 0 : index
    %c1152 = arith.constant 1152 : index
    %215 = vector.load %arg14[%c0_158, %c1152] : memref<2x2048xf32, #tpu.memory_space<vmem>>, vector<2x32xf32>
    tpu.vector_store %arg14[%c0_158, %c1152], %214 {strides = array<i32>} : memref<2x2048xf32, #tpu.memory_space<vmem>>, vector<2x32xf32>,
    %216 = vector.extract_strided_slice %104 {offsets = [0, 37, 0], sizes = [2, 1, 32], strides = [1, 1, 1]} : vector<2x64x32xf32> to vector<2x1x32xf32>
    %217 = vector.shape_cast %216 : vector<2x1x32xf32> to vector<2x32xf32>
    %c0_159 = arith.constant 0 : index
    %c1184 = arith.constant 1184 : index
    %218 = vector.load %arg14[%c0_159, %c1184] : memref<2x2048xf32, #tpu.memory_space<vmem>>, vector<2x32xf32>
    tpu.vector_store %arg14[%c0_159, %c1184], %217 {strides = array<i32>} : memref<2x2048xf32, #tpu.memory_space<vmem>>, vector<2x32xf32>,
    %219 = vector.extract_strided_slice %104 {offsets = [0, 38, 0], sizes = [2, 1, 32], strides = [1, 1, 1]} : vector<2x64x32xf32> to vector<2x1x32xf32>
    %220 = vector.shape_cast %219 : vector<2x1x32xf32> to vector<2x32xf32>
    %c0_160 = arith.constant 0 : index
    %c1216 = arith.constant 1216 : index
    %221 = vector.load %arg14[%c0_160, %c1216] : memref<2x2048xf32, #tpu.memory_space<vmem>>, vector<2x32xf32>
    tpu.vector_store %arg14[%c0_160, %c1216], %220 {strides = array<i32>} : memref<2x2048xf32, #tpu.memory_space<vmem>>, vector<2x32xf32>,
    %222 = vector.extract_strided_slice %104 {offsets = [0, 39, 0], sizes = [2, 1, 32], strides = [1, 1, 1]} : vector<2x64x32xf32> to vector<2x1x32xf32>
    %223 = vector.shape_cast %222 : vector<2x1x32xf32> to vector<2x32xf32>
    %c0_161 = arith.constant 0 : index
    %c1248 = arith.constant 1248 : index
    %224 = vector.load %arg14[%c0_161, %c1248] : memref<2x2048xf32, #tpu.memory_space<vmem>>, vector<2x32xf32>
    tpu.vector_store %arg14[%c0_161, %c1248], %223 {strides = array<i32>} : memref<2x2048xf32, #tpu.memory_space<vmem>>, vector<2x32xf32>,
    %225 = vector.extract_strided_slice %104 {offsets = [0, 40, 0], sizes = [2, 1, 32], strides = [1, 1, 1]} : vector<2x64x32xf32> to vector<2x1x32xf32>
    %226 = vector.shape_cast %225 : vector<2x1x32xf32> to vector<2x32xf32>
    %c0_162 = arith.constant 0 : index
    %c1280 = arith.constant 1280 : index
    %227 = vector.load %arg14[%c0_162, %c1280] : memref<2x2048xf32, #tpu.memory_space<vmem>>, vector<2x32xf32>
    tpu.vector_store %arg14[%c0_162, %c1280], %226 {strides = array<i32>} : memref<2x2048xf32, #tpu.memory_space<vmem>>, vector<2x32xf32>,
    %228 = vector.extract_strided_slice %104 {offsets = [0, 41, 0], sizes = [2, 1, 32], strides = [1, 1, 1]} : vector<2x64x32xf32> to vector<2x1x32xf32>
    %229 = vector.shape_cast %228 : vector<2x1x32xf32> to vector<2x32xf32>
    %c0_163 = arith.constant 0 : index
    %c1312 = arith.constant 1312 : index
    %230 = vector.load %arg14[%c0_163, %c1312] : memref<2x2048xf32, #tpu.memory_space<vmem>>, vector<2x32xf32>
    tpu.vector_store %arg14[%c0_163, %c1312], %229 {strides = array<i32>} : memref<2x2048xf32, #tpu.memory_space<vmem>>, vector<2x32xf32>,
    %231 = vector.extract_strided_slice %104 {offsets = [0, 42, 0], sizes = [2, 1, 32], strides = [1, 1, 1]} : vector<2x64x32xf32> to vector<2x1x32xf32>
    %232 = vector.shape_cast %231 : vector<2x1x32xf32> to vector<2x32xf32>
    %c0_164 = arith.constant 0 : index
    %c1344 = arith.constant 1344 : index
    %233 = vector.load %arg14[%c0_164, %c1344] : memref<2x2048xf32, #tpu.memory_space<vmem>>, vector<2x32xf32>
    tpu.vector_store %arg14[%c0_164, %c1344], %232 {strides = array<i32>} : memref<2x2048xf32, #tpu.memory_space<vmem>>, vector<2x32xf32>,
    %234 = vector.extract_strided_slice %104 {offsets = [0, 43, 0], sizes = [2, 1, 32], strides = [1, 1, 1]} : vector<2x64x32xf32> to vector<2x1x32xf32>
    %235 = vector.shape_cast %234 : vector<2x1x32xf32> to vector<2x32xf32>
    %c0_165 = arith.constant 0 : index
    %c1376 = arith.constant 1376 : index
    %236 = vector.load %arg14[%c0_165, %c1376] : memref<2x2048xf32, #tpu.memory_space<vmem>>, vector<2x32xf32>
    tpu.vector_store %arg14[%c0_165, %c1376], %235 {strides = array<i32>} : memref<2x2048xf32, #tpu.memory_space<vmem>>, vector<2x32xf32>,
    %237 = vector.extract_strided_slice %104 {offsets = [0, 44, 0], sizes = [2, 1, 32], strides = [1, 1, 1]} : vector<2x64x32xf32> to vector<2x1x32xf32>
    %238 = vector.shape_cast %237 : vector<2x1x32xf32> to vector<2x32xf32>
    %c0_166 = arith.constant 0 : index
    %c1408 = arith.constant 1408 : index
    %239 = vector.load %arg14[%c0_166, %c1408] : memref<2x2048xf32, #tpu.memory_space<vmem>>, vector<2x32xf32>
    tpu.vector_store %arg14[%c0_166, %c1408], %238 {strides = array<i32>} : memref<2x2048xf32, #tpu.memory_space<vmem>>, vector<2x32xf32>,
    %240 = vector.extract_strided_slice %104 {offsets = [0, 45, 0], sizes = [2, 1, 32], strides = [1, 1, 1]} : vector<2x64x32xf32> to vector<2x1x32xf32>
    %241 = vector.shape_cast %240 : vector<2x1x32xf32> to vector<2x32xf32>
    %c0_167 = arith.constant 0 : index
    %c1440 = arith.constant 1440 : index
    %242 = vector.load %arg14[%c0_167, %c1440] : memref<2x2048xf32, #tpu.memory_space<vmem>>, vector<2x32xf32>
    tpu.vector_store %arg14[%c0_167, %c1440], %241 {strides = array<i32>} : memref<2x2048xf32, #tpu.memory_space<vmem>>, vector<2x32xf32>,
    %243 = vector.extract_strided_slice %104 {offsets = [0, 46, 0], sizes = [2, 1, 32], strides = [1, 1, 1]} : vector<2x64x32xf32> to vector<2x1x32xf32>
    %244 = vector.shape_cast %243 : vector<2x1x32xf32> to vector<2x32xf32>
    %c0_168 = arith.constant 0 : index
    %c1472 = arith.constant 1472 : index
    %245 = vector.load %arg14[%c0_168, %c1472] : memref<2x2048xf32, #tpu.memory_space<vmem>>, vector<2x32xf32>
    tpu.vector_store %arg14[%c0_168, %c1472], %244 {strides = array<i32>} : memref<2x2048xf32, #tpu.memory_space<vmem>>, vector<2x32xf32>,
    %246 = vector.extract_strided_slice %104 {offsets = [0, 47, 0], sizes = [2, 1, 32], strides = [1, 1, 1]} : vector<2x64x32xf32> to vector<2x1x32xf32>
    %247 = vector.shape_cast %246 : vector<2x1x32xf32> to vector<2x32xf32>
    %c0_169 = arith.constant 0 : index
    %c1504 = arith.constant 1504 : index
    %248 = vector.load %arg14[%c0_169, %c1504] : memref<2x2048xf32, #tpu.memory_space<vmem>>, vector<2x32xf32>
    tpu.vector_store %arg14[%c0_169, %c1504], %247 {strides = array<i32>} : memref<2x2048xf32, #tpu.memory_space<vmem>>, vector<2x32xf32>,
    %249 = vector.extract_strided_slice %104 {offsets = [0, 48, 0], sizes = [2, 1, 32], strides = [1, 1, 1]} : vector<2x64x32xf32> to vector<2x1x32xf32>
    %250 = vector.shape_cast %249 : vector<2x1x32xf32> to vector<2x32xf32>
    %c0_170 = arith.constant 0 : index
    %c1536 = arith.constant 1536 : index
    %251 = vector.load %arg14[%c0_170, %c1536] : memref<2x2048xf32, #tpu.memory_space<vmem>>, vector<2x32xf32>
    tpu.vector_store %arg14[%c0_170, %c1536], %250 {strides = array<i32>} : memref<2x2048xf32, #tpu.memory_space<vmem>>, vector<2x32xf32>,
    %252 = vector.extract_strided_slice %104 {offsets = [0, 49, 0], sizes = [2, 1, 32], strides = [1, 1, 1]} : vector<2x64x32xf32> to vector<2x1x32xf32>
    %253 = vector.shape_cast %252 : vector<2x1x32xf32> to vector<2x32xf32>
    %c0_171 = arith.constant 0 : index
    %c1568 = arith.constant 1568 : index
    %254 = vector.load %arg14[%c0_171, %c1568] : memref<2x2048xf32, #tpu.memory_space<vmem>>, vector<2x32xf32>
    tpu.vector_store %arg14[%c0_171, %c1568], %253 {strides = array<i32>} : memref<2x2048xf32, #tpu.memory_space<vmem>>, vector<2x32xf32>,
    %255 = vector.extract_strided_slice %104 {offsets = [0, 50, 0], sizes = [2, 1, 32], strides = [1, 1, 1]} : vector<2x64x32xf32> to vector<2x1x32xf32>
    %256 = vector.shape_cast %255 : vector<2x1x32xf32> to vector<2x32xf32>
    %c0_172 = arith.constant 0 : index
    %c1600 = arith.constant 1600 : index
    %257 = vector.load %arg14[%c0_172, %c1600] : memref<2x2048xf32, #tpu.memory_space<vmem>>, vector<2x32xf32>
    tpu.vector_store %arg14[%c0_172, %c1600], %256 {strides = array<i32>} : memref<2x2048xf32, #tpu.memory_space<vmem>>, vector<2x32xf32>,
    %258 = vector.extract_strided_slice %104 {offsets = [0, 51, 0], sizes = [2, 1, 32], strides = [1, 1, 1]} : vector<2x64x32xf32> to vector<2x1x32xf32>
    %259 = vector.shape_cast %258 : vector<2x1x32xf32> to vector<2x32xf32>
    %c0_173 = arith.constant 0 : index
    %c1632 = arith.constant 1632 : index
    %260 = vector.load %arg14[%c0_173, %c1632] : memref<2x2048xf32, #tpu.memory_space<vmem>>, vector<2x32xf32>
    tpu.vector_store %arg14[%c0_173, %c1632], %259 {strides = array<i32>} : memref<2x2048xf32, #tpu.memory_space<vmem>>, vector<2x32xf32>,
    %261 = vector.extract_strided_slice %104 {offsets = [0, 52, 0], sizes = [2, 1, 32], strides = [1, 1, 1]} : vector<2x64x32xf32> to vector<2x1x32xf32>
    %262 = vector.shape_cast %261 : vector<2x1x32xf32> to vector<2x32xf32>
    %c0_174 = arith.constant 0 : index
    %c1664 = arith.constant 1664 : index
    %263 = vector.load %arg14[%c0_174, %c1664] : memref<2x2048xf32, #tpu.memory_space<vmem>>, vector<2x32xf32>
    tpu.vector_store %arg14[%c0_174, %c1664], %262 {strides = array<i32>} : memref<2x2048xf32, #tpu.memory_space<vmem>>, vector<2x32xf32>,
    %264 = vector.extract_strided_slice %104 {offsets = [0, 53, 0], sizes = [2, 1, 32], strides = [1, 1, 1]} : vector<2x64x32xf32> to vector<2x1x32xf32>
    %265 = vector.shape_cast %264 : vector<2x1x32xf32> to vector<2x32xf32>
    %c0_175 = arith.constant 0 : index
    %c1696 = arith.constant 1696 : index
    %266 = vector.load %arg14[%c0_175, %c1696] : memref<2x2048xf32, #tpu.memory_space<vmem>>, vector<2x32xf32>
    tpu.vector_store %arg14[%c0_175, %c1696], %265 {strides = array<i32>} : memref<2x2048xf32, #tpu.memory_space<vmem>>, vector<2x32xf32>,
    %267 = vector.extract_strided_slice %104 {offsets = [0, 54, 0], sizes = [2, 1, 32], strides = [1, 1, 1]} : vector<2x64x32xf32> to vector<2x1x32xf32>
    %268 = vector.shape_cast %267 : vector<2x1x32xf32> to vector<2x32xf32>
    %c0_176 = arith.constant 0 : index
    %c1728 = arith.constant 1728 : index
    %269 = vector.load %arg14[%c0_176, %c1728] : memref<2x2048xf32, #tpu.memory_space<vmem>>, vector<2x32xf32>
    tpu.vector_store %arg14[%c0_176, %c1728], %268 {strides = array<i32>} : memref<2x2048xf32, #tpu.memory_space<vmem>>, vector<2x32xf32>,
    %270 = vector.extract_strided_slice %104 {offsets = [0, 55, 0], sizes = [2, 1, 32], strides = [1, 1, 1]} : vector<2x64x32xf32> to vector<2x1x32xf32>
    %271 = vector.shape_cast %270 : vector<2x1x32xf32> to vector<2x32xf32>
    %c0_177 = arith.constant 0 : index
    %c1760 = arith.constant 1760 : index
    %272 = vector.load %arg14[%c0_177, %c1760] : memref<2x2048xf32, #tpu.memory_space<vmem>>, vector<2x32xf32>
    tpu.vector_store %arg14[%c0_177, %c1760], %271 {strides = array<i32>} : memref<2x2048xf32, #tpu.memory_space<vmem>>, vector<2x32xf32>,
    %273 = vector.extract_strided_slice %104 {offsets = [0, 56, 0], sizes = [2, 1, 32], strides = [1, 1, 1]} : vector<2x64x32xf32> to vector<2x1x32xf32>
    %274 = vector.shape_cast %273 : vector<2x1x32xf32> to vector<2x32xf32>
    %c0_178 = arith.constant 0 : index
    %c1792 = arith.constant 1792 : index
    %275 = vector.load %arg14[%c0_178, %c1792] : memref<2x2048xf32, #tpu.memory_space<vmem>>, vector<2x32xf32>
    tpu.vector_store %arg14[%c0_178, %c1792], %274 {strides = array<i32>} : memref<2x2048xf32, #tpu.memory_space<vmem>>, vector<2x32xf32>,
    %276 = vector.extract_strided_slice %104 {offsets = [0, 57, 0], sizes = [2, 1, 32], strides = [1, 1, 1]} : vector<2x64x32xf32> to vector<2x1x32xf32>
    %277 = vector.shape_cast %276 : vector<2x1x32xf32> to vector<2x32xf32>
    %c0_179 = arith.constant 0 : index
    %c1824 = arith.constant 1824 : index
    %278 = vector.load %arg14[%c0_179, %c1824] : memref<2x2048xf32, #tpu.memory_space<vmem>>, vector<2x32xf32>
    tpu.vector_store %arg14[%c0_179, %c1824], %277 {strides = array<i32>} : memref<2x2048xf32, #tpu.memory_space<vmem>>, vector<2x32xf32>,
    %279 = vector.extract_strided_slice %104 {offsets = [0, 58, 0], sizes = [2, 1, 32], strides = [1, 1, 1]} : vector<2x64x32xf32> to vector<2x1x32xf32>
    %280 = vector.shape_cast %279 : vector<2x1x32xf32> to vector<2x32xf32>
    %c0_180 = arith.constant 0 : index
    %c1856 = arith.constant 1856 : index
    %281 = vector.load %arg14[%c0_180, %c1856] : memref<2x2048xf32, #tpu.memory_space<vmem>>, vector<2x32xf32>
    tpu.vector_store %arg14[%c0_180, %c1856], %280 {strides = array<i32>} : memref<2x2048xf32, #tpu.memory_space<vmem>>, vector<2x32xf32>,
    %282 = vector.extract_strided_slice %104 {offsets = [0, 59, 0], sizes = [2, 1, 32], strides = [1, 1, 1]} : vector<2x64x32xf32> to vector<2x1x32xf32>
    %283 = vector.shape_cast %282 : vector<2x1x32xf32> to vector<2x32xf32>
    %c0_181 = arith.constant 0 : index
    %c1888 = arith.constant 1888 : index
    %284 = vector.load %arg14[%c0_181, %c1888] : memref<2x2048xf32, #tpu.memory_space<vmem>>, vector<2x32xf32>
    tpu.vector_store %arg14[%c0_181, %c1888], %283 {strides = array<i32>} : memref<2x2048xf32, #tpu.memory_space<vmem>>, vector<2x32xf32>,
    %285 = vector.extract_strided_slice %104 {offsets = [0, 60, 0], sizes = [2, 1, 32], strides = [1, 1, 1]} : vector<2x64x32xf32> to vector<2x1x32xf32>
    %286 = vector.shape_cast %285 : vector<2x1x32xf32> to vector<2x32xf32>
    %c0_182 = arith.constant 0 : index
    %c1920 = arith.constant 1920 : index
    %287 = vector.load %arg14[%c0_182, %c1920] : memref<2x2048xf32, #tpu.memory_space<vmem>>, vector<2x32xf32>
    tpu.vector_store %arg14[%c0_182, %c1920], %286 {strides = array<i32>} : memref<2x2048xf32, #tpu.memory_space<vmem>>, vector<2x32xf32>,
    %288 = vector.extract_strided_slice %104 {offsets = [0, 61, 0], sizes = [2, 1, 32], strides = [1, 1, 1]} : vector<2x64x32xf32> to vector<2x1x32xf32>
    %289 = vector.shape_cast %288 : vector<2x1x32xf32> to vector<2x32xf32>
    %c0_183 = arith.constant 0 : index
    %c1952 = arith.constant 1952 : index
    %290 = vector.load %arg14[%c0_183, %c1952] : memref<2x2048xf32, #tpu.memory_space<vmem>>, vector<2x32xf32>
    tpu.vector_store %arg14[%c0_183, %c1952], %289 {strides = array<i32>} : memref<2x2048xf32, #tpu.memory_space<vmem>>, vector<2x32xf32>,
    %291 = vector.extract_strided_slice %104 {offsets = [0, 62, 0], sizes = [2, 1, 32], strides = [1, 1, 1]} : vector<2x64x32xf32> to vector<2x1x32xf32>
    %292 = vector.shape_cast %291 : vector<2x1x32xf32> to vector<2x32xf32>
    %c0_184 = arith.constant 0 : index
    %c1984 = arith.constant 1984 : index
    %293 = vector.load %arg14[%c0_184, %c1984] : memref<2x2048xf32, #tpu.memory_space<vmem>>, vector<2x32xf32>
    tpu.vector_store %arg14[%c0_184, %c1984], %292 {strides = array<i32>} : memref<2x2048xf32, #tpu.memory_space<vmem>>, vector<2x32xf32>,
    %294 = vector.extract_strided_slice %104 {offsets = [0, 63, 0], sizes = [2, 1, 32], strides = [1, 1, 1]} : vector<2x64x32xf32> to vector<2x1x32xf32>
    %295 = vector.shape_cast %294 : vector<2x1x32xf32> to vector<2x32xf32>
    %c0_185 = arith.constant 0 : index
    %c2016 = arith.constant 2016 : index
    %296 = vector.load %arg14[%c0_185, %c2016] : memref<2x2048xf32, #tpu.memory_space<vmem>>, vector<2x32xf32>
    tpu.vector_store %arg14[%c0_185, %c2016], %295 {strides = array<i32>} : memref<2x2048xf32, #tpu.memory_space<vmem>>, vector<2x32xf32>,
    %c0_186 = arith.constant 0 : index
    %c0_187 = arith.constant 0 : index
    %297 = vector.load %arg14[%c0_186, %c0_187] : memref<2x2048xf32, #tpu.memory_space<vmem>>, vector<2x2048xf32>
    %c0_188 = arith.constant 0 : index
    %c0_189 = arith.constant 0 : index
    %298 = vector.load %arg5[%c0_188, %c0_189] : memref<2048x64xf32, #tpu.memory_space<vmem>>, vector<2048x64xf32>
    %cst_190 = arith.constant dense<0.000000e+00> : vector<2x64xf32>
    %299 = tpu.matmul %297, %298, %cst_190 {dimension_numbers = #tpu.dot_dimension_numbers<[1], [0], [0], [1], [0, 0, 1, 1], [], []>} : vector<2x2048xf32>, vector<2048x64xf32>, vector<2x64xf32> -> vector<2x64xf32>
    %c0_191 = arith.constant 0 : index
    %c0_192 = arith.constant 0 : index
    %300 = vector.load %arg6[%c0_191, %c0_192] : memref<1x64xf32, #tpu.memory_space<vmem>>, vector<1x64xf32>
    %301 = vector.broadcast %300 : vector<1x64xf32> to vector<2x64xf32>
    %302 = arith.addf %299, %301 : vector<2x64xf32>
    %cst_193 = arith.constant 0.000000e+00 : f32
    %303 = vector.broadcast %cst_193 : f32 to vector<2x64xf32>
    %304 = arith.maximumf %302, %303 : vector<2x64xf32>
    %c0_194 = arith.constant 0 : index
    %c0_195 = arith.constant 0 : index
    %305 = vector.load %arg7[%c0_194, %c0_195] : memref<64x64xf32, #tpu.memory_space<vmem>>, vector<64x64xf32>
    %cst_196 = arith.constant dense<0.000000e+00> : vector<2x64xf32>
    %306 = tpu.matmul %304, %305, %cst_196 {dimension_numbers = #tpu.dot_dimension_numbers<[1], [0], [0], [1], [0, 0, 1, 1], [], []>} : vector<2x64xf32>, vector<64x64xf32>, vector<2x64xf32> -> vector<2x64xf32>
    %c0_197 = arith.constant 0 : index
    %c0_198 = arith.constant 0 : index
    %307 = vector.load %arg8[%c0_197, %c0_198] : memref<1x64xf32, #tpu.memory_space<vmem>>, vector<1x64xf32>
    %308 = vector.broadcast %307 : vector<1x64xf32> to vector<2x64xf32>
    %309 = arith.addf %306, %308 : vector<2x64xf32>
    %cst_199 = arith.constant 0.000000e+00 : f32
    %310 = vector.broadcast %cst_199 : f32 to vector<2x64xf32>
    %311 = arith.maximumf %309, %310 : vector<2x64xf32>
    %c0_200 = arith.constant 0 : index
    %c0_201 = arith.constant 0 : index
    %312 = vector.load %arg9[%c0_200, %c0_201] : memref<1x64xf32, #tpu.memory_space<vmem>>, vector<1x64xf32>
    %313 = vector.broadcast %312 : vector<1x64xf32> to vector<2x64xf32>
    %314 = arith.mulf %311, %313 : vector<2x64xf32>
    %cst_202 = arith.constant dense<0.000000e+00> : vector<2xf32>
    %315 = vector.multi_reduction <add>, %314, %cst_202 [1] : vector<2x64xf32> to vector<2xf32>
    %316 = vector.shape_cast %315 : vector<2xf32> to vector<2x1xf32>
    %c0_203 = arith.constant 0 : index
    %c0_204 = arith.constant 0 : index
    %317 = vector.load %arg10[%c0_203, %c0_204] : memref<1x1xf32, #tpu.memory_space<vmem>>, vector<1x1xf32>
    %318 = vector.broadcast %317 : vector<1x1xf32> to vector<2x1xf32>
    %319 = arith.addf %316, %318 : vector<2x1xf32>
    %320 = math.tanh %319 : vector<2x1xf32>
    %c0_205 = arith.constant 0 : index
    %c0_206 = arith.constant 0 : index
    %321 = vector.load %arg11[%c0_205, %c0_206] : memref<2x1xf32, #tpu.memory_space<vmem>>, vector<2x1xf32>
    tpu.vector_store %arg11[%c0_205, %c0_206], %320 {strides = array<i32>} : memref<2x1xf32, #tpu.memory_space<vmem>>, vector<2x1xf32>,
    return
  }
}

</mosaic_0001>

<llo_original>
// kernel: value_nn_forward.1
$region0: #{value_nn_forward.1}
  #allocation0 [shape = 'u32[]', space=smem, size = 0x4, offset = 0x4, fixed_abs, tag = 'smem constant byte address 0x4 - core index']
  #allocation1 [shape = 'u32[144,128]{1,0:T(1,128)}', space=vmem, size = 0x12000, scoped, tag = 'internal scratch']
  #allocation2 [shape = 'f32[2,10,10,16]{3,2,1,0:T(8,128)}', space=vmem, size = 0x28000, scoped, tag = 'scratch operand']
  #allocation3 [shape = 'f32[128,144]{1,0:T(8,128)}', space=vmem, size = 0x20000, scoped, tag = 'scratch operand']
  #allocation4 [shape = 'f32[2,2048]{1,0:T(2,128)}', space=vmem, size = 0x4000, scoped, tag = 'scratch operand']
  #allocation5 [shape = 'f32[1,1]{1,0:T(1,128)S(1)}', space=vmem, size = 0x200, scoped, tag = 'scoped memory for value_nn_forward.1']
  %s0 = inlined_call_operand.vmem [shape: f32[128,1], index: 0, kind: input, shape index: {}]
  %s1 = inlined_call_operand.vmem [shape: f32[9,16], index: 1, kind: input, shape index: {}]
  %s2 = inlined_call_operand.vmem [shape: f32[1,16], index: 2, kind: input, shape index: {}]
  %s3 = inlined_call_operand.vmem [shape: f32[144,32], index: 3, kind: input, shape index: {}]
  %s4 = inlined_call_operand.vmem [shape: f32[1,32], index: 4, kind: input, shape index: {}]
  %s5 = inlined_call_operand.vmem [shape: f32[2048,64], index: 5, kind: input, shape index: {}]
  %s6 = inlined_call_operand.vmem [shape: f32[1,64], index: 6, kind: input, shape index: {}]
  %s7 = inlined_call_operand.vmem [shape: f32[64,64], index: 7, kind: input, shape index: {}]
  %s8 = inlined_call_operand.vmem [shape: f32[1,64], index: 8, kind: input, shape index: {}]
  %s9 = inlined_call_operand.vmem [shape: f32[1,64], index: 9, kind: input, shape index: {}]
  %s10 = inlined_call_operand.<no memory space> [shape: f32[1,1], index: 10, kind: input, shape index: {}]
  %s11 = inlined_call_operand.vmem [shape: f32[2,1], index: 11, kind: output, shape index: {}]
  %s12 = sld [smem:[#allocation0]]
  $region54: #{value_nn_forward.1} parent=0
    _
  %s14 = ssub.s32 1, %s12
  %s15 = scalar_select 0, %s14, %s12
  %v16 = vstv %s10
  %17 = vst [vmem:[#allocation5] sm:$0x1] %v16
  // Predicated region
  $region2: #{value_nn_forward.1} parent=0 // pred_check
    _
  $region3: #{value_nn_forward.1} parent=0 // pred_check_branch
    %19 = sbr.rel (0) target = $region5
  $region4: #{value_nn_forward.1} parent=0 // pred_region
    _
  $region5: #{value_nn_forward.1} parent=0 // pred_fallthru
    _
  // Predicated region
  $region6: #{value_nn_forward.1} parent=0 // pred_check
    _
  $region7: #{value_nn_forward.1} parent=0 // pred_check_branch
    %21 = sbr.rel (0) target = $region9
  $region8: #{value_nn_forward.1} parent=0 // pred_region
    _
  $region9: #{value_nn_forward.1} parent=0 // pred_fallthru
    _
  // Predicated region
  $region10: #{value_nn_forward.1} parent=0 // pred_check
    _
  $region11: #{value_nn_forward.1} parent=0 // pred_check_branch
    %23 = sbr.rel (0) target = $region13
  $region12: #{value_nn_forward.1} parent=0 // pred_region
    _
  $region13: #{value_nn_forward.1} parent=0 // pred_fallthru
    _
  // Predicated region
  $region14: #{value_nn_forward.1} parent=0 // pred_check
    _
  $region15: #{value_nn_forward.1} parent=0 // pred_check_branch
    %25 = sbr.rel (0) target = $region17
  $region16: #{value_nn_forward.1} parent=0 // pred_region
    _
  $region17: #{value_nn_forward.1} parent=0 // pred_fallthru
    _
  // Predicated region
  $region18: #{value_nn_forward.1} parent=0 // pred_check
    _
  $region19: #{value_nn_forward.1} parent=0 // pred_check_branch
    %27 = sbr.rel (0) target = $region21
  $region20: #{value_nn_forward.1} parent=0 // pred_region
    _
  $region21: #{value_nn_forward.1} parent=0 // pred_fallthru
    _
  // Predicated region
  $region22: #{value_nn_forward.1} parent=0 // pred_check
    _
  $region23: #{value_nn_forward.1} parent=0 // pred_check_branch
    %29 = sbr.rel (0) target = $region25
  $region24: #{value_nn_forward.1} parent=0 // pred_region
    _
  $region25: #{value_nn_forward.1} parent=0 // pred_fallthru
    _
  // Predicated region
  $region26: #{value_nn_forward.1} parent=0 // pred_check
    _
  $region27: #{value_nn_forward.1} parent=0 // pred_check_branch
    %31 = sbr.rel (0) target = $region29
  $region28: #{value_nn_forward.1} parent=0 // pred_region
    _
  $region29: #{value_nn_forward.1} parent=0 // pred_fallthru
    _
  // Predicated region
  $region30: #{value_nn_forward.1} parent=0 // pred_check
    _
  $region31: #{value_nn_forward.1} parent=0 // pred_check_branch
    %33 = sbr.rel (0) target = $region33
  $region32: #{value_nn_forward.1} parent=0 // pred_region
    _
  $region33: #{value_nn_forward.1} parent=0 // pred_fallthru
    _
  // Predicated region
  $region34: #{value_nn_forward.1} parent=0 // pred_check
    _
  $region35: #{value_nn_forward.1} parent=0 // pred_check_branch
    %35 = sbr.rel (0) target = $region37
  $region36: #{value_nn_forward.1} parent=0 // pred_region
    _
  $region37: #{value_nn_forward.1} parent=0 // pred_fallthru
    _
  // Predicated region
  $region38: #{value_nn_forward.1} parent=0 // pred_check
    _
  $region39: #{value_nn_forward.1} parent=0 // pred_check_branch
    %37 = sbr.rel (0) target = $region41
  $region40: #{value_nn_forward.1} parent=0 // pred_region
    _
  $region41: #{value_nn_forward.1} parent=0 // pred_fallthru
    _
  // Predicated region
  $region42: #{value_nn_forward.1} parent=0 // pred_check
    _
  $region43: #{value_nn_forward.1} parent=0 // pred_check_branch
    %39 = sbr.rel (0) target = $region45
  $region44: #{value_nn_forward.1} parent=0 // pred_region
    _
  $region45: #{value_nn_forward.1} parent=0 // pred_fallthru
    _
  %vm40 = vcmask 130048
  %41 = vst.msk [vmem:[#allocation2] sm:$0xff] %vm40, 0.0
  %vm42 = vcmask 123904
  %43 = vst.msk [vmem:[#allocation2 + $0x8] sm:$0x3] %vm42, 0.0
  %44 = vst.msk [vmem:[#allocation2 + $0x10] sm:$0xff] %vm40, 0.0
  %45 = vst.msk [vmem:[#allocation2 + $0x18] sm:$0x3] %vm42, 0.0
  %46 = vst.msk [vmem:[#allocation2 + $0x20] sm:$0xff] %vm40, 0.0
  %47 = vst.msk [vmem:[#allocation2 + $0x28] sm:$0x3] %vm42, 0.0
  %48 = vst.msk [vmem:[#allocation2 + $0x30] sm:$0xff] %vm40, 0.0
  %49 = vst.msk [vmem:[#allocation2 + $0x38] sm:$0x3] %vm42, 0.0
  %50 = vst.msk [vmem:[#allocation2 + $0x40] sm:$0xff] %vm40, 0.0
  %51 = vst.msk [vmem:[#allocation2 + $0x48] sm:$0x3] %vm42, 0.0
  %52 = vst.msk [vmem:[#allocation2 + $0x50] sm:$0xff] %vm40, 0.0
  %53 = vst.msk [vmem:[#allocation2 + $0x58] sm:$0x3] %vm42, 0.0
  %54 = vst.msk [vmem:[#allocation2 + $0x60] sm:$0xff] %vm40, 0.0
  %55 = vst.msk [vmem:[#allocation2 + $0x68] sm:$0x3] %vm42, 0.0
  %56 = vst.msk [vmem:[#allocation2 + $0x70] sm:$0xff] %vm40, 0.0
  %57 = vst.msk [vmem:[#allocation2 + $0x78] sm:$0x3] %vm42, 0.0
  %58 = vst.msk [vmem:[#allocation2 + $0x80] sm:$0xff] %vm40, 0.0
  %59 = vst.msk [vmem:[#allocation2 + $0x88] sm:$0x3] %vm42, 0.0
  %60 = vst.msk [vmem:[#allocation2 + $0x90] sm:$0xff] %vm40, 0.0
  %61 = vst.msk [vmem:[#allocation2 + $0x98] sm:$0x3] %vm42, 0.0
  %62 = vst.msk [vmem:[#allocation2 + $0xa0] sm:$0xff] %vm40, 0.0
  %63 = vst.msk [vmem:[#allocation2 + $0xa8] sm:$0x3] %vm42, 0.0
  %64 = vst.msk [vmem:[#allocation2 + $0xb0] sm:$0xff] %vm40, 0.0
  %65 = vst.msk [vmem:[#allocation2 + $0xb8] sm:$0x3] %vm42, 0.0
  %66 = vst.msk [vmem:[#allocation2 + $0xc0] sm:$0xff] %vm40, 0.0
  %67 = vst.msk [vmem:[#allocation2 + $0xc8] sm:$0x3] %vm42, 0.0
  %68 = vst.msk [vmem:[#allocation2 + $0xd0] sm:$0xff] %vm40, 0.0
  %69 = vst.msk [vmem:[#allocation2 + $0xd8] sm:$0x3] %vm42, 0.0
  %70 = vst.msk [vmem:[#allocation2 + $0xe0] sm:$0xff] %vm40, 0.0
  %71 = vst.msk [vmem:[#allocation2 + $0xe8] sm:$0x3] %vm42, 0.0
  %72 = vst.msk [vmem:[#allocation2 + $0xf0] sm:$0xff] %vm40, 0.0
  %73 = vst.msk [vmem:[#allocation2 + $0xf8] sm:$0x3] %vm42, 0.0
  %74 = vst.msk [vmem:[#allocation2 + $0x100] sm:$0xff] %vm40, 0.0
  %75 = vst.msk [vmem:[#allocation2 + $0x108] sm:$0x3] %vm42, 0.0
  %76 = vst.msk [vmem:[#allocation2 + $0x110] sm:$0xff] %vm40, 0.0
  %77 = vst.msk [vmem:[#allocation2 + $0x118] sm:$0x3] %vm42, 0.0
  %78 = vst.msk [vmem:[#allocation2 + $0x120] sm:$0xff] %vm40, 0.0
  %79 = vst.msk [vmem:[#allocation2 + $0x128] sm:$0x3] %vm42, 0.0
  %80 = vst.msk [vmem:[#allocation2 + $0x130] sm:$0xff] %vm40, 0.0
  %81 = vst.msk [vmem:[#allocation2 + $0x138] sm:$0x3] %vm42, 0.0
  %v82 = vld [vmem:[%s0] sm:$0xff]
  %v83 = vld [vmem:[%s0 + $0x8] sm:$0xff]
  %v84 = vld [vmem:[%s0 + $0x10] sm:$0xff]
  %v85 = vld [vmem:[%s0 + $0x18] sm:$0xff]
  %v86 = vld [vmem:[%s0 + $0x20] sm:$0xff]
  %v87 = vld [vmem:[%s0 + $0x28] sm:$0xff]
  %v88 = vld [vmem:[%s0 + $0x30] sm:$0xff]
  %v89 = vld [vmem:[%s0 + $0x38] sm:$0xff]
  %v90 = vld [vmem:[%s0 + $0x40] sm:$0xff]
  %v91 = vld [vmem:[%s0 + $0x48] sm:$0xff]
  %v92 = vld [vmem:[%s0 + $0x50] sm:$0xff]
  %v93 = vld [vmem:[%s0 + $0x58] sm:$0xff]
  %v94 = vld [vmem:[%s0 + $0x60] sm:$0xff]
  %v95 = vld [vmem:[%s0 + $0x68] sm:$0xff]
  %v96 = vld [vmem:[%s0 + $0x70] sm:$0xff]
  %v97 = vld [vmem:[%s0 + $0x78] sm:$0xff]
  %99 = vset.pattern.permute.xlu0 0
  %100 = vperm.xlu0 %99, %v82
  %v101 = vpop.permute.xlu0 %100
  %104 = vset.pattern.permute.xlu0 0
  %105 = vperm.xlu0 %104, %v83
  %v106 = vpop.permute.xlu0 %105
  %109 = vset.pattern.permute.xlu0 0
  %110 = vperm.xlu0 %109, %v84
  %v111 = vpop.permute.xlu0 %110
  %114 = vset.pattern.permute.xlu0 0
  %115 = vperm.xlu0 %114, %v85
  %v116 = vpop.permute.xlu0 %115
  %119 = vset.pattern.permute.xlu0 0
  %120 = vperm.xlu0 %119, %v86
  %v121 = vpop.permute.xlu0 %120
  %124 = vset.pattern.permute.xlu0 0
  %125 = vperm.xlu0 %124, %v87
  %v126 = vpop.permute.xlu0 %125
  %129 = vset.pattern.permute.xlu0 0
  %130 = vperm.xlu0 %129, %v88
  %v131 = vpop.permute.xlu0 %130
  %134 = vset.pattern.permute.xlu0 0
  %135 = vperm.xlu0 %134, %v89
  %v136 = vpop.permute.xlu0 %135
  %139 = vset.pattern.permute.xlu0 0
  %140 = vperm.xlu0 %139, %v90
  %v141 = vpop.permute.xlu0 %140
  %144 = vset.pattern.permute.xlu0 0
  %145 = vperm.xlu0 %144, %v91
  %v146 = vpop.permute.xlu0 %145
  %149 = vset.pattern.permute.xlu0 0
  %150 = vperm.xlu0 %149, %v92
  %v151 = vpop.permute.xlu0 %150
  %154 = vset.pattern.permute.xlu0 0
  %155 = vperm.xlu0 %154, %v93
  %v156 = vpop.permute.xlu0 %155
  %159 = vset.pattern.permute.xlu0 0
  %160 = vperm.xlu0 %159, %v94
  %v161 = vpop.permute.xlu0 %160
  %164 = vset.pattern.permute.xlu0 0
  %165 = vperm.xlu0 %164, %v95
  %v166 = vpop.permute.xlu0 %165
  %169 = vset.pattern.permute.xlu0 0
  %170 = vperm.xlu0 %169, %v96
  %v171 = vpop.permute.xlu0 %170
  %174 = vset.pattern.permute.xlu0 0
  %175 = vperm.xlu0 %174, %v97
  %v176 = vpop.permute.xlu0 %175
  %s178 = scalar_lea.vmem [#allocation2], 16
  %179 = vst.msk [vmem:[%s178 + $0x1] sm:$0xff] %vm40, %v101
  %180 = vst.msk [vmem:[%s178 + $0x11] sm:$0xff] %vm40, %v106
  %181 = vst.msk [vmem:[%s178 + $0x21] sm:$0xff] %vm40, %v111
  %182 = vst.msk [vmem:[%s178 + $0x31] sm:$0xff] %vm40, %v116
  %183 = vst.msk [vmem:[%s178 + $0x41] sm:$0xff] %vm40, %v121
  %184 = vst.msk [vmem:[%s178 + $0x51] sm:$0xff] %vm40, %v126
  %185 = vst.msk [vmem:[%s178 + $0x61] sm:$0xff] %vm40, %v131
  %186 = vst.msk [vmem:[%s178 + $0x71] sm:$0xff] %vm40, %v136
  %187 = vst.msk [vmem:[%s178 + $0xa1] sm:$0xff] %vm40, %v141
  %188 = vst.msk [vmem:[%s178 + $0xb1] sm:$0xff] %vm40, %v146
  %189 = vst.msk [vmem:[%s178 + $0xc1] sm:$0xff] %vm40, %v151
  %190 = vst.msk [vmem:[%s178 + $0xd1] sm:$0xff] %vm40, %v156
  %191 = vst.msk [vmem:[%s178 + $0xe1] sm:$0xff] %vm40, %v161
  %192 = vst.msk [vmem:[%s178 + $0xf1] sm:$0xff] %vm40, %v166
  %193 = vst.msk [vmem:[%s178 + $0x101] sm:$0xff] %vm40, %v171
  %194 = vst.msk [vmem:[%s178 + $0x111] sm:$0xff] %vm40, %v176
  %v195 = vld [vmem:[#allocation2] sm:$0xff]
  %v196 = vld [vmem:[#allocation2 + $0x10] sm:$0xff]
  %v197 = vld [vmem:[#allocation2 + $0x20] sm:$0xff]
  %v198 = vld [vmem:[#allocation2 + $0x30] sm:$0xff]
  %v199 = vld [vmem:[#allocation2 + $0x40] sm:$0xff]
  %v200 = vld [vmem:[#allocation2 + $0x50] sm:$0xff]
  %v201 = vld [vmem:[#allocation2 + $0x60] sm:$0xff]
  %v202 = vld [vmem:[#allocation2 + $0x70] sm:$0xff]
  %v203 = vld [vmem:[#allocation2 + $0xa0] sm:$0xff]
  %v204 = vld [vmem:[#allocation2 + $0xb0] sm:$0xff]
  %v205 = vld [vmem:[#allocation2 + $0xc0] sm:$0xff]
  %v206 = vld [vmem:[#allocation2 + $0xd0] sm:$0xff]
  %v207 = vld [vmem:[#allocation2 + $0xe0] sm:$0xff]
  %v208 = vld [vmem:[#allocation2 + $0xf0] sm:$0xff]
  %v209 = vld [vmem:[#allocation2 + $0x100] sm:$0xff]
  %v210 = vld [vmem:[#allocation2 + $0x110] sm:$0xff]
  %v211 = vld [vmem:[%s1] sm:$0x1]
  %v212 = vlaneseq
  %v213 = vshrl.u32 %v212, 7
  %v214 = vsub.s32 0, %v213
  %v215 = vrot.slane %v211, %v214
  %v216 = vmul.f32 %v195, %v215
  %v217 = vmul.f32 %v196, %v215
  %v218 = vmul.f32 %v197, %v215
  %v219 = vmul.f32 %v198, %v215
  %v220 = vmul.f32 %v199, %v215
  %v221 = vmul.f32 %v200, %v215
  %v222 = vmul.f32 %v201, %v215
  %v223 = vmul.f32 %v202, %v215
  %v224 = vmul.f32 %v203, %v215
  %v225 = vmul.f32 %v204, %v215
  %v226 = vmul.f32 %v205, %v215
  %v227 = vmul.f32 %v206, %v215
  %v228 = vmul.f32 %v207, %v215
  %v229 = vmul.f32 %v208, %v215
  %v230 = vmul.f32 %v209, %v215
  %v231 = vmul.f32 %v210, %v215
  %v232 = vadd.f32 %v216, 0.0
  %v233 = vadd.f32 %v217, 0.0
  %v234 = vadd.f32 %v218, 0.0
  %v235 = vadd.f32 %v219, 0.0
  %v236 = vadd.f32 %v220, 0.0
  %v237 = vadd.f32 %v221, 0.0
  %v238 = vadd.f32 %v222, 0.0
  %v239 = vadd.f32 %v223, 0.0
  %v240 = vadd.f32 %v224, 0.0
  %v241 = vadd.f32 %v225, 0.0
  %v242 = vadd.f32 %v226, 0.0
  %v243 = vadd.f32 %v227, 0.0
  %v244 = vadd.f32 %v228, 0.0
  %v245 = vadd.f32 %v229, 0.0
  %v246 = vadd.f32 %v230, 0.0
  %v247 = vadd.f32 %v231, 0.0
  %v248 = vld [vmem:[#allocation2 + $0x1] sm:$0xff]
  %v249 = vld [vmem:[#allocation2 + $0x11] sm:$0xff]
  %v250 = vld [vmem:[#allocation2 + $0x21] sm:$0xff]
  %v251 = vld [vmem:[#allocation2 + $0x31] sm:$0xff]
  %v252 = vld [vmem:[#allocation2 + $0x41] sm:$0xff]
  %v253 = vld [vmem:[#allocation2 + $0x51] sm:$0xff]
  %v254 = vld [vmem:[#allocation2 + $0x61] sm:$0xff]
  %v255 = vld [vmem:[#allocation2 + $0x71] sm:$0xff]
  %v256 = vld [vmem:[#allocation2 + $0xa1] sm:$0xff]
  %v257 = vld [vmem:[#allocation2 + $0xb1] sm:$0xff]
  %v258 = vld [vmem:[#allocation2 + $0xc1] sm:$0xff]
  %v259 = vld [vmem:[#allocation2 + $0xd1] sm:$0xff]
  %v260 = vld [vmem:[#allocation2 + $0xe1] sm:$0xff]
  %v261 = vld [vmem:[#allocation2 + $0xf1] sm:$0xff]
  %v262 = vld [vmem:[#allocation2 + $0x101] sm:$0xff]
  %v263 = vld [vmem:[#allocation2 + $0x111] sm:$0xff]
  %v264 = vld [vmem:[%s1 + $0x1] sm:$0x1]
  %v265 = vlaneseq
  %v266 = vshrl.u32 %v265, 7
  %v267 = vsub.s32 0, %v266
  %v268 = vrot.slane %v264, %v267
  %v269 = vmul.f32 %v248, %v268
  %v270 = vmul.f32 %v249, %v268
  %v271 = vmul.f32 %v250, %v268
  %v272 = vmul.f32 %v251, %v268
  %v273 = vmul.f32 %v252, %v268
  %v274 = vmul.f32 %v253, %v268
  %v275 = vmul.f32 %v254, %v268
  %v276 = vmul.f32 %v255, %v268
  %v277 = vmul.f32 %v256, %v268
  %v278 = vmul.f32 %v257, %v268
  %v279 = vmul.f32 %v258, %v268
  %v280 = vmul.f32 %v259, %v268
  %v281 = vmul.f32 %v260, %v268
  %v282 = vmul.f32 %v261, %v268
  %v283 = vmul.f32 %v262, %v268
  %v284 = vmul.f32 %v263, %v268
  %v285 = vadd.f32 %v232, %v269
  %v286 = vadd.f32 %v233, %v270
  %v287 = vadd.f32 %v234, %v271
  %v288 = vadd.f32 %v235, %v272
  %v289 = vadd.f32 %v236, %v273
  %v290 = vadd.f32 %v237, %v274
  %v291 = vadd.f32 %v238, %v275
  %v292 = vadd.f32 %v239, %v276
  %v293 = vadd.f32 %v240, %v277
  %v294 = vadd.f32 %v241, %v278
  %v295 = vadd.f32 %v242, %v279
  %v296 = vadd.f32 %v243, %v280
  %v297 = vadd.f32 %v244, %v281
  %v298 = vadd.f32 %v245, %v282
  %v299 = vadd.f32 %v246, %v283
  %v300 = vadd.f32 %v247, %v284
  %v301 = vld [vmem:[#allocation2 + $0x2] sm:$0xff]
  %v302 = vld [vmem:[#allocation2 + $0x12] sm:$0xff]
  %v303 = vld [vmem:[#allocation2 + $0x22] sm:$0xff]
  %v304 = vld [vmem:[#allocation2 + $0x32] sm:$0xff]
  %v305 = vld [vmem:[#allocation2 + $0x42] sm:$0xff]
  %v306 = vld [vmem:[#allocation2 + $0x52] sm:$0xff]
  %v307 = vld [vmem:[#allocation2 + $0x62] sm:$0xff]
  %v308 = vld [vmem:[#allocation2 + $0x72] sm:$0xff]
  %v309 = vld [vmem:[#allocation2 + $0xa2] sm:$0xff]
  %v310 = vld [vmem:[#allocation2 + $0xb2] sm:$0xff]
  %v311 = vld [vmem:[#allocation2 + $0xc2] sm:$0xff]
  %v312 = vld [vmem:[#allocation2 + $0xd2] sm:$0xff]
  %v313 = vld [vmem:[#allocation2 + $0xe2] sm:$0xff]
  %v314 = vld [vmem:[#allocation2 + $0xf2] sm:$0xff]
  %v315 = vld [vmem:[#allocation2 + $0x102] sm:$0xff]
  %v316 = vld [vmem:[#allocation2 + $0x112] sm:$0xff]
  %v317 = vld [vmem:[%s1 + $0x2] sm:$0x1]
  %v318 = vlaneseq
  %v319 = vshrl.u32 %v318, 7
  %v320 = vsub.s32 0, %v319
  %v321 = vrot.slane %v317, %v320
  %v322 = vmul.f32 %v301, %v321
  %v323 = vmul.f32 %v302, %v321
  %v324 = vmul.f32 %v303, %v321
  %v325 = vmul.f32 %v304, %v321
  %v326 = vmul.f32 %v305, %v321
  %v327 = vmul.f32 %v306, %v321
  %v328 = vmul.f32 %v307, %v321
  %v329 = vmul.f32 %v308, %v321
  %v330 = vmul.f32 %v309, %v321
  %v331 = vmul.f32 %v310, %v321
  %v332 = vmul.f32 %v311, %v321
  %v333 = vmul.f32 %v312, %v321
  %v334 = vmul.f32 %v313, %v321
  %v335 = vmul.f32 %v314, %v321
  %v336 = vmul.f32 %v315, %v321
  %v337 = vmul.f32 %v316, %v321
  %v338 = vadd.f32 %v285, %v322
  %v339 = vadd.f32 %v286, %v323
  %v340 = vadd.f32 %v287, %v324
  %v341 = vadd.f32 %v288, %v325
  %v342 = vadd.f32 %v289, %v326
  %v343 = vadd.f32 %v290, %v327
  %v344 = vadd.f32 %v291, %v328
  %v345 = vadd.f32 %v292, %v329
  %v346 = vadd.f32 %v293, %v330
  %v347 = vadd.f32 %v294, %v331
  %v348 = vadd.f32 %v295, %v332
  %v349 = vadd.f32 %v296, %v333
  %v350 = vadd.f32 %v297, %v334
  %v351 = vadd.f32 %v298, %v335
  %v352 = vadd.f32 %v299, %v336
  %v353 = vadd.f32 %v300, %v337
  %v354 = vld [vmem:[%s178] sm:$0xff]
  %v355 = vld [vmem:[%s178 + $0x10] sm:$0xff]
  %v356 = vld [vmem:[%s178 + $0x20] sm:$0xff]
  %v357 = vld [vmem:[%s178 + $0x30] sm:$0xff]
  %v358 = vld [vmem:[%s178 + $0x40] sm:$0xff]
  %v359 = vld [vmem:[%s178 + $0x50] sm:$0xff]
  %v360 = vld [vmem:[%s178 + $0x60] sm:$0xff]
  %v361 = vld [vmem:[%s178 + $0x70] sm:$0xff]
  %v362 = vld [vmem:[%s178 + $0xa0] sm:$0xff]
  %v363 = vld [vmem:[%s178 + $0xb0] sm:$0xff]
  %v364 = vld [vmem:[%s178 + $0xc0] sm:$0xff]
  %v365 = vld [vmem:[%s178 + $0xd0] sm:$0xff]
  %v366 = vld [vmem:[%s178 + $0xe0] sm:$0xff]
  %v367 = vld [vmem:[%s178 + $0xf0] sm:$0xff]
  %v368 = vld [vmem:[%s178 + $0x100] sm:$0xff]
  %v369 = vld [vmem:[%s178 + $0x110] sm:$0xff]
  %v370 = vld [vmem:[%s1 + $0x3] sm:$0x1]
  %v371 = vlaneseq
  %v372 = vshrl.u32 %v371, 7
  %v373 = vsub.s32 0, %v372
  %v374 = vrot.slane %v370, %v373
  %v375 = vmul.f32 %v354, %v374
  %v376 = vmul.f32 %v355, %v374
  %v377 = vmul.f32 %v356, %v374
  %v378 = vmul.f32 %v357, %v374
  %v379 = vmul.f32 %v358, %v374
  %v380 = vmul.f32 %v359, %v374
  %v381 = vmul.f32 %v360, %v374
  %v382 = vmul.f32 %v361, %v374
  %v383 = vmul.f32 %v362, %v374
  %v384 = vmul.f32 %v363, %v374
  %v385 = vmul.f32 %v364, %v374
  %v386 = vmul.f32 %v365, %v374
  %v387 = vmul.f32 %v366, %v374
  %v388 = vmul.f32 %v367, %v374
  %v389 = vmul.f32 %v368, %v374
  %v390 = vmul.f32 %v369, %v374
  %v391 = vadd.f32 %v338, %v375
  %v392 = vadd.f32 %v339, %v376
  %v393 = vadd.f32 %v340, %v377
  %v394 = vadd.f32 %v341, %v378
  %v395 = vadd.f32 %v342, %v379
  %v396 = vadd.f32 %v343, %v380
  %v397 = vadd.f32 %v344, %v381
  %v398 = vadd.f32 %v345, %v382
  %v399 = vadd.f32 %v346, %v383
  %v400 = vadd.f32 %v347, %v384
  %v401 = vadd.f32 %v348, %v385
  %v402 = vadd.f32 %v349, %v386
  %v403 = vadd.f32 %v350, %v387
  %v404 = vadd.f32 %v351, %v388
  %v405 = vadd.f32 %v352, %v389
  %v406 = vadd.f32 %v353, %v390
  %v407 = vld [vmem:[%s178 + $0x1] sm:$0xff]
  %v408 = vld [vmem:[%s178 + $0x11] sm:$0xff]
  %v409 = vld [vmem:[%s178 + $0x21] sm:$0xff]
  %v410 = vld [vmem:[%s178 + $0x31] sm:$0xff]
  %v411 = vld [vmem:[%s178 + $0x41] sm:$0xff]
  %v412 = vld [vmem:[%s178 + $0x51] sm:$0xff]
  %v413 = vld [vmem:[%s178 + $0x61] sm:$0xff]
  %v414 = vld [vmem:[%s178 + $0x71] sm:$0xff]
  %v415 = vld [vmem:[%s178 + $0xa1] sm:$0xff]
  %v416 = vld [vmem:[%s178 + $0xb1] sm:$0xff]
  %v417 = vld [vmem:[%s178 + $0xc1] sm:$0xff]
  %v418 = vld [vmem:[%s178 + $0xd1] sm:$0xff]
  %v419 = vld [vmem:[%s178 + $0xe1] sm:$0xff]
  %v420 = vld [vmem:[%s178 + $0xf1] sm:$0xff]
  %v421 = vld [vmem:[%s178 + $0x101] sm:$0xff]
  %v422 = vld [vmem:[%s178 + $0x111] sm:$0xff]
  %v423 = vld [vmem:[%s1 + $0x4] sm:$0x1]
  %v424 = vlaneseq
  %v425 = vshrl.u32 %v424, 7
  %v426 = vsub.s32 0, %v425
  %v427 = vrot.slane %v423, %v426
  %v428 = vmul.f32 %v407, %v427
  %v429 = vmul.f32 %v408, %v427
  %v430 = vmul.f32 %v409, %v427
  %v431 = vmul.f32 %v410, %v427
  %v432 = vmul.f32 %v411, %v427
  %v433 = vmul.f32 %v412, %v427
  %v434 = vmul.f32 %v413, %v427
  %v435 = vmul.f32 %v414, %v427
  %v436 = vmul.f32 %v415, %v427
  %v437 = vmul.f32 %v416, %v427
  %v438 = vmul.f32 %v417, %v427
  %v439 = vmul.f32 %v418, %v427
  %v440 = vmul.f32 %v419, %v427
  %v441 = vmul.f32 %v420, %v427
  %v442 = vmul.f32 %v421, %v427
  %v443 = vmul.f32 %v422, %v427
  %v444 = vadd.f32 %v391, %v428
  %v445 = vadd.f32 %v392, %v429
  %v446 = vadd.f32 %v393, %v430
  %v447 = vadd.f32 %v394, %v431
  %v448 = vadd.f32 %v395, %v432
  %v449 = vadd.f32 %v396, %v433
  %v450 = vadd.f32 %v397, %v434
  %v451 = vadd.f32 %v398, %v435
  %v452 = vadd.f32 %v399, %v436
  %v453 = vadd.f32 %v400, %v437
  %v454 = vadd.f32 %v401, %v438
  %v455 = vadd.f32 %v402, %v439
  %v456 = vadd.f32 %v403, %v440
  %v457 = vadd.f32 %v404, %v441
  %v458 = vadd.f32 %v405, %v442
  %v459 = vadd.f32 %v406, %v443
  %v460 = vld [vmem:[%s178 + $0x2] sm:$0xff]
  %v461 = vld [vmem:[%s178 + $0x12] sm:$0xff]
  %v462 = vld [vmem:[%s178 + $0x22] sm:$0xff]
  %v463 = vld [vmem:[%s178 + $0x32] sm:$0xff]
  %v464 = vld [vmem:[%s178 + $0x42] sm:$0xff]
  %v465 = vld [vmem:[%s178 + $0x52] sm:$0xff]
  %v466 = vld [vmem:[%s178 + $0x62] sm:$0xff]
  %v467 = vld [vmem:[%s178 + $0x72] sm:$0xff]
  %v468 = vld [vmem:[%s178 + $0xa2] sm:$0xff]
  %v469 = vld [vmem:[%s178 + $0xb2] sm:$0xff]
  %v470 = vld [vmem:[%s178 + $0xc2] sm:$0xff]
  %v471 = vld [vmem:[%s178 + $0xd2] sm:$0xff]
  %v472 = vld [vmem:[%s178 + $0xe2] sm:$0xff]
  %v473 = vld [vmem:[%s178 + $0xf2] sm:$0xff]
  %v474 = vld [vmem:[%s178 + $0x102] sm:$0xff]
  %v475 = vld [vmem:[%s178 + $0x112] sm:$0xff]
  %v476 = vld [vmem:[%s1 + $0x5] sm:$0x1]
  %v477 = vlaneseq
  %v478 = vshrl.u32 %v477, 7
  %v479 = vsub.s32 0, %v478
  %v480 = vrot.slane %v476, %v479
  %v481 = vmul.f32 %v460, %v480
  %v482 = vmul.f32 %v461, %v480
  %v483 = vmul.f32 %v462, %v480
  %v484 = vmul.f32 %v463, %v480
  %v485 = vmul.f32 %v464, %v480
  %v486 = vmul.f32 %v465, %v480
  %v487 = vmul.f32 %v466, %v480
  %v488 = vmul.f32 %v467, %v480
  %v489 = vmul.f32 %v468, %v480
  %v490 = vmul.f32 %v469, %v480
  %v491 = vmul.f32 %v470, %v480
  %v492 = vmul.f32 %v471, %v480
  %v493 = vmul.f32 %v472, %v480
  %v494 = vmul.f32 %v473, %v480
  %v495 = vmul.f32 %v474, %v480
  %v496 = vmul.f32 %v475, %v480
  %v497 = vadd.f32 %v444, %v481
  %v498 = vadd.f32 %v445, %v482
  %v499 = vadd.f32 %v446, %v483
  %v500 = vadd.f32 %v447, %v484
  %v501 = vadd.f32 %v448, %v485
  %v502 = vadd.f32 %v449, %v486
  %v503 = vadd.f32 %v450, %v487
  %v504 = vadd.f32 %v451, %v488
  %v505 = vadd.f32 %v452, %v489
  %v506 = vadd.f32 %v453, %v490
  %v507 = vadd.f32 %v454, %v491
  %v508 = vadd.f32 %v455, %v492
  %v509 = vadd.f32 %v456, %v493
  %v510 = vadd.f32 %v457, %v494
  %v511 = vadd.f32 %v458, %v495
  %v512 = vadd.f32 %v459, %v496
  %s513 = scalar_lea.vmem [#allocation2], 32
  %v514 = vld [vmem:[%s513] sm:$0xff]
  %v515 = vld [vmem:[%s513 + $0x10] sm:$0xff]
  %v516 = vld [vmem:[%s513 + $0x20] sm:$0xff]
  %v517 = vld [vmem:[%s513 + $0x30] sm:$0xff]
  %v518 = vld [vmem:[%s513 + $0x40] sm:$0xff]
  %v519 = vld [vmem:[%s513 + $0x50] sm:$0xff]
  %v520 = vld [vmem:[%s513 + $0x60] sm:$0xff]
  %v521 = vld [vmem:[%s513 + $0x70] sm:$0xff]
  %v522 = vld [vmem:[%s513 + $0xa0] sm:$0xff]
  %v523 = vld [vmem:[%s513 + $0xb0] sm:$0xff]
  %v524 = vld [vmem:[%s513 + $0xc0] sm:$0xff]
  %v525 = vld [vmem:[%s513 + $0xd0] sm:$0xff]
  %v526 = vld [vmem:[%s513 + $0xe0] sm:$0xff]
  %v527 = vld [vmem:[%s513 + $0xf0] sm:$0xff]
  %v528 = vld [vmem:[%s513 + $0x100] sm:$0xff]
  %v529 = vld [vmem:[%s513 + $0x110] sm:$0xff]
  %v530 = vld [vmem:[%s1 + $0x6] sm:$0x1]
  %v531 = vlaneseq
  %v532 = vshrl.u32 %v531, 7
  %v533 = vsub.s32 0, %v532
  %v534 = vrot.slane %v530, %v533
  %v535 = vmul.f32 %v514, %v534
  %v536 = vmul.f32 %v515, %v534
  %v537 = vmul.f32 %v516, %v534
  %v538 = vmul.f32 %v517, %v534
  %v539 = vmul.f32 %v518, %v534
  %v540 = vmul.f32 %v519, %v534
  %v541 = vmul.f32 %v520, %v534
  %v542 = vmul.f32 %v521, %v534
  %v543 = vmul.f32 %v522, %v534
  %v544 = vmul.f32 %v523, %v534
  %v545 = vmul.f32 %v524, %v534
  %v546 = vmul.f32 %v525, %v534
  %v547 = vmul.f32 %v526, %v534
  %v548 = vmul.f32 %v527, %v534
  %v549 = vmul.f32 %v528, %v534
  %v550 = vmul.f32 %v529, %v534
  %v551 = vadd.f32 %v497, %v535
  %v552 = vadd.f32 %v498, %v536
  %v553 = vadd.f32 %v499, %v537
  %v554 = vadd.f32 %v500, %v538
  %v555 = vadd.f32 %v501, %v539
  %v556 = vadd.f32 %v502, %v540
  %v557 = vadd.f32 %v503, %v541
  %v558 = vadd.f32 %v504, %v542
  %v559 = vadd.f32 %v505, %v543
  %v560 = vadd.f32 %v506, %v544
  %v561 = vadd.f32 %v507, %v545
  %v562 = vadd.f32 %v508, %v546
  %v563 = vadd.f32 %v509, %v547
  %v564 = vadd.f32 %v510, %v548
  %v565 = vadd.f32 %v511, %v549
  %v566 = vadd.f32 %v512, %v550
  %v567 = vld [vmem:[%s513 + $0x1] sm:$0xff]
  %v568 = vld [vmem:[%s513 + $0x11] sm:$0xff]
  %v569 = vld [vmem:[%s513 + $0x21] sm:$0xff]
  %v570 = vld [vmem:[%s513 + $0x31] sm:$0xff]
  %v571 = vld [vmem:[%s513 + $0x41] sm:$0xff]
  %v572 = vld [vmem:[%s513 + $0x51] sm:$0xff]
  %v573 = vld [vmem:[%s513 + $0x61] sm:$0xff]
  %v574 = vld [vmem:[%s513 + $0x71] sm:$0xff]
  %v575 = vld [vmem:[%s513 + $0xa1] sm:$0xff]
  %v576 = vld [vmem:[%s513 + $0xb1] sm:$0xff]
  %v577 = vld [vmem:[%s513 + $0xc1] sm:$0xff]
  %v578 = vld [vmem:[%s513 + $0xd1] sm:$0xff]
  %v579 = vld [vmem:[%s513 + $0xe1] sm:$0xff]
  %v580 = vld [vmem:[%s513 + $0xf1] sm:$0xff]
  %v581 = vld [vmem:[%s513 + $0x101] sm:$0xff]
  %v582 = vld [vmem:[%s513 + $0x111] sm:$0xff]
  %v583 = vld [vmem:[%s1 + $0x7] sm:$0x1]
  %v584 = vlaneseq
  %v585 = vshrl.u32 %v584, 7
  %v586 = vsub.s32 0, %v585
  %v587 = vrot.slane %v583, %v586
  %v588 = vmul.f32 %v567, %v587
  %v589 = vmul.f32 %v568, %v587
  %v590 = vmul.f32 %v569, %v587
  %v591 = vmul.f32 %v570, %v587
  %v592 = vmul.f32 %v571, %v587
  %v593 = vmul.f32 %v572, %v587
  %v594 = vmul.f32 %v573, %v587
  %v595 = vmul.f32 %v574, %v587
  %v596 = vmul.f32 %v575, %v587
  %v597 = vmul.f32 %v576, %v587
  %v598 = vmul.f32 %v577, %v587
  %v599 = vmul.f32 %v578, %v587
  %v600 = vmul.f32 %v579, %v587
  %v601 = vmul.f32 %v580, %v587
  %v602 = vmul.f32 %v581, %v587
  %v603 = vmul.f32 %v582, %v587
  %v604 = vadd.f32 %v551, %v588
  %v605 = vadd.f32 %v552, %v589
  %v606 = vadd.f32 %v553, %v590
  %v607 = vadd.f32 %v554, %v591
  %v608 = vadd.f32 %v555, %v592
  %v609 = vadd.f32 %v556, %v593
  %v610 = vadd.f32 %v557, %v594
  %v611 = vadd.f32 %v558, %v595
  %v612 = vadd.f32 %v559, %v596
  %v613 = vadd.f32 %v560, %v597
  %v614 = vadd.f32 %v561, %v598
  %v615 = vadd.f32 %v562, %v599
  %v616 = vadd.f32 %v563, %v600
  %v617 = vadd.f32 %v564, %v601
  %v618 = vadd.f32 %v565, %v602
  %v619 = vadd.f32 %v566, %v603
  %v620 = vld [vmem:[%s513 + $0x2] sm:$0xff]
  %v621 = vld [vmem:[%s513 + $0x12] sm:$0xff]
  %v622 = vld [vmem:[%s513 + $0x22] sm:$0xff]
  %v623 = vld [vmem:[%s513 + $0x32] sm:$0xff]
  %v624 = vld [vmem:[%s513 + $0x42] sm:$0xff]
  %v625 = vld [vmem:[%s513 + $0x52] sm:$0xff]
  %v626 = vld [vmem:[%s513 + $0x62] sm:$0xff]
  %v627 = vld [vmem:[%s513 + $0x72] sm:$0xff]
  %v628 = vld [vmem:[%s513 + $0xa2] sm:$0xff]
  %v629 = vld [vmem:[%s513 + $0xb2] sm:$0xff]
  %v630 = vld [vmem:[%s513 + $0xc2] sm:$0xff]
  %v631 = vld [vmem:[%s513 + $0xd2] sm:$0xff]
  %v632 = vld [vmem:[%s513 + $0xe2] sm:$0xff]
  %v633 = vld [vmem:[%s513 + $0xf2] sm:$0xff]
  %v634 = vld [vmem:[%s513 + $0x102] sm:$0xff]
  %v635 = vld [vmem:[%s513 + $0x112] sm:$0xff]
  %v636 = vld [vmem:[%s1 + $0x8] sm:$0x1]
  %v637 = vlaneseq
  %v638 = vshrl.u32 %v637, 7
  %v639 = vsub.s32 0, %v638
  %v640 = vrot.slane %v636, %v639
  %v641 = vmul.f32 %v620, %v640
  %v642 = vmul.f32 %v621, %v640
  %v643 = vmul.f32 %v622, %v640
  %v644 = vmul.f32 %v623, %v640
  %v645 = vmul.f32 %v624, %v640
  %v646 = vmul.f32 %v625, %v640
  %v647 = vmul.f32 %v626, %v640
  %v648 = vmul.f32 %v627, %v640
  %v649 = vmul.f32 %v628, %v640
  %v650 = vmul.f32 %v629, %v640
  %v651 = vmul.f32 %v630, %v640
  %v652 = vmul.f32 %v631, %v640
  %v653 = vmul.f32 %v632, %v640
  %v654 = vmul.f32 %v633, %v640
  %v655 = vmul.f32 %v634, %v640
  %v656 = vmul.f32 %v635, %v640
  %v657 = vadd.f32 %v604, %v641
  %v658 = vadd.f32 %v605, %v642
  %v659 = vadd.f32 %v606, %v643
  %v660 = vadd.f32 %v607, %v644
  %v661 = vadd.f32 %v608, %v645
  %v662 = vadd.f32 %v609, %v646
  %v663 = vadd.f32 %v610, %v647
  %v664 = vadd.f32 %v611, %v648
  %v665 = vadd.f32 %v612, %v649
  %v666 = vadd.f32 %v613, %v650
  %v667 = vadd.f32 %v614, %v651
  %v668 = vadd.f32 %v615, %v652
  %v669 = vadd.f32 %v616, %v653
  %v670 = vadd.f32 %v617, %v654
  %v671 = vadd.f32 %v618, %v655
  %v672 = vadd.f32 %v619, %v656
  %v673 = vld [vmem:[%s2] sm:$0x1]
  %v675 = vlaneseq
  %v676 = vshrl.u32 %v675, 7
  %v677 = vsub.s32 0, %v676
  %v678 = vrot.slane %v673, %v677
  %v680 = vadd.f32 %v657, %v678
  %v681 = vadd.f32 %v658, %v678
  %v682 = vadd.f32 %v659, %v678
  %v683 = vadd.f32 %v660, %v678
  %v684 = vadd.f32 %v661, %v678
  %v685 = vadd.f32 %v662, %v678
  %v686 = vadd.f32 %v663, %v678
  %v687 = vadd.f32 %v664, %v678
  %v688 = vadd.f32 %v665, %v678
  %v689 = vadd.f32 %v666, %v678
  %v690 = vadd.f32 %v667, %v678
  %v691 = vadd.f32 %v668, %v678
  %v692 = vadd.f32 %v669, %v678
  %v693 = vadd.f32 %v670, %v678
  %v694 = vadd.f32 %v671, %v678
  %v695 = vadd.f32 %v672, %v678
  %v696 = vmax.f32 %v680, 0.0
  %v697 = vmax.f32 %v681, 0.0
  %v698 = vmax.f32 %v682, 0.0
  %v699 = vmax.f32 %v683, 0.0
  %v700 = vmax.f32 %v684, 0.0
  %v701 = vmax.f32 %v685, 0.0
  %v702 = vmax.f32 %v686, 0.0
  %v703 = vmax.f32 %v687, 0.0
  %v704 = vmax.f32 %v688, 0.0
  %v705 = vmax.f32 %v689, 0.0
  %v706 = vmax.f32 %v690, 0.0
  %v707 = vmax.f32 %v691, 0.0
  %v708 = vmax.f32 %v692, 0.0
  %v709 = vmax.f32 %v693, 0.0
  %v710 = vmax.f32 %v694, 0.0
  %v711 = vmax.f32 %v695, 0.0
  %712 = vst.msk [vmem:[%s178 + $0x1] sm:$0xff] %vm40, %v696
  %713 = vst.msk [vmem:[%s178 + $0x11] sm:$0xff] %vm40, %v697
  %714 = vst.msk [vmem:[%s178 + $0x21] sm:$0xff] %vm40, %v698
  %715 = vst.msk [vmem:[%s178 + $0x31] sm:$0xff] %vm40, %v699
  %716 = vst.msk [vmem:[%s178 + $0x41] sm:$0xff] %vm40, %v700
  %717 = vst.msk [vmem:[%s178 + $0x51] sm:$0xff] %vm40, %v701
  %718 = vst.msk [vmem:[%s178 + $0x61] sm:$0xff] %vm40, %v702
  %719 = vst.msk [vmem:[%s178 + $0x71] sm:$0xff] %vm40, %v703
  %720 = vst.msk [vmem:[%s178 + $0xa1] sm:$0xff] %vm40, %v704
  %721 = vst.msk [vmem:[%s178 + $0xb1] sm:$0xff] %vm40, %v705
  %722 = vst.msk [vmem:[%s178 + $0xc1] sm:$0xff] %vm40, %v706
  %723 = vst.msk [vmem:[%s178 + $0xd1] sm:$0xff] %vm40, %v707
  %724 = vst.msk [vmem:[%s178 + $0xe1] sm:$0xff] %vm40, %v708
  %725 = vst.msk [vmem:[%s178 + $0xf1] sm:$0xff] %vm40, %v709
  %726 = vst.msk [vmem:[%s178 + $0x101] sm:$0xff] %vm40, %v710
  %727 = vst.msk [vmem:[%s178 + $0x111] sm:$0xff] %vm40, %v711
  %v728 = vld [vmem:[#allocation2] sm:$0xff]
  %v729 = vld [vmem:[#allocation2 + $0x10] sm:$0xff]
  %v730 = vld [vmem:[#allocation2 + $0x20] sm:$0xff]
  %v731 = vld [vmem:[#allocation2 + $0x30] sm:$0xff]
  %v732 = vld [vmem:[#allocation2 + $0x40] sm:$0xff]
  %v733 = vld [vmem:[#allocation2 + $0x50] sm:$0xff]
  %v734 = vld [vmem:[#allocation2 + $0x60] sm:$0xff]
  %v735 = vld [vmem:[#allocation2 + $0x70] sm:$0xff]
  %v736 = vld [vmem:[#allocation2 + $0xa0] sm:$0xff]
  %v737 = vld [vmem:[#allocation2 + $0xb0] sm:$0xff]
  %v738 = vld [vmem:[#allocation2 + $0xc0] sm:$0xff]
  %v739 = vld [vmem:[#allocation2 + $0xd0] sm:$0xff]
  %v740 = vld [vmem:[#allocation2 + $0xe0] sm:$0xff]
  %v741 = vld [vmem:[#allocation2 + $0xf0] sm:$0xff]
  %v742 = vld [vmem:[#allocation2 + $0x100] sm:$0xff]
  %v743 = vld [vmem:[#allocation2 + $0x110] sm:$0xff]
  %744 = vst.msk [vmem:[#allocation3] sm:$0xff] %vm40, %v728
  %745 = vst.msk [vmem:[#allocation3 + $0x10] sm:$0xff] %vm40, %v729
  %746 = vst.msk [vmem:[#allocation3 + $0x20] sm:$0xff] %vm40, %v730
  %747 = vst.msk [vmem:[#allocation3 + $0x30] sm:$0xff] %vm40, %v731
  %748 = vst.msk [vmem:[#allocation3 + $0x40] sm:$0xff] %vm40, %v732
  %749 = vst.msk [vmem:[#allocation3 + $0x50] sm:$0xff] %vm40, %v733
  %750 = vst.msk [vmem:[#allocation3 + $0x60] sm:$0xff] %vm40, %v734
  %751 = vst.msk [vmem:[#allocation3 + $0x70] sm:$0xff] %vm40, %v735
  %752 = vst.msk [vmem:[#allocation3 + $0x80] sm:$0xff] %vm40, %v736
  %753 = vst.msk [vmem:[#allocation3 + $0x90] sm:$0xff] %vm40, %v737
  %754 = vst.msk [vmem:[#allocation3 + $0xa0] sm:$0xff] %vm40, %v738
  %755 = vst.msk [vmem:[#allocation3 + $0xb0] sm:$0xff] %vm40, %v739
  %756 = vst.msk [vmem:[#allocation3 + $0xc0] sm:$0xff] %vm40, %v740
  %757 = vst.msk [vmem:[#allocation3 + $0xd0] sm:$0xff] %vm40, %v741
  %758 = vst.msk [vmem:[#allocation3 + $0xe0] sm:$0xff] %vm40, %v742
  %759 = vst.msk [vmem:[#allocation3 + $0xf0] sm:$0xff] %vm40, %v743
  %v760 = vld [vmem:[#allocation2 + $0x1] sm:$0xff]
  %v761 = vld [vmem:[#allocation2 + $0x11] sm:$0xff]
  %v762 = vld [vmem:[#allocation2 + $0x21] sm:$0xff]
  %v763 = vld [vmem:[#allocation2 + $0x31] sm:$0xff]
  %v764 = vld [vmem:[#allocation2 + $0x41] sm:$0xff]
  %v765 = vld [vmem:[#allocation2 + $0x51] sm:$0xff]
  %v766 = vld [vmem:[#allocation2 + $0x61] sm:$0xff]
  %v767 = vld [vmem:[#allocation2 + $0x71] sm:$0xff]
  %v768 = vld [vmem:[#allocation2 + $0xa1] sm:$0xff]
  %v769 = vld [vmem:[#allocation2 + $0xb1] sm:$0xff]
  %v770 = vld [vmem:[#allocation2 + $0xc1] sm:$0xff]
  %v771 = vld [vmem:[#allocation2 + $0xd1] sm:$0xff]
  %v772 = vld [vmem:[#allocation2 + $0xe1] sm:$0xff]
  %v773 = vld [vmem:[#allocation2 + $0xf1] sm:$0xff]
  %v774 = vld [vmem:[#allocation2 + $0x101] sm:$0xff]
  %v775 = vld [vmem:[#allocation2 + $0x111] sm:$0xff]
  %792 = vrot.lane.b32.xlu0 %v760, 16
  %v793 = vpop.permute.xlu0 %792
  %794 = vrot.lane.b32.xlu0 %v761, 16
  %v795 = vpop.permute.xlu0 %794
  %796 = vrot.lane.b32.xlu0 %v762, 16
  %v797 = vpop.permute.xlu0 %796
  %798 = vrot.lane.b32.xlu0 %v763, 16
  %v799 = vpop.permute.xlu0 %798
  %800 = vrot.lane.b32.xlu0 %v764, 16
  %v801 = vpop.permute.xlu0 %800
  %802 = vrot.lane.b32.xlu0 %v765, 16
  %v803 = vpop.permute.xlu0 %802
  %804 = vrot.lane.b32.xlu0 %v766, 16
  %v805 = vpop.permute.xlu0 %804
  %806 = vrot.lane.b32.xlu0 %v767, 16
  %v807 = vpop.permute.xlu0 %806
  %808 = vrot.lane.b32.xlu0 %v768, 16
  %v809 = vpop.permute.xlu0 %808
  %810 = vrot.lane.b32.xlu0 %v769, 16
  %v811 = vpop.permute.xlu0 %810
  %812 = vrot.lane.b32.xlu0 %v770, 16
  %v813 = vpop.permute.xlu0 %812
  %814 = vrot.lane.b32.xlu0 %v771, 16
  %v815 = vpop.permute.xlu0 %814
  %816 = vrot.lane.b32.xlu0 %v772, 16
  %v817 = vpop.permute.xlu0 %816
  %818 = vrot.lane.b32.xlu0 %v773, 16
  %v819 = vpop.permute.xlu0 %818
  %820 = vrot.lane.b32.xlu0 %v774, 16
  %v821 = vpop.permute.xlu0 %820
  %822 = vrot.lane.b32.xlu0 %v775, 16
  %v823 = vpop.permute.xlu0 %822
  %vm840 = vcmask 261248
  %841 = vst.msk [vmem:[#allocation3] sm:$0xff] %vm840, %v793
  %842 = vst.msk [vmem:[#allocation3 + $0x10] sm:$0xff] %vm840, %v795
  %843 = vst.msk [vmem:[#allocation3 + $0x20] sm:$0xff] %vm840, %v797
  %844 = vst.msk [vmem:[#allocation3 + $0x30] sm:$0xff] %vm840, %v799
  %845 = vst.msk [vmem:[#allocation3 + $0x40] sm:$0xff] %vm840, %v801
  %846 = vst.msk [vmem:[#allocation3 + $0x50] sm:$0xff] %vm840, %v803
  %847 = vst.msk [vmem:[#allocation3 + $0x60] sm:$0xff] %vm840, %v805
  %848 = vst.msk [vmem:[#allocation3 + $0x70] sm:$0xff] %vm840, %v807
  %849 = vst.msk [vmem:[#allocation3 + $0x80] sm:$0xff] %vm840, %v809
  %850 = vst.msk [vmem:[#allocation3 + $0x90] sm:$0xff] %vm840, %v811
  %851 = vst.msk [vmem:[#allocation3 + $0xa0] sm:$0xff] %vm840, %v813
  %852 = vst.msk [vmem:[#allocation3 + $0xb0] sm:$0xff] %vm840, %v815
  %853 = vst.msk [vmem:[#allocation3 + $0xc0] sm:$0xff] %vm840, %v817
  %854 = vst.msk [vmem:[#allocation3 + $0xd0] sm:$0xff] %vm840, %v819
  %855 = vst.msk [vmem:[#allocation3 + $0xe0] sm:$0xff] %vm840, %v821
  %856 = vst.msk [vmem:[#allocation3 + $0xf0] sm:$0xff] %vm840, %v823
  %v857 = vld [vmem:[#allocation2 + $0x2] sm:$0xff]
  %v858 = vld [vmem:[#allocation2 + $0x12] sm:$0xff]
  %v859 = vld [vmem:[#allocation2 + $0x22] sm:$0xff]
  %v860 = vld [vmem:[#allocation2 + $0x32] sm:$0xff]
  %v861 = vld [vmem:[#allocation2 + $0x42] sm:$0xff]
  %v862 = vld [vmem:[#allocation2 + $0x52] sm:$0xff]
  %v863 = vld [vmem:[#allocation2 + $0x62] sm:$0xff]
  %v864 = vld [vmem:[#allocation2 + $0x72] sm:$0xff]
  %v865 = vld [vmem:[#allocation2 + $0xa2] sm:$0xff]
  %v866 = vld [vmem:[#allocation2 + $0xb2] sm:$0xff]
  %v867 = vld [vmem:[#allocation2 + $0xc2] sm:$0xff]
  %v868 = vld [vmem:[#allocation2 + $0xd2] sm:$0xff]
  %v869 = vld [vmem:[#allocation2 + $0xe2] sm:$0xff]
  %v870 = vld [vmem:[#allocation2 + $0xf2] sm:$0xff]
  %v871 = vld [vmem:[#allocation2 + $0x102] sm:$0xff]
  %v872 = vld [vmem:[#allocation2 + $0x112] sm:$0xff]
  %889 = vrot.lane.b32.xlu0 %v857, 32
  %v890 = vpop.permute.xlu0 %889
  %891 = vrot.lane.b32.xlu0 %v858, 32
  %v892 = vpop.permute.xlu0 %891
  %893 = vrot.lane.b32.xlu0 %v859, 32
  %v894 = vpop.permute.xlu0 %893
  %895 = vrot.lane.b32.xlu0 %v860, 32
  %v896 = vpop.permute.xlu0 %895
  %897 = vrot.lane.b32.xlu0 %v861, 32
  %v898 = vpop.permute.xlu0 %897
  %899 = vrot.lane.b32.xlu0 %v862, 32
  %v900 = vpop.permute.xlu0 %899
  %901 = vrot.lane.b32.xlu0 %v863, 32
  %v902 = vpop.permute.xlu0 %901
  %903 = vrot.lane.b32.xlu0 %v864, 32
  %v904 = vpop.permute.xlu0 %903
  %905 = vrot.lane.b32.xlu0 %v865, 32
  %v906 = vpop.permute.xlu0 %905
  %907 = vrot.lane.b32.xlu0 %v866, 32
  %v908 = vpop.permute.xlu0 %907
  %909 = vrot.lane.b32.xlu0 %v867, 32
  %v910 = vpop.permute.xlu0 %909
  %911 = vrot.lane.b32.xlu0 %v868, 32
  %v912 = vpop.permute.xlu0 %911
  %913 = vrot.lane.b32.xlu0 %v869, 32
  %v914 = vpop.permute.xlu0 %913
  %915 = vrot.lane.b32.xlu0 %v870, 32
  %v916 = vpop.permute.xlu0 %915
  %917 = vrot.lane.b32.xlu0 %v871, 32
  %v918 = vpop.permute.xlu0 %917
  %919 = vrot.lane.b32.xlu0 %v872, 32
  %v920 = vpop.permute.xlu0 %919
  %vm937 = vcmask 392448
  %938 = vst.msk [vmem:[#allocation3] sm:$0xff] %vm937, %v890
  %939 = vst.msk [vmem:[#allocation3 + $0x10] sm:$0xff] %vm937, %v892
  %940 = vst.msk [vmem:[#allocation3 + $0x20] sm:$0xff] %vm937, %v894
  %941 = vst.msk [vmem:[#allocation3 + $0x30] sm:$0xff] %vm937, %v896
  %942 = vst.msk [vmem:[#allocation3 + $0x40] sm:$0xff] %vm937, %v898
  %943 = vst.msk [vmem:[#allocation3 + $0x50] sm:$0xff] %vm937, %v900
  %944 = vst.msk [vmem:[#allocation3 + $0x60] sm:$0xff] %vm937, %v902
  %945 = vst.msk [vmem:[#allocation3 + $0x70] sm:$0xff] %vm937, %v904
  %946 = vst.msk [vmem:[#allocation3 + $0x80] sm:$0xff] %vm937, %v906
  %947 = vst.msk [vmem:[#allocation3 + $0x90] sm:$0xff] %vm937, %v908
  %948 = vst.msk [vmem:[#allocation3 + $0xa0] sm:$0xff] %vm937, %v910
  %949 = vst.msk [vmem:[#allocation3 + $0xb0] sm:$0xff] %vm937, %v912
  %950 = vst.msk [vmem:[#allocation3 + $0xc0] sm:$0xff] %vm937, %v914
  %951 = vst.msk [vmem:[#allocation3 + $0xd0] sm:$0xff] %vm937, %v916
  %952 = vst.msk [vmem:[#allocation3 + $0xe0] sm:$0xff] %vm937, %v918
  %953 = vst.msk [vmem:[#allocation3 + $0xf0] sm:$0xff] %vm937, %v920
  %v954 = vld [vmem:[%s178] sm:$0xff]
  %v955 = vld [vmem:[%s178 + $0x10] sm:$0xff]
  %v956 = vld [vmem:[%s178 + $0x20] sm:$0xff]
  %v957 = vld [vmem:[%s178 + $0x30] sm:$0xff]
  %v958 = vld [vmem:[%s178 + $0x40] sm:$0xff]
  %v959 = vld [vmem:[%s178 + $0x50] sm:$0xff]
  %v960 = vld [vmem:[%s178 + $0x60] sm:$0xff]
  %v961 = vld [vmem:[%s178 + $0x70] sm:$0xff]
  %v962 = vld [vmem:[%s178 + $0xa0] sm:$0xff]
  %v963 = vld [vmem:[%s178 + $0xb0] sm:$0xff]
  %v964 = vld [vmem:[%s178 + $0xc0] sm:$0xff]
  %v965 = vld [vmem:[%s178 + $0xd0] sm:$0xff]
  %v966 = vld [vmem:[%s178 + $0xe0] sm:$0xff]
  %v967 = vld [vmem:[%s178 + $0xf0] sm:$0xff]
  %v968 = vld [vmem:[%s178 + $0x100] sm:$0xff]
  %v969 = vld [vmem:[%s178 + $0x110] sm:$0xff]
  %986 = vrot.lane.b32.xlu0 %v954, 48
  %v987 = vpop.permute.xlu0 %986
  %988 = vrot.lane.b32.xlu0 %v955, 48
  %v989 = vpop.permute.xlu0 %988
  %990 = vrot.lane.b32.xlu0 %v956, 48
  %v991 = vpop.permute.xlu0 %990
  %992 = vrot.lane.b32.xlu0 %v957, 48
  %v993 = vpop.permute.xlu0 %992
  %994 = vrot.lane.b32.xlu0 %v958, 48
  %v995 = vpop.permute.xlu0 %994
  %996 = vrot.lane.b32.xlu0 %v959, 48
  %v997 = vpop.permute.xlu0 %996
  %998 = vrot.lane.b32.xlu0 %v960, 48
  %v999 = vpop.permute.xlu0 %998
  %1000 = vrot.lane.b32.xlu0 %v961, 48
  %v1001 = vpop.permute.xlu0 %1000
  %1002 = vrot.lane.b32.xlu0 %v962, 48
  %v1003 = vpop.permute.xlu0 %1002
  %1004 = vrot.lane.b32.xlu0 %v963, 48
  %v1005 = vpop.permute.xlu0 %1004
  %1006 = vrot.lane.b32.xlu0 %v964, 48
  %v1007 = vpop.permute.xlu0 %1006
  %1008 = vrot.lane.b32.xlu0 %v965, 48
  %v1009 = vpop.permute.xlu0 %1008
  %1010 = vrot.lane.b32.xlu0 %v966, 48
  %v1011 = vpop.permute.xlu0 %1010
  %1012 = vrot.lane.b32.xlu0 %v967, 48
  %v1013 = vpop.permute.xlu0 %1012
  %1014 = vrot.lane.b32.xlu0 %v968, 48
  %v1015 = vpop.permute.xlu0 %1014
  %1016 = vrot.lane.b32.xlu0 %v969, 48
  %v1017 = vpop.permute.xlu0 %1016
  %vm1034 = vcmask 523648
  %1035 = vst.msk [vmem:[#allocation3] sm:$0xff] %vm1034, %v987
  %1036 = vst.msk [vmem:[#allocation3 + $0x10] sm:$0xff] %vm1034, %v989
  %1037 = vst.msk [vmem:[#allocation3 + $0x20] sm:$0xff] %vm1034, %v991
  %1038 = vst.msk [vmem:[#allocation3 + $0x30] sm:$0xff] %vm1034, %v993
  %1039 = vst.msk [vmem:[#allocation3 + $0x40] sm:$0xff] %vm1034, %v995
  %1040 = vst.msk [vmem:[#allocation3 + $0x50] sm:$0xff] %vm1034, %v997
  %1041 = vst.msk [vmem:[#allocation3 + $0x60] sm:$0xff] %vm1034, %v999
  %1042 = vst.msk [vmem:[#allocation3 + $0x70] sm:$0xff] %vm1034, %v1001
  %1043 = vst.msk [vmem:[#allocation3 + $0x80] sm:$0xff] %vm1034, %v1003
  %1044 = vst.msk [vmem:[#allocation3 + $0x90] sm:$0xff] %vm1034, %v1005
  %1045 = vst.msk [vmem:[#allocation3 + $0xa0] sm:$0xff] %vm1034, %v1007
  %1046 = vst.msk [vmem:[#allocation3 + $0xb0] sm:$0xff] %vm1034, %v1009
  %1047 = vst.msk [vmem:[#allocation3 + $0xc0] sm:$0xff] %vm1034, %v1011
  %1048 = vst.msk [vmem:[#allocation3 + $0xd0] sm:$0xff] %vm1034, %v1013
  %1049 = vst.msk [vmem:[#allocation3 + $0xe0] sm:$0xff] %vm1034, %v1015
  %1050 = vst.msk [vmem:[#allocation3 + $0xf0] sm:$0xff] %vm1034, %v1017
  %v1051 = vld [vmem:[%s178 + $0x1] sm:$0xff]
  %v1052 = vld [vmem:[%s178 + $0x11] sm:$0xff]
  %v1053 = vld [vmem:[%s178 + $0x21] sm:$0xff]
  %v1054 = vld [vmem:[%s178 + $0x31] sm:$0xff]
  %v1055 = vld [vmem:[%s178 + $0x41] sm:$0xff]
  %v1056 = vld [vmem:[%s178 + $0x51] sm:$0xff]
  %v1057 = vld [vmem:[%s178 + $0x61] sm:$0xff]
  %v1058 = vld [vmem:[%s178 + $0x71] sm:$0xff]
  %v1059 = vld [vmem:[%s178 + $0xa1] sm:$0xff]
  %v1060 = vld [vmem:[%s178 + $0xb1] sm:$0xff]
  %v1061 = vld [vmem:[%s178 + $0xc1] sm:$0xff]
  %v1062 = vld [vmem:[%s178 + $0xd1] sm:$0xff]
  %v1063 = vld [vmem:[%s178 + $0xe1] sm:$0xff]
  %v1064 = vld [vmem:[%s178 + $0xf1] sm:$0xff]
  %v1065 = vld [vmem:[%s178 + $0x101] sm:$0xff]
  %v1066 = vld [vmem:[%s178 + $0x111] sm:$0xff]
  %1083 = vrot.lane.b32.xlu0 %v1051, 64
  %v1084 = vpop.permute.xlu0 %1083
  %1085 = vrot.lane.b32.xlu0 %v1052, 64
  %v1086 = vpop.permute.xlu0 %1085
  %1087 = vrot.lane.b32.xlu0 %v1053, 64
  %v1088 = vpop.permute.xlu0 %1087
  %1089 = vrot.lane.b32.xlu0 %v1054, 64
  %v1090 = vpop.permute.xlu0 %1089
  %1091 = vrot.lane.b32.xlu0 %v1055, 64
  %v1092 = vpop.permute.xlu0 %1091
  %1093 = vrot.lane.b32.xlu0 %v1056, 64
  %v1094 = vpop.permute.xlu0 %1093
  %1095 = vrot.lane.b32.xlu0 %v1057, 64
  %v1096 = vpop.permute.xlu0 %1095
  %1097 = vrot.lane.b32.xlu0 %v1058, 64
  %v1098 = vpop.permute.xlu0 %1097
  %1099 = vrot.lane.b32.xlu0 %v1059, 64
  %v1100 = vpop.permute.xlu0 %1099
  %1101 = vrot.lane.b32.xlu0 %v1060, 64
  %v1102 = vpop.permute.xlu0 %1101
  %1103 = vrot.lane.b32.xlu0 %v1061, 64
  %v1104 = vpop.permute.xlu0 %1103
  %1105 = vrot.lane.b32.xlu0 %v1062, 64
  %v1106 = vpop.permute.xlu0 %1105
  %1107 = vrot.lane.b32.xlu0 %v1063, 64
  %v1108 = vpop.permute.xlu0 %1107
  %1109 = vrot.lane.b32.xlu0 %v1064, 64
  %v1110 = vpop.permute.xlu0 %1109
  %1111 = vrot.lane.b32.xlu0 %v1065, 64
  %v1112 = vpop.permute.xlu0 %1111
  %1113 = vrot.lane.b32.xlu0 %v1066, 64
  %v1114 = vpop.permute.xlu0 %1113
  %vm1131 = vcmask 654848
  %1132 = vst.msk [vmem:[#allocation3] sm:$0xff] %vm1131, %v1084
  %1133 = vst.msk [vmem:[#allocation3 + $0x10] sm:$0xff] %vm1131, %v1086
  %1134 = vst.msk [vmem:[#allocation3 + $0x20] sm:$0xff] %vm1131, %v1088
  %1135 = vst.msk [vmem:[#allocation3 + $0x30] sm:$0xff] %vm1131, %v1090
  %1136 = vst.msk [vmem:[#allocation3 + $0x40] sm:$0xff] %vm1131, %v1092
  %1137 = vst.msk [vmem:[#allocation3 + $0x50] sm:$0xff] %vm1131, %v1094
  %1138 = vst.msk [vmem:[#allocation3 + $0x60] sm:$0xff] %vm1131, %v1096
  %1139 = vst.msk [vmem:[#allocation3 + $0x70] sm:$0xff] %vm1131, %v1098
  %1140 = vst.msk [vmem:[#allocation3 + $0x80] sm:$0xff] %vm1131, %v1100
  %1141 = vst.msk [vmem:[#allocation3 + $0x90] sm:$0xff] %vm1131, %v1102
  %1142 = vst.msk [vmem:[#allocation3 + $0xa0] sm:$0xff] %vm1131, %v1104
  %1143 = vst.msk [vmem:[#allocation3 + $0xb0] sm:$0xff] %vm1131, %v1106
  %1144 = vst.msk [vmem:[#allocation3 + $0xc0] sm:$0xff] %vm1131, %v1108
  %1145 = vst.msk [vmem:[#allocation3 + $0xd0] sm:$0xff] %vm1131, %v1110
  %1146 = vst.msk [vmem:[#allocation3 + $0xe0] sm:$0xff] %vm1131, %v1112
  %1147 = vst.msk [vmem:[#allocation3 + $0xf0] sm:$0xff] %vm1131, %v1114
  %v1148 = vld [vmem:[%s178 + $0x2] sm:$0xff]
  %v1149 = vld [vmem:[%s178 + $0x12] sm:$0xff]
  %v1150 = vld [vmem:[%s178 + $0x22] sm:$0xff]
  %v1151 = vld [vmem:[%s178 + $0x32] sm:$0xff]
  %v1152 = vld [vmem:[%s178 + $0x42] sm:$0xff]
  %v1153 = vld [vmem:[%s178 + $0x52] sm:$0xff]
  %v1154 = vld [vmem:[%s178 + $0x62] sm:$0xff]
  %v1155 = vld [vmem:[%s178 + $0x72] sm:$0xff]
  %v1156 = vld [vmem:[%s178 + $0xa2] sm:$0xff]
  %v1157 = vld [vmem:[%s178 + $0xb2] sm:$0xff]
  %v1158 = vld [vmem:[%s178 + $0xc2] sm:$0xff]
  %v1159 = vld [vmem:[%s178 + $0xd2] sm:$0xff]
  %v1160 = vld [vmem:[%s178 + $0xe2] sm:$0xff]
  %v1161 = vld [vmem:[%s178 + $0xf2] sm:$0xff]
  %v1162 = vld [vmem:[%s178 + $0x102] sm:$0xff]
  %v1163 = vld [vmem:[%s178 + $0x112] sm:$0xff]
  %1180 = vrot.lane.b32.xlu0 %v1148, 80
  %v1181 = vpop.permute.xlu0 %1180
  %1182 = vrot.lane.b32.xlu0 %v1149, 80
  %v1183 = vpop.permute.xlu0 %1182
  %1184 = vrot.lane.b32.xlu0 %v1150, 80
  %v1185 = vpop.permute.xlu0 %1184
  %1186 = vrot.lane.b32.xlu0 %v1151, 80
  %v1187 = vpop.permute.xlu0 %1186
  %1188 = vrot.lane.b32.xlu0 %v1152, 80
  %v1189 = vpop.permute.xlu0 %1188
  %1190 = vrot.lane.b32.xlu0 %v1153, 80
  %v1191 = vpop.permute.xlu0 %1190
  %1192 = vrot.lane.b32.xlu0 %v1154, 80
  %v1193 = vpop.permute.xlu0 %1192
  %1194 = vrot.lane.b32.xlu0 %v1155, 80
  %v1195 = vpop.permute.xlu0 %1194
  %1196 = vrot.lane.b32.xlu0 %v1156, 80
  %v1197 = vpop.permute.xlu0 %1196
  %1198 = vrot.lane.b32.xlu0 %v1157, 80
  %v1199 = vpop.permute.xlu0 %1198
  %1200 = vrot.lane.b32.xlu0 %v1158, 80
  %v1201 = vpop.permute.xlu0 %1200
  %1202 = vrot.lane.b32.xlu0 %v1159, 80
  %v1203 = vpop.permute.xlu0 %1202
  %1204 = vrot.lane.b32.xlu0 %v1160, 80
  %v1205 = vpop.permute.xlu0 %1204
  %1206 = vrot.lane.b32.xlu0 %v1161, 80
  %v1207 = vpop.permute.xlu0 %1206
  %1208 = vrot.lane.b32.xlu0 %v1162, 80
  %v1209 = vpop.permute.xlu0 %1208
  %1210 = vrot.lane.b32.xlu0 %v1163, 80
  %v1211 = vpop.permute.xlu0 %1210
  %vm1228 = vcmask 786048
  %1229 = vst.msk [vmem:[#allocation3] sm:$0xff] %vm1228, %v1181
  %1230 = vst.msk [vmem:[#allocation3 + $0x10] sm:$0xff] %vm1228, %v1183
  %1231 = vst.msk [vmem:[#allocation3 + $0x20] sm:$0xff] %vm1228, %v1185
  %1232 = vst.msk [vmem:[#allocation3 + $0x30] sm:$0xff] %vm1228, %v1187
  %1233 = vst.msk [vmem:[#allocation3 + $0x40] sm:$0xff] %vm1228, %v1189
  %1234 = vst.msk [vmem:[#allocation3 + $0x50] sm:$0xff] %vm1228, %v1191
  %1235 = vst.msk [vmem:[#allocation3 + $0x60] sm:$0xff] %vm1228, %v1193
  %1236 = vst.msk [vmem:[#allocation3 + $0x70] sm:$0xff] %vm1228, %v1195
  %1237 = vst.msk [vmem:[#allocation3 + $0x80] sm:$0xff] %vm1228, %v1197
  %1238 = vst.msk [vmem:[#allocation3 + $0x90] sm:$0xff] %vm1228, %v1199
  %1239 = vst.msk [vmem:[#allocation3 + $0xa0] sm:$0xff] %vm1228, %v1201
  %1240 = vst.msk [vmem:[#allocation3 + $0xb0] sm:$0xff] %vm1228, %v1203
  %1241 = vst.msk [vmem:[#allocation3 + $0xc0] sm:$0xff] %vm1228, %v1205
  %1242 = vst.msk [vmem:[#allocation3 + $0xd0] sm:$0xff] %vm1228, %v1207
  %1243 = vst.msk [vmem:[#allocation3 + $0xe0] sm:$0xff] %vm1228, %v1209
  %1244 = vst.msk [vmem:[#allocation3 + $0xf0] sm:$0xff] %vm1228, %v1211
  %v1245 = vld [vmem:[%s513] sm:$0xff]
  %v1246 = vld [vmem:[%s513 + $0x10] sm:$0xff]
  %v1247 = vld [vmem:[%s513 + $0x20] sm:$0xff]
  %v1248 = vld [vmem:[%s513 + $0x30] sm:$0xff]
  %v1249 = vld [vmem:[%s513 + $0x40] sm:$0xff]
  %v1250 = vld [vmem:[%s513 + $0x50] sm:$0xff]
  %v1251 = vld [vmem:[%s513 + $0x60] sm:$0xff]
  %v1252 = vld [vmem:[%s513 + $0x70] sm:$0xff]
  %v1253 = vld [vmem:[%s513 + $0xa0] sm:$0xff]
  %v1254 = vld [vmem:[%s513 + $0xb0] sm:$0xff]
  %v1255 = vld [vmem:[%s513 + $0xc0] sm:$0xff]
  %v1256 = vld [vmem:[%s513 + $0xd0] sm:$0xff]
  %v1257 = vld [vmem:[%s513 + $0xe0] sm:$0xff]
  %v1258 = vld [vmem:[%s513 + $0xf0] sm:$0xff]
  %v1259 = vld [vmem:[%s513 + $0x100] sm:$0xff]
  %v1260 = vld [vmem:[%s513 + $0x110] sm:$0xff]
  %1277 = vrot.lane.b32.xlu0 %v1245, 96
  %v1278 = vpop.permute.xlu0 %1277
  %1279 = vrot.lane.b32.xlu0 %v1246, 96
  %v1280 = vpop.permute.xlu0 %1279
  %1281 = vrot.lane.b32.xlu0 %v1247, 96
  %v1282 = vpop.permute.xlu0 %1281
  %1283 = vrot.lane.b32.xlu0 %v1248, 96
  %v1284 = vpop.permute.xlu0 %1283
  %1285 = vrot.lane.b32.xlu0 %v1249, 96
  %v1286 = vpop.permute.xlu0 %1285
  %1287 = vrot.lane.b32.xlu0 %v1250, 96
  %v1288 = vpop.permute.xlu0 %1287
  %1289 = vrot.lane.b32.xlu0 %v1251, 96
  %v1290 = vpop.permute.xlu0 %1289
  %1291 = vrot.lane.b32.xlu0 %v1252, 96
  %v1292 = vpop.permute.xlu0 %1291
  %1293 = vrot.lane.b32.xlu0 %v1253, 96
  %v1294 = vpop.permute.xlu0 %1293
  %1295 = vrot.lane.b32.xlu0 %v1254, 96
  %v1296 = vpop.permute.xlu0 %1295
  %1297 = vrot.lane.b32.xlu0 %v1255, 96
  %v1298 = vpop.permute.xlu0 %1297
  %1299 = vrot.lane.b32.xlu0 %v1256, 96
  %v1300 = vpop.permute.xlu0 %1299
  %1301 = vrot.lane.b32.xlu0 %v1257, 96
  %v1302 = vpop.permute.xlu0 %1301
  %1303 = vrot.lane.b32.xlu0 %v1258, 96
  %v1304 = vpop.permute.xlu0 %1303
  %1305 = vrot.lane.b32.xlu0 %v1259, 96
  %v1306 = vpop.permute.xlu0 %1305
  %1307 = vrot.lane.b32.xlu0 %v1260, 96
  %v1308 = vpop.permute.xlu0 %1307
  %vm1325 = vcmask 917248
  %1326 = vst.msk [vmem:[#allocation3] sm:$0xff] %vm1325, %v1278
  %1327 = vst.msk [vmem:[#allocation3 + $0x10] sm:$0xff] %vm1325, %v1280
  %1328 = vst.msk [vmem:[#allocation3 + $0x20] sm:$0xff] %vm1325, %v1282
  %1329 = vst.msk [vmem:[#allocation3 + $0x30] sm:$0xff] %vm1325, %v1284
  %1330 = vst.msk [vmem:[#allocation3 + $0x40] sm:$0xff] %vm1325, %v1286
  %1331 = vst.msk [vmem:[#allocation3 + $0x50] sm:$0xff] %vm1325, %v1288
  %1332 = vst.msk [vmem:[#allocation3 + $0x60] sm:$0xff] %vm1325, %v1290
  %1333 = vst.msk [vmem:[#allocation3 + $0x70] sm:$0xff] %vm1325, %v1292
  %1334 = vst.msk [vmem:[#allocation3 + $0x80] sm:$0xff] %vm1325, %v1294
  %1335 = vst.msk [vmem:[#allocation3 + $0x90] sm:$0xff] %vm1325, %v1296
  %1336 = vst.msk [vmem:[#allocation3 + $0xa0] sm:$0xff] %vm1325, %v1298
  %1337 = vst.msk [vmem:[#allocation3 + $0xb0] sm:$0xff] %vm1325, %v1300
  %1338 = vst.msk [vmem:[#allocation3 + $0xc0] sm:$0xff] %vm1325, %v1302
  %1339 = vst.msk [vmem:[#allocation3 + $0xd0] sm:$0xff] %vm1325, %v1304
  %1340 = vst.msk [vmem:[#allocation3 + $0xe0] sm:$0xff] %vm1325, %v1306
  %1341 = vst.msk [vmem:[#allocation3 + $0xf0] sm:$0xff] %vm1325, %v1308
  %v1342 = vld [vmem:[%s513 + $0x1] sm:$0xff]
  %v1343 = vld [vmem:[%s513 + $0x11] sm:$0xff]
  %v1344 = vld [vmem:[%s513 + $0x21] sm:$0xff]
  %v1345 = vld [vmem:[%s513 + $0x31] sm:$0xff]
  %v1346 = vld [vmem:[%s513 + $0x41] sm:$0xff]
  %v1347 = vld [vmem:[%s513 + $0x51] sm:$0xff]
  %v1348 = vld [vmem:[%s513 + $0x61] sm:$0xff]
  %v1349 = vld [vmem:[%s513 + $0x71] sm:$0xff]
  %v1350 = vld [vmem:[%s513 + $0xa1] sm:$0xff]
  %v1351 = vld [vmem:[%s513 + $0xb1] sm:$0xff]
  %v1352 = vld [vmem:[%s513 + $0xc1] sm:$0xff]
  %v1353 = vld [vmem:[%s513 + $0xd1] sm:$0xff]
  %v1354 = vld [vmem:[%s513 + $0xe1] sm:$0xff]
  %v1355 = vld [vmem:[%s513 + $0xf1] sm:$0xff]
  %v1356 = vld [vmem:[%s513 + $0x101] sm:$0xff]
  %v1357 = vld [vmem:[%s513 + $0x111] sm:$0xff]
  %1374 = vrot.lane.b32.xlu0 %v1342, 112
  %v1375 = vpop.permute.xlu0 %1374
  %1376 = vrot.lane.b32.xlu0 %v1343, 112
  %v1377 = vpop.permute.xlu0 %1376
  %1378 = vrot.lane.b32.xlu0 %v1344, 112
  %v1379 = vpop.permute.xlu0 %1378
  %1380 = vrot.lane.b32.xlu0 %v1345, 112
  %v1381 = vpop.permute.xlu0 %1380
  %1382 = vrot.lane.b32.xlu0 %v1346, 112
  %v1383 = vpop.permute.xlu0 %1382
  %1384 = vrot.lane.b32.xlu0 %v1347, 112
  %v1385 = vpop.permute.xlu0 %1384
  %1386 = vrot.lane.b32.xlu0 %v1348, 112
  %v1387 = vpop.permute.xlu0 %1386
  %1388 = vrot.lane.b32.xlu0 %v1349, 112
  %v1389 = vpop.permute.xlu0 %1388
  %1390 = vrot.lane.b32.xlu0 %v1350, 112
  %v1391 = vpop.permute.xlu0 %1390
  %1392 = vrot.lane.b32.xlu0 %v1351, 112
  %v1393 = vpop.permute.xlu0 %1392
  %1394 = vrot.lane.b32.xlu0 %v1352, 112
  %v1395 = vpop.permute.xlu0 %1394
  %1396 = vrot.lane.b32.xlu0 %v1353, 112
  %v1397 = vpop.permute.xlu0 %1396
  %1398 = vrot.lane.b32.xlu0 %v1354, 112
  %v1399 = vpop.permute.xlu0 %1398
  %1400 = vrot.lane.b32.xlu0 %v1355, 112
  %v1401 = vpop.permute.xlu0 %1400
  %1402 = vrot.lane.b32.xlu0 %v1356, 112
  %v1403 = vpop.permute.xlu0 %1402
  %1404 = vrot.lane.b32.xlu0 %v1357, 112
  %v1405 = vpop.permute.xlu0 %1404
  %vm1422 = vcmask 1048448
  %1423 = vst.msk [vmem:[#allocation3] sm:$0xff] %vm1422, %v1375
  %1424 = vst.msk [vmem:[#allocation3 + $0x10] sm:$0xff] %vm1422, %v1377
  %1425 = vst.msk [vmem:[#allocation3 + $0x20] sm:$0xff] %vm1422, %v1379
  %1426 = vst.msk [vmem:[#allocation3 + $0x30] sm:$0xff] %vm1422, %v1381
  %1427 = vst.msk [vmem:[#allocation3 + $0x40] sm:$0xff] %vm1422, %v1383
  %1428 = vst.msk [vmem:[#allocation3 + $0x50] sm:$0xff] %vm1422, %v1385
  %1429 = vst.msk [vmem:[#allocation3 + $0x60] sm:$0xff] %vm1422, %v1387
  %1430 = vst.msk [vmem:[#allocation3 + $0x70] sm:$0xff] %vm1422, %v1389
  %1431 = vst.msk [vmem:[#allocation3 + $0x80] sm:$0xff] %vm1422, %v1391
  %1432 = vst.msk [vmem:[#allocation3 + $0x90] sm:$0xff] %vm1422, %v1393
  %1433 = vst.msk [vmem:[#allocation3 + $0xa0] sm:$0xff] %vm1422, %v1395
  %1434 = vst.msk [vmem:[#allocation3 + $0xb0] sm:$0xff] %vm1422, %v1397
  %1435 = vst.msk [vmem:[#allocation3 + $0xc0] sm:$0xff] %vm1422, %v1399
  %1436 = vst.msk [vmem:[#allocation3 + $0xd0] sm:$0xff] %vm1422, %v1401
  %1437 = vst.msk [vmem:[#allocation3 + $0xe0] sm:$0xff] %vm1422, %v1403
  %1438 = vst.msk [vmem:[#allocation3 + $0xf0] sm:$0xff] %vm1422, %v1405
  %v1439 = vld [vmem:[%s513 + $0x2] sm:$0xff]
  %v1440 = vld [vmem:[%s513 + $0x12] sm:$0xff]
  %v1441 = vld [vmem:[%s513 + $0x22] sm:$0xff]
  %v1442 = vld [vmem:[%s513 + $0x32] sm:$0xff]
  %v1443 = vld [vmem:[%s513 + $0x42] sm:$0xff]
  %v1444 = vld [vmem:[%s513 + $0x52] sm:$0xff]
  %v1445 = vld [vmem:[%s513 + $0x62] sm:$0xff]
  %v1446 = vld [vmem:[%s513 + $0x72] sm:$0xff]
  %v1447 = vld [vmem:[%s513 + $0xa2] sm:$0xff]
  %v1448 = vld [vmem:[%s513 + $0xb2] sm:$0xff]
  %v1449 = vld [vmem:[%s513 + $0xc2] sm:$0xff]
  %v1450 = vld [vmem:[%s513 + $0xd2] sm:$0xff]
  %v1451 = vld [vmem:[%s513 + $0xe2] sm:$0xff]
  %v1452 = vld [vmem:[%s513 + $0xf2] sm:$0xff]
  %v1453 = vld [vmem:[%s513 + $0x102] sm:$0xff]
  %v1454 = vld [vmem:[%s513 + $0x112] sm:$0xff]
  %1455 = vst.msk [vmem:[#allocation3 + $0x8] sm:$0xff] %vm40, %v1439
  %1456 = vst.msk [vmem:[#allocation3 + $0x18] sm:$0xff] %vm40, %v1440
  %1457 = vst.msk [vmem:[#allocation3 + $0x28] sm:$0xff] %vm40, %v1441
  %1458 = vst.msk [vmem:[#allocation3 + $0x38] sm:$0xff] %vm40, %v1442
  %1459 = vst.msk [vmem:[#allocation3 + $0x48] sm:$0xff] %vm40, %v1443
  %1460 = vst.msk [vmem:[#allocation3 + $0x58] sm:$0xff] %vm40, %v1444
  %1461 = vst.msk [vmem:[#allocation3 + $0x68] sm:$0xff] %vm40, %v1445
  %1462 = vst.msk [vmem:[#allocation3 + $0x78] sm:$0xff] %vm40, %v1446
  %1463 = vst.msk [vmem:[#allocation3 + $0x88] sm:$0xff] %vm40, %v1447
  %1464 = vst.msk [vmem:[#allocation3 + $0x98] sm:$0xff] %vm40, %v1448
  %1465 = vst.msk [vmem:[#allocation3 + $0xa8] sm:$0xff] %vm40, %v1449
  %1466 = vst.msk [vmem:[#allocation3 + $0xb8] sm:$0xff] %vm40, %v1450
  %1467 = vst.msk [vmem:[#allocation3 + $0xc8] sm:$0xff] %vm40, %v1451
  %1468 = vst.msk [vmem:[#allocation3 + $0xd8] sm:$0xff] %vm40, %v1452
  %1469 = vst.msk [vmem:[#allocation3 + $0xe8] sm:$0xff] %vm40, %v1453
  %1470 = vst.msk [vmem:[#allocation3 + $0xf8] sm:$0xff] %vm40, %v1454
  %v1471 = vld [vmem:[#allocation3] sm:$0xff]
  %v1472 = vld [vmem:[#allocation3 + $0x8] sm:$0xff]
  %v1473 = vld [vmem:[#allocation3 + $0x10] sm:$0xff]
  %v1474 = vld [vmem:[#allocation3 + $0x18] sm:$0xff]
  %v1475 = vld [vmem:[#allocation3 + $0x20] sm:$0xff]
  %v1476 = vld [vmem:[#allocation3 + $0x28] sm:$0xff]
  %v1477 = vld [vmem:[#allocation3 + $0x30] sm:$0xff]
  %v1478 = vld [vmem:[#allocation3 + $0x38] sm:$0xff]
  %v1479 = vld [vmem:[#allocation3 + $0x40] sm:$0xff]
  %v1480 = vld [vmem:[#allocation3 + $0x48] sm:$0xff]
  %v1481 = vld [vmem:[#allocation3 + $0x50] sm:$0xff]
  %v1482 = vld [vmem:[#allocation3 + $0x58] sm:$0xff]
  %v1483 = vld [vmem:[#allocation3 + $0x60] sm:$0xff]
  %v1484 = vld [vmem:[#allocation3 + $0x68] sm:$0xff]
  %v1485 = vld [vmem:[#allocation3 + $0x70] sm:$0xff]
  %v1486 = vld [vmem:[#allocation3 + $0x78] sm:$0xff]
  %v1487 = vld [vmem:[#allocation3 + $0x80] sm:$0xff]
  %v1488 = vld [vmem:[#allocation3 + $0x88] sm:$0xff]
  %v1489 = vld [vmem:[#allocation3 + $0x90] sm:$0xff]
  %v1490 = vld [vmem:[#allocation3 + $0x98] sm:$0xff]
  %v1491 = vld [vmem:[#allocation3 + $0xa0] sm:$0xff]
  %v1492 = vld [vmem:[#allocation3 + $0xa8] sm:$0xff]
  %v1493 = vld [vmem:[#allocation3 + $0xb0] sm:$0xff]
  %v1494 = vld [vmem:[#allocation3 + $0xb8] sm:$0xff]
  %v1495 = vld [vmem:[#allocation3 + $0xc0] sm:$0xff]
  %v1496 = vld [vmem:[#allocation3 + $0xc8] sm:$0xff]
  %v1497 = vld [vmem:[#allocation3 + $0xd0] sm:$0xff]
  %v1498 = vld [vmem:[#allocation3 + $0xd8] sm:$0xff]
  %v1499 = vld [vmem:[#allocation3 + $0xe0] sm:$0xff]
  %v1500 = vld [vmem:[#allocation3 + $0xe8] sm:$0xff]
  %v1501 = vld [vmem:[#allocation3 + $0xf0] sm:$0xff]
  %v1502 = vld [vmem:[#allocation3 + $0xf8] sm:$0xff]
  %v1503 = vld [vmem:[%s3] sm:$0xff]
  %v1504 = vld [vmem:[%s3 + $0x8] sm:$0xff]
  %v1505 = vld [vmem:[%s3 + $0x10] sm:$0xff]
  %v1506 = vld [vmem:[%s3 + $0x18] sm:$0xff]
  %v1507 = vld [vmem:[%s3 + $0x20] sm:$0xff]
  %v1508 = vld [vmem:[%s3 + $0x28] sm:$0xff]
  %v1509 = vld [vmem:[%s3 + $0x30] sm:$0xff]
  %v1510 = vld [vmem:[%s3 + $0x38] sm:$0xff]
  %v1511 = vld [vmem:[%s3 + $0x40] sm:$0xff]
  %v1512 = vld [vmem:[%s3 + $0x48] sm:$0xff]
  %v1513 = vld [vmem:[%s3 + $0x50] sm:$0xff]
  %v1514 = vld [vmem:[%s3 + $0x58] sm:$0xff]
  %v1515 = vld [vmem:[%s3 + $0x60] sm:$0xff]
  %v1516 = vld [vmem:[%s3 + $0x68] sm:$0xff]
  %v1517 = vld [vmem:[%s3 + $0x70] sm:$0xff]
  %v1518 = vld [vmem:[%s3 + $0x78] sm:$0xff]
  %v1519 = vld [vmem:[%s3 + $0x80] sm:$0xff]
  %v1520 = vld [vmem:[%s3 + $0x88] sm:$0xff]
  %v1521 = vld [vmem:[%s4] sm:$0x1]
  %v1523 = vlaneseq
  %v1524 = vshrl.u32 %v1523, 7
  %v1525 = vsub.s32 0, %v1524
  %v1526 = vrot.slane %v1521, %v1525
  %v1529 = vsel %vm40, %v1472, 0
  %v1532 = vsel %vm40, %v1474, 0
  %v1535 = vsel %vm40, %v1476, 0
  %v1538 = vsel %vm40, %v1478, 0
  %v1541 = vsel %vm40, %v1480, 0
  %v1544 = vsel %vm40, %v1482, 0
  %v1547 = vsel %vm40, %v1484, 0
  %v1550 = vsel %vm40, %v1486, 0
  %v1553 = vsel %vm40, %v1488, 0
  %v1556 = vsel %vm40, %v1490, 0
  %v1559 = vsel %vm40, %v1492, 0
  %v1562 = vsel %vm40, %v1494, 0
  %v1565 = vsel %vm40, %v1496, 0
  %v1568 = vsel %vm40, %v1498, 0
  %v1571 = vsel %vm40, %v1500, 0
  %v1574 = vsel %vm40, %v1502, 0
  %1576 = vmatprep.subr.mxu0 0.0
  %1577 = vmatpush1.msra.mxu0 %v1518
  %1578 = vmatprep.subr.mxu0 0.0
  %1579 = vmatpush1.msra.mxu0 %v1517
  %1580 = vmatprep.subr.mxu0 0.0
  %1581 = vmatpush1.msra.mxu0 %v1516
  %1582 = vmatprep.subr.mxu0 0.0
  %1583 = vmatpush1.msra.mxu0 %v1515
  %1584 = vmatprep.subr.mxu0 0.0
  %1585 = vmatpush1.msra.mxu0 %v1514
  %1586 = vmatprep.subr.mxu0 0.0
  %1587 = vmatpush1.msra.mxu0 %v1513
  %1588 = vmatprep.subr.mxu0 0.0
  %1589 = vmatpush1.msra.mxu0 %v1512
  %1590 = vmatprep.subr.mxu0 0.0
  %1591 = vmatpush1.msra.mxu0 %v1511
  %1592 = vmatprep.subr.mxu0 0.0
  %1593 = vmatpush1.msra.mxu0 %v1510
  %1594 = vmatprep.subr.mxu0 0.0
  %1595 = vmatpush1.msra.mxu0 %v1509
  %1596 = vmatprep.subr.mxu0 0.0
  %1597 = vmatpush1.msra.mxu0 %v1508
  %1598 = vmatprep.subr.mxu0 0.0
  %1599 = vmatpush1.msra.mxu0 %v1507
  %1600 = vmatprep.subr.mxu0 0.0
  %1601 = vmatpush1.msra.mxu0 %v1506
  %1602 = vmatprep.subr.mxu0 0.0
  %1603 = vmatpush1.msra.mxu0 %v1505
  %1604 = vmatprep.subr.mxu0 0.0
  %1605 = vmatpush1.msra.mxu0 %v1504
  %1606 = vmatprep.subr.mxu0 0.0
  %1607 = vmatpush1.msra.mxu0 %v1503
  %1608 = vmatprep.subr.mxu0 0.0
  %1609 = vmatpush2.msra.mxu0 0.0
  %1610 = vmatprep.subr.mxu0 0.0
  %1611 = vmatpush2.msra.mxu0 0.0
  %1612 = vmatprep.subr.mxu0 0.0
  %1613 = vmatpush2.msra.mxu0 0.0
  %1614 = vmatprep.subr.mxu0 0.0
  %1615 = vmatpush2.msra.mxu0 0.0
  %1616 = vmatprep.subr.mxu0 0.0
  %1617 = vmatpush2.msra.mxu0 0.0
  %1618 = vmatprep.subr.mxu0 0.0
  %1619 = vmatpush2.msra.mxu0 0.0
  %1620 = vmatprep.subr.mxu0 0.0
  %1621 = vmatpush2.msra.mxu0 0.0
  %1622 = vmatprep.subr.mxu0 0.0
  %1623 = vmatpush2.msra.mxu0 0.0
  %1624 = vmatprep.subr.mxu0 0.0
  %1625 = vmatpush2.msra.mxu0 0.0
  %1626 = vmatprep.subr.mxu0 0.0
  %1627 = vmatpush2.msra.mxu0 0.0
  %1628 = vmatprep.subr.mxu0 0.0
  %1629 = vmatpush2.msra.mxu0 0.0
  %1630 = vmatprep.subr.mxu0 0.0
  %1631 = vmatpush2.msra.mxu0 0.0
  %1632 = vmatprep.subr.mxu0 0.0
  %1633 = vmatpush2.msra.mxu0 0.0
  %1634 = vmatprep.subr.mxu0 0.0
  %1635 = vmatpush2.msra.mxu0 0.0
  %1636 = vmatprep.subr.mxu0 0.0
  %1637 = vmatpush2.msra.mxu0 %v1520
  %1638 = vmatprep.subr.mxu0 0.0
  %1639 = vmatpush2.msra.mxu0 %v1519
  %1640 = vmatprep.mubr.f32.mxu0 %v1529
  %1641 = vmatmul.mubr.f32.gmra.mxu0 %v1471
  %v1642 = vpop.f32.mrf.mxu0
  %v1643 = vadd.f32 %v1526, %v1642
  %v1644 = vpop.f32.mrf.mxu0
  %1645 = vmatprep.mubr.f32.mxu0 %v1532
  %1646 = vmatmul.mubr.f32.gmra.mxu0 %v1473
  %v1647 = vpop.f32.mrf.mxu0
  %v1648 = vadd.f32 %v1526, %v1647
  %v1649 = vpop.f32.mrf.mxu0
  %1650 = vmatprep.mubr.f32.mxu0 %v1535
  %1651 = vmatmul.mubr.f32.gmra.mxu0 %v1475
  %v1652 = vpop.f32.mrf.mxu0
  %v1653 = vadd.f32 %v1526, %v1652
  %v1654 = vpop.f32.mrf.mxu0
  %1655 = vmatprep.mubr.f32.mxu0 %v1538
  %1656 = vmatmul.mubr.f32.gmra.mxu0 %v1477
  %v1657 = vpop.f32.mrf.mxu0
  %v1658 = vadd.f32 %v1526, %v1657
  %v1659 = vpop.f32.mrf.mxu0
  %1660 = vmatprep.mubr.f32.mxu0 %v1541
  %1661 = vmatmul.mubr.f32.gmra.mxu0 %v1479
  %v1662 = vpop.f32.mrf.mxu0
  %v1663 = vadd.f32 %v1526, %v1662
  %v1664 = vpop.f32.mrf.mxu0
  %1665 = vmatprep.mubr.f32.mxu0 %v1544
  %1666 = vmatmul.mubr.f32.gmra.mxu0 %v1481
  %v1667 = vpop.f32.mrf.mxu0
  %v1668 = vadd.f32 %v1526, %v1667
  %v1669 = vpop.f32.mrf.mxu0
  %1670 = vmatprep.mubr.f32.mxu0 %v1547
  %1671 = vmatmul.mubr.f32.gmra.mxu0 %v1483
  %v1672 = vpop.f32.mrf.mxu0
  %v1673 = vadd.f32 %v1526, %v1672
  %v1674 = vpop.f32.mrf.mxu0
  %1675 = vmatprep.mubr.f32.mxu0 %v1550
  %1676 = vmatmul.mubr.f32.gmra.mxu0 %v1485
  %v1677 = vpop.f32.mrf.mxu0
  %v1678 = vadd.f32 %v1526, %v1677
  %v1679 = vpop.f32.mrf.mxu0
  %1680 = vmatprep.mubr.f32.mxu0 %v1553
  %1681 = vmatmul.mubr.f32.gmra.mxu0 %v1487
  %v1682 = vpop.f32.mrf.mxu0
  %v1683 = vadd.f32 %v1526, %v1682
  %v1684 = vpop.f32.mrf.mxu0
  %1685 = vmatprep.mubr.f32.mxu0 %v1556
  %1686 = vmatmul.mubr.f32.gmra.mxu0 %v1489
  %v1687 = vpop.f32.mrf.mxu0
  %v1688 = vadd.f32 %v1526, %v1687
  %v1689 = vpop.f32.mrf.mxu0
  %1690 = vmatprep.mubr.f32.mxu0 %v1559
  %1691 = vmatmul.mubr.f32.gmra.mxu0 %v1491
  %v1692 = vpop.f32.mrf.mxu0
  %v1693 = vadd.f32 %v1526, %v1692
  %v1694 = vpop.f32.mrf.mxu0
  %1695 = vmatprep.mubr.f32.mxu0 %v1562
  %1696 = vmatmul.mubr.f32.gmra.mxu0 %v1493
  %v1697 = vpop.f32.mrf.mxu0
  %v1698 = vadd.f32 %v1526, %v1697
  %v1699 = vpop.f32.mrf.mxu0
  %1700 = vmatprep.mubr.f32.mxu0 %v1565
  %1701 = vmatmul.mubr.f32.gmra.mxu0 %v1495
  %v1702 = vpop.f32.mrf.mxu0
  %v1703 = vadd.f32 %v1526, %v1702
  %v1704 = vpop.f32.mrf.mxu0
  %1705 = vmatprep.mubr.f32.mxu0 %v1568
  %1706 = vmatmul.mubr.f32.gmra.mxu0 %v1497
  %v1707 = vpop.f32.mrf.mxu0
  %v1708 = vadd.f32 %v1526, %v1707
  %v1709 = vpop.f32.mrf.mxu0
  %1710 = vmatprep.mubr.f32.mxu0 %v1571
  %1711 = vmatmul.mubr.f32.gmra.mxu0 %v1499
  %v1712 = vpop.f32.mrf.mxu0
  %v1713 = vadd.f32 %v1526, %v1712
  %v1714 = vpop.f32.mrf.mxu0
  %1715 = vmatprep.mubr.f32.mxu0 %v1574
  %1716 = vmatmul.mubr.f32.gmra.mxu0 %v1501
  %v1717 = vpop.f32.mrf.mxu0
  %v1718 = vadd.f32 %v1526, %v1717
  %v1719 = vpop.f32.mrf.mxu0
  %1720 = vdwg.mxu0
  %v1721 = vmax.f32 %v1643, 0.0
  %v1722 = vmax.f32 %v1648, 0.0
  %v1723 = vmax.f32 %v1653, 0.0
  %v1724 = vmax.f32 %v1658, 0.0
  %v1725 = vmax.f32 %v1663, 0.0
  %v1726 = vmax.f32 %v1668, 0.0
  %v1727 = vmax.f32 %v1673, 0.0
  %v1728 = vmax.f32 %v1678, 0.0
  %v1729 = vmax.f32 %v1683, 0.0
  %v1730 = vmax.f32 %v1688, 0.0
  %v1731 = vmax.f32 %v1693, 0.0
  %v1732 = vmax.f32 %v1698, 0.0
  %v1733 = vmax.f32 %v1703, 0.0
  %v1734 = vmax.f32 %v1708, 0.0
  %v1735 = vmax.f32 %v1713, 0.0
  %v1736 = vmax.f32 %v1718, 0.0
  %v1740 = vunpack.c.l.s4 1983009808
  %v1741 = vunpack.c.0.s8 %v1740
  %v1742 = vlaneseq
  %v1743 = vshrl.u32 %v1742, 7
  %v1744 = vsub.s32 %v1741, %v1743
  %v1745 = vrot.slane %v1721, %v1744
  %v1747 = vunpack.c.l.s4 1983009808
  %v1748 = vunpack.c.0.s8 %v1747
  %v1749 = vlaneseq
  %v1750 = vshrl.u32 %v1749, 7
  %v1751 = vsub.s32 %v1748, %v1750
  %v1752 = vrot.slane %v1729, %v1751
  %vm1753 = vcmask 1044484
  %v1754 = vsel %vm1753, %v1745, %v1745
  %vm1755 = vcmask 1046534
  %v1756 = vsel %vm1755, %v1745, %v1754
  %v1757 = vrot.slane %v1752, 7
  %vm1758 = vcmask 1041409
  %v1759 = vsel %vm1758, %v1757, %v1756
  %vm1760 = vcmask 1043459
  %v1761 = vsel %vm1760, %v1757, %v1759
  %vm1762 = vcmask 1045509
  %v1763 = vsel %vm1762, %v1757, %v1761
  %vm1764 = vcmask 1047559
  %v1765 = vsel %vm1764, %v1757, %v1763
  %vm1767 = vcmask 254976
  %1768 = vst.msk [vmem:[#allocation4] sm:$0x3] %vm1767, %v1765
  %v1769 = vrot.slane %v1745, 1
  %v1770 = vsel %vm1753, %v1769, %v1769
  %v1771 = vsel %vm1755, %v1769, %v1770
  %v1772 = vsel %vm1758, %v1752, %v1771
  %v1773 = vsel %vm1760, %v1752, %v1772
  %v1774 = vsel %vm1762, %v1752, %v1773
  %v1775 = vsel %vm1764, %v1752, %v1774
  %1776 = vrot.lane.b32.xlu0 %v1775, 32
  %v1777 = vpop.permute.xlu0 %1776
  %vm1779 = vcmask 517376
  %1780 = vst.msk [vmem:[#allocation4] sm:$0x3] %vm1779, %v1777
  %v1781 = vcombine.high %v1745, %v1745
  %v1782 = vcombine.high %v1752, %v1752
  %v1783 = vsel %vm1753, %v1781, %v1781
  %v1784 = vsel %vm1755, %v1781, %v1783
  %v1785 = vrot.slane %v1782, 7
  %v1786 = vsel %vm1758, %v1785, %v1784
  %v1787 = vsel %vm1760, %v1785, %v1786
  %v1788 = vsel %vm1762, %v1785, %v1787
  %v1789 = vsel %vm1764, %v1785, %v1788
  %1790 = vrot.lane.b32.xlu0 %v1789, 64
  %v1791 = vpop.permute.xlu0 %1790
  %vm1793 = vcmask 779776
  %1794 = vst.msk [vmem:[#allocation4] sm:$0x3] %vm1793, %v1791
  %v1795 = vrot.slane %v1781, 1
  %v1796 = vsel %vm1753, %v1795, %v1795
  %v1797 = vsel %vm1755, %v1795, %v1796
  %v1798 = vsel %vm1758, %v1782, %v1797
  %v1799 = vsel %vm1760, %v1782, %v1798
  %v1800 = vsel %vm1762, %v1782, %v1799
  %v1801 = vsel %vm1764, %v1782, %v1800
  %1802 = vrot.lane.b32.xlu0 %v1801, 96
  %v1803 = vpop.permute.xlu0 %1802
  %vm1805 = vcmask 1042176
  %1806 = vst.msk [vmem:[#allocation4] sm:$0x3] %vm1805, %v1803
  %v1807 = vcombine.high %v1721, %v1721
  %v1809 = vunpack.c.l.s4 1983009808
  %v1810 = vunpack.c.0.s8 %v1809
  %v1811 = vlaneseq
  %v1812 = vshrl.u32 %v1811, 7
  %v1813 = vsub.s32 %v1810, %v1812
  %v1814 = vrot.slane %v1807, %v1813
  %v1815 = vcombine.high %v1729, %v1729
  %v1817 = vunpack.c.l.s4 1983009808
  %v1818 = vunpack.c.0.s8 %v1817
  %v1819 = vlaneseq
  %v1820 = vshrl.u32 %v1819, 7
  %v1821 = vsub.s32 %v1818, %v1820
  %v1822 = vrot.slane %v1815, %v1821
  %v1823 = vsel %vm1753, %v1814, %v1814
  %v1824 = vsel %vm1755, %v1814, %v1823
  %v1825 = vrot.slane %v1822, 7
  %v1826 = vsel %vm1758, %v1825, %v1824
  %v1827 = vsel %vm1760, %v1825, %v1826
  %v1828 = vsel %vm1762, %v1825, %v1827
  %v1829 = vsel %vm1764, %v1825, %v1828
  %1831 = vst.msk [vmem:[#allocation4 + $0x2] sm:$0x3] %vm1767, %v1829
  %v1832 = vrot.slane %v1814, 1
  %v1833 = vsel %vm1753, %v1832, %v1832
  %v1834 = vsel %vm1755, %v1832, %v1833
  %v1835 = vsel %vm1758, %v1822, %v1834
  %v1836 = vsel %vm1760, %v1822, %v1835
  %v1837 = vsel %vm1762, %v1822, %v1836
  %v1838 = vsel %vm1764, %v1822, %v1837
  %1839 = vrot.lane.b32.xlu0 %v1838, 32
  %v1840 = vpop.permute.xlu0 %1839
  %1842 = vst.msk [vmem:[#allocation4 + $0x2] sm:$0x3] %vm1779, %v1840
  %v1843 = vcombine.high %v1814, %v1814
  %v1844 = vcombine.high %v1822, %v1822
  %v1845 = vsel %vm1753, %v1843, %v1843
  %v1846 = vsel %vm1755, %v1843, %v1845
  %v1847 = vrot.slane %v1844, 7
  %v1848 = vsel %vm1758, %v1847, %v1846
  %v1849 = vsel %vm1760, %v1847, %v1848
  %v1850 = vsel %vm1762, %v1847, %v1849
  %v1851 = vsel %vm1764, %v1847, %v1850
  %1852 = vrot.lane.b32.xlu0 %v1851, 64
  %v1853 = vpop.permute.xlu0 %1852
  %1855 = vst.msk [vmem:[#allocation4 + $0x2] sm:$0x3] %vm1793, %v1853
  %v1856 = vrot.slane %v1843, 1
  %v1857 = vsel %vm1753, %v1856, %v1856
  %v1858 = vsel %vm1755, %v1856, %v1857
  %v1859 = vsel %vm1758, %v1844, %v1858
  %v1860 = vsel %vm1760, %v1844, %v1859
  %v1861 = vsel %vm1762, %v1844, %v1860
  %v1862 = vsel %vm1764, %v1844, %v1861
  %1863 = vrot.lane.b32.xlu0 %v1862, 96
  %v1864 = vpop.permute.xlu0 %1863
  %1866 = vst.msk [vmem:[#allocation4 + $0x2] sm:$0x3] %vm1805, %v1864
  %v1870 = vunpack.c.l.s4 1983009808
  %v1871 = vunpack.c.0.s8 %v1870
  %v1872 = vlaneseq
  %v1873 = vshrl.u32 %v1872, 7
  %v1874 = vsub.s32 %v1871, %v1873
  %v1875 = vrot.slane %v1722, %v1874
  %v1877 = vunpack.c.l.s4 1983009808
  %v1878 = vunpack.c.0.s8 %v1877
  %v1879 = vlaneseq
  %v1880 = vshrl.u32 %v1879, 7
  %v1881 = vsub.s32 %v1878, %v1880
  %v1882 = vrot.slane %v1730, %v1881
  %v1883 = vsel %vm1753, %v1875, %v1875
  %v1884 = vsel %vm1755, %v1875, %v1883
  %v1885 = vrot.slane %v1882, 7
  %v1886 = vsel %vm1758, %v1885, %v1884
  %v1887 = vsel %vm1760, %v1885, %v1886
  %v1888 = vsel %vm1762, %v1885, %v1887
  %v1889 = vsel %vm1764, %v1885, %v1888
  %1891 = vst.msk [vmem:[#allocation4 + $0x4] sm:$0x3] %vm1767, %v1889
  %v1892 = vrot.slane %v1875, 1
  %v1893 = vsel %vm1753, %v1892, %v1892
  %v1894 = vsel %vm1755, %v1892, %v1893
  %v1895 = vsel %vm1758, %v1882, %v1894
  %v1896 = vsel %vm1760, %v1882, %v1895
  %v1897 = vsel %vm1762, %v1882, %v1896
  %v1898 = vsel %vm1764, %v1882, %v1897
  %1899 = vrot.lane.b32.xlu0 %v1898, 32
  %v1900 = vpop.permute.xlu0 %1899
  %1902 = vst.msk [vmem:[#allocation4 + $0x4] sm:$0x3] %vm1779, %v1900
  %v1903 = vcombine.high %v1875, %v1875
  %v1904 = vcombine.high %v1882, %v1882
  %v1905 = vsel %vm1753, %v1903, %v1903
  %v1906 = vsel %vm1755, %v1903, %v1905
  %v1907 = vrot.slane %v1904, 7
  %v1908 = vsel %vm1758, %v1907, %v1906
  %v1909 = vsel %vm1760, %v1907, %v1908
  %v1910 = vsel %vm1762, %v1907, %v1909
  %v1911 = vsel %vm1764, %v1907, %v1910
  %1912 = vrot.lane.b32.xlu0 %v1911, 64
  %v1913 = vpop.permute.xlu0 %1912
  %1915 = vst.msk [vmem:[#allocation4 + $0x4] sm:$0x3] %vm1793, %v1913
  %v1916 = vrot.slane %v1903, 1
  %v1917 = vsel %vm1753, %v1916, %v1916
  %v1918 = vsel %vm1755, %v1916, %v1917
  %v1919 = vsel %vm1758, %v1904, %v1918
  %v1920 = vsel %vm1760, %v1904, %v1919
  %v1921 = vsel %vm1762, %v1904, %v1920
  %v1922 = vsel %vm1764, %v1904, %v1921
  %1923 = vrot.lane.b32.xlu0 %v1922, 96
  %v1924 = vpop.permute.xlu0 %1923
  %1926 = vst.msk [vmem:[#allocation4 + $0x4] sm:$0x3] %vm1805, %v1924
  %v1927 = vcombine.high %v1722, %v1722
  %v1929 = vunpack.c.l.s4 1983009808
  %v1930 = vunpack.c.0.s8 %v1929
  %v1931 = vlaneseq
  %v1932 = vshrl.u32 %v1931, 7
  %v1933 = vsub.s32 %v1930, %v1932
  %v1934 = vrot.slane %v1927, %v1933
  %v1935 = vcombine.high %v1730, %v1730
  %v1937 = vunpack.c.l.s4 1983009808
  %v1938 = vunpack.c.0.s8 %v1937
  %v1939 = vlaneseq
  %v1940 = vshrl.u32 %v1939, 7
  %v1941 = vsub.s32 %v1938, %v1940
  %v1942 = vrot.slane %v1935, %v1941
  %v1943 = vsel %vm1753, %v1934, %v1934
  %v1944 = vsel %vm1755, %v1934, %v1943
  %v1945 = vrot.slane %v1942, 7
  %v1946 = vsel %vm1758, %v1945, %v1944
  %v1947 = vsel %vm1760, %v1945, %v1946
  %v1948 = vsel %vm1762, %v1945, %v1947
  %v1949 = vsel %vm1764, %v1945, %v1948
  %1951 = vst.msk [vmem:[#allocation4 + $0x6] sm:$0x3] %vm1767, %v1949
  %v1952 = vrot.slane %v1934, 1
  %v1953 = vsel %vm1753, %v1952, %v1952
  %v1954 = vsel %vm1755, %v1952, %v1953
  %v1955 = vsel %vm1758, %v1942, %v1954
  %v1956 = vsel %vm1760, %v1942, %v1955
  %v1957 = vsel %vm1762, %v1942, %v1956
  %v1958 = vsel %vm1764, %v1942, %v1957
  %1959 = vrot.lane.b32.xlu0 %v1958, 32
  %v1960 = vpop.permute.xlu0 %1959
  %1962 = vst.msk [vmem:[#allocation4 + $0x6] sm:$0x3] %vm1779, %v1960
  %v1963 = vcombine.high %v1934, %v1934
  %v1964 = vcombine.high %v1942, %v1942
  %v1965 = vsel %vm1753, %v1963, %v1963
  %v1966 = vsel %vm1755, %v1963, %v1965
  %v1967 = vrot.slane %v1964, 7
  %v1968 = vsel %vm1758, %v1967, %v1966
  %v1969 = vsel %vm1760, %v1967, %v1968
  %v1970 = vsel %vm1762, %v1967, %v1969
  %v1971 = vsel %vm1764, %v1967, %v1970
  %1972 = vrot.lane.b32.xlu0 %v1971, 64
  %v1973 = vpop.permute.xlu0 %1972
  %1975 = vst.msk [vmem:[#allocation4 + $0x6] sm:$0x3] %vm1793, %v1973
  %v1976 = vrot.slane %v1963, 1
  %v1977 = vsel %vm1753, %v1976, %v1976
  %v1978 = vsel %vm1755, %v1976, %v1977
  %v1979 = vsel %vm1758, %v1964, %v1978
  %v1980 = vsel %vm1760, %v1964, %v1979
  %v1981 = vsel %vm1762, %v1964, %v1980
  %v1982 = vsel %vm1764, %v1964, %v1981
  %1983 = vrot.lane.b32.xlu0 %v1982, 96
  %v1984 = vpop.permute.xlu0 %1983
  %1986 = vst.msk [vmem:[#allocation4 + $0x6] sm:$0x3] %vm1805, %v1984
  %v1990 = vunpack.c.l.s4 1983009808
  %v1991 = vunpack.c.0.s8 %v1990
  %v1992 = vlaneseq
  %v1993 = vshrl.u32 %v1992, 7
  %v1994 = vsub.s32 %v1991, %v1993
  %v1995 = vrot.slane %v1723, %v1994
  %v1997 = vunpack.c.l.s4 1983009808
  %v1998 = vunpack.c.0.s8 %v1997
  %v1999 = vlaneseq
  %v2000 = vshrl.u32 %v1999, 7
  %v2001 = vsub.s32 %v1998, %v2000
  %v2002 = vrot.slane %v1731, %v2001
  %v2003 = vsel %vm1753, %v1995, %v1995
  %v2004 = vsel %vm1755, %v1995, %v2003
  %v2005 = vrot.slane %v2002, 7
  %v2006 = vsel %vm1758, %v2005, %v2004
  %v2007 = vsel %vm1760, %v2005, %v2006
  %v2008 = vsel %vm1762, %v2005, %v2007
  %v2009 = vsel %vm1764, %v2005, %v2008
  %2011 = vst.msk [vmem:[#allocation4 + $0x8] sm:$0x3] %vm1767, %v2009
  %v2012 = vrot.slane %v1995, 1
  %v2013 = vsel %vm1753, %v2012, %v2012
  %v2014 = vsel %vm1755, %v2012, %v2013
  %v2015 = vsel %vm1758, %v2002, %v2014
  %v2016 = vsel %vm1760, %v2002, %v2015
  %v2017 = vsel %vm1762, %v2002, %v2016
  %v2018 = vsel %vm1764, %v2002, %v2017
  %2019 = vrot.lane.b32.xlu0 %v2018, 32
  %v2020 = vpop.permute.xlu0 %2019
  %2022 = vst.msk [vmem:[#allocation4 + $0x8] sm:$0x3] %vm1779, %v2020
  %v2023 = vcombine.high %v1995, %v1995
  %v2024 = vcombine.high %v2002, %v2002
  %v2025 = vsel %vm1753, %v2023, %v2023
  %v2026 = vsel %vm1755, %v2023, %v2025
  %v2027 = vrot.slane %v2024, 7
  %v2028 = vsel %vm1758, %v2027, %v2026
  %v2029 = vsel %vm1760, %v2027, %v2028
  %v2030 = vsel %vm1762, %v2027, %v2029
  %v2031 = vsel %vm1764, %v2027, %v2030
  %2032 = vrot.lane.b32.xlu0 %v2031, 64
  %v2033 = vpop.permute.xlu0 %2032
  %2035 = vst.msk [vmem:[#allocation4 + $0x8] sm:$0x3] %vm1793, %v2033
  %v2036 = vrot.slane %v2023, 1
  %v2037 = vsel %vm1753, %v2036, %v2036
  %v2038 = vsel %vm1755, %v2036, %v2037
  %v2039 = vsel %vm1758, %v2024, %v2038
  %v2040 = vsel %vm1760, %v2024, %v2039
  %v2041 = vsel %vm1762, %v2024, %v2040
  %v2042 = vsel %vm1764, %v2024, %v2041
  %2043 = vrot.lane.b32.xlu0 %v2042, 96
  %v2044 = vpop.permute.xlu0 %2043
  %2046 = vst.msk [vmem:[#allocation4 + $0x8] sm:$0x3] %vm1805, %v2044
  %v2047 = vcombine.high %v1723, %v1723
  %v2049 = vunpack.c.l.s4 1983009808
  %v2050 = vunpack.c.0.s8 %v2049
  %v2051 = vlaneseq
  %v2052 = vshrl.u32 %v2051, 7
  %v2053 = vsub.s32 %v2050, %v2052
  %v2054 = vrot.slane %v2047, %v2053
  %v2055 = vcombine.high %v1731, %v1731
  %v2057 = vunpack.c.l.s4 1983009808
  %v2058 = vunpack.c.0.s8 %v2057
  %v2059 = vlaneseq
  %v2060 = vshrl.u32 %v2059, 7
  %v2061 = vsub.s32 %v2058, %v2060
  %v2062 = vrot.slane %v2055, %v2061
  %v2063 = vsel %vm1753, %v2054, %v2054
  %v2064 = vsel %vm1755, %v2054, %v2063
  %v2065 = vrot.slane %v2062, 7
  %v2066 = vsel %vm1758, %v2065, %v2064
  %v2067 = vsel %vm1760, %v2065, %v2066
  %v2068 = vsel %vm1762, %v2065, %v2067
  %v2069 = vsel %vm1764, %v2065, %v2068
  %2071 = vst.msk [vmem:[#allocation4 + $0xa] sm:$0x3] %vm1767, %v2069
  %v2072 = vrot.slane %v2054, 1
  %v2073 = vsel %vm1753, %v2072, %v2072
  %v2074 = vsel %vm1755, %v2072, %v2073
  %v2075 = vsel %vm1758, %v2062, %v2074
  %v2076 = vsel %vm1760, %v2062, %v2075
  %v2077 = vsel %vm1762, %v2062, %v2076
  %v2078 = vsel %vm1764, %v2062, %v2077
  %2079 = vrot.lane.b32.xlu0 %v2078, 32
  %v2080 = vpop.permute.xlu0 %2079
  %2082 = vst.msk [vmem:[#allocation4 + $0xa] sm:$0x3] %vm1779, %v2080
  %v2083 = vcombine.high %v2054, %v2054
  %v2084 = vcombine.high %v2062, %v2062
  %v2085 = vsel %vm1753, %v2083, %v2083
  %v2086 = vsel %vm1755, %v2083, %v2085
  %v2087 = vrot.slane %v2084, 7
  %v2088 = vsel %vm1758, %v2087, %v2086
  %v2089 = vsel %vm1760, %v2087, %v2088
  %v2090 = vsel %vm1762, %v2087, %v2089
  %v2091 = vsel %vm1764, %v2087, %v2090
  %2092 = vrot.lane.b32.xlu0 %v2091, 64
  %v2093 = vpop.permute.xlu0 %2092
  %2095 = vst.msk [vmem:[#allocation4 + $0xa] sm:$0x3] %vm1793, %v2093
  %v2096 = vrot.slane %v2083, 1
  %v2097 = vsel %vm1753, %v2096, %v2096
  %v2098 = vsel %vm1755, %v2096, %v2097
  %v2099 = vsel %vm1758, %v2084, %v2098
  %v2100 = vsel %vm1760, %v2084, %v2099
  %v2101 = vsel %vm1762, %v2084, %v2100
  %v2102 = vsel %vm1764, %v2084, %v2101
  %2103 = vrot.lane.b32.xlu0 %v2102, 96
  %v2104 = vpop.permute.xlu0 %2103
  %2106 = vst.msk [vmem:[#allocation4 + $0xa] sm:$0x3] %vm1805, %v2104
  %v2110 = vunpack.c.l.s4 1983009808
  %v2111 = vunpack.c.0.s8 %v2110
  %v2112 = vlaneseq
  %v2113 = vshrl.u32 %v2112, 7
  %v2114 = vsub.s32 %v2111, %v2113
  %v2115 = vrot.slane %v1724, %v2114
  %v2117 = vunpack.c.l.s4 1983009808
  %v2118 = vunpack.c.0.s8 %v2117
  %v2119 = vlaneseq
  %v2120 = vshrl.u32 %v2119, 7
  %v2121 = vsub.s32 %v2118, %v2120
  %v2122 = vrot.slane %v1732, %v2121
  %v2123 = vsel %vm1753, %v2115, %v2115
  %v2124 = vsel %vm1755, %v2115, %v2123
  %v2125 = vrot.slane %v2122, 7
  %v2126 = vsel %vm1758, %v2125, %v2124
  %v2127 = vsel %vm1760, %v2125, %v2126
  %v2128 = vsel %vm1762, %v2125, %v2127
  %v2129 = vsel %vm1764, %v2125, %v2128
  %2131 = vst.msk [vmem:[#allocation4 + $0xc] sm:$0x3] %vm1767, %v2129
  %v2132 = vrot.slane %v2115, 1
  %v2133 = vsel %vm1753, %v2132, %v2132
  %v2134 = vsel %vm1755, %v2132, %v2133
  %v2135 = vsel %vm1758, %v2122, %v2134
  %v2136 = vsel %vm1760, %v2122, %v2135
  %v2137 = vsel %vm1762, %v2122, %v2136
  %v2138 = vsel %vm1764, %v2122, %v2137
  %2139 = vrot.lane.b32.xlu0 %v2138, 32
  %v2140 = vpop.permute.xlu0 %2139
  %2142 = vst.msk [vmem:[#allocation4 + $0xc] sm:$0x3] %vm1779, %v2140
  %v2143 = vcombine.high %v2115, %v2115
  %v2144 = vcombine.high %v2122, %v2122
  %v2145 = vsel %vm1753, %v2143, %v2143
  %v2146 = vsel %vm1755, %v2143, %v2145
  %v2147 = vrot.slane %v2144, 7
  %v2148 = vsel %vm1758, %v2147, %v2146
  %v2149 = vsel %vm1760, %v2147, %v2148
  %v2150 = vsel %vm1762, %v2147, %v2149
  %v2151 = vsel %vm1764, %v2147, %v2150
  %2152 = vrot.lane.b32.xlu0 %v2151, 64
  %v2153 = vpop.permute.xlu0 %2152
  %2155 = vst.msk [vmem:[#allocation4 + $0xc] sm:$0x3] %vm1793, %v2153
  %v2156 = vrot.slane %v2143, 1
  %v2157 = vsel %vm1753, %v2156, %v2156
  %v2158 = vsel %vm1755, %v2156, %v2157
  %v2159 = vsel %vm1758, %v2144, %v2158
  %v2160 = vsel %vm1760, %v2144, %v2159
  %v2161 = vsel %vm1762, %v2144, %v2160
  %v2162 = vsel %vm1764, %v2144, %v2161
  %2163 = vrot.lane.b32.xlu0 %v2162, 96
  %v2164 = vpop.permute.xlu0 %2163
  %2166 = vst.msk [vmem:[#allocation4 + $0xc] sm:$0x3] %vm1805, %v2164
  %v2167 = vcombine.high %v1724, %v1724
  %v2169 = vunpack.c.l.s4 1983009808
  %v2170 = vunpack.c.0.s8 %v2169
  %v2171 = vlaneseq
  %v2172 = vshrl.u32 %v2171, 7
  %v2173 = vsub.s32 %v2170, %v2172
  %v2174 = vrot.slane %v2167, %v2173
  %v2175 = vcombine.high %v1732, %v1732
  %v2177 = vunpack.c.l.s4 1983009808
  %v2178 = vunpack.c.0.s8 %v2177
  %v2179 = vlaneseq
  %v2180 = vshrl.u32 %v2179, 7
  %v2181 = vsub.s32 %v2178, %v2180
  %v2182 = vrot.slane %v2175, %v2181
  %v2183 = vsel %vm1753, %v2174, %v2174
  %v2184 = vsel %vm1755, %v2174, %v2183
  %v2185 = vrot.slane %v2182, 7
  %v2186 = vsel %vm1758, %v2185, %v2184
  %v2187 = vsel %vm1760, %v2185, %v2186
  %v2188 = vsel %vm1762, %v2185, %v2187
  %v2189 = vsel %vm1764, %v2185, %v2188
  %2191 = vst.msk [vmem:[#allocation4 + $0xe] sm:$0x3] %vm1767, %v2189
  %v2192 = vrot.slane %v2174, 1
  %v2193 = vsel %vm1753, %v2192, %v2192
  %v2194 = vsel %vm1755, %v2192, %v2193
  %v2195 = vsel %vm1758, %v2182, %v2194
  %v2196 = vsel %vm1760, %v2182, %v2195
  %v2197 = vsel %vm1762, %v2182, %v2196
  %v2198 = vsel %vm1764, %v2182, %v2197
  %2199 = vrot.lane.b32.xlu0 %v2198, 32
  %v2200 = vpop.permute.xlu0 %2199
  %2202 = vst.msk [vmem:[#allocation4 + $0xe] sm:$0x3] %vm1779, %v2200
  %v2203 = vcombine.high %v2174, %v2174
  %v2204 = vcombine.high %v2182, %v2182
  %v2205 = vsel %vm1753, %v2203, %v2203
  %v2206 = vsel %vm1755, %v2203, %v2205
  %v2207 = vrot.slane %v2204, 7
  %v2208 = vsel %vm1758, %v2207, %v2206
  %v2209 = vsel %vm1760, %v2207, %v2208
  %v2210 = vsel %vm1762, %v2207, %v2209
  %v2211 = vsel %vm1764, %v2207, %v2210
  %2212 = vrot.lane.b32.xlu0 %v2211, 64
  %v2213 = vpop.permute.xlu0 %2212
  %2215 = vst.msk [vmem:[#allocation4 + $0xe] sm:$0x3] %vm1793, %v2213
  %v2216 = vrot.slane %v2203, 1
  %v2217 = vsel %vm1753, %v2216, %v2216
  %v2218 = vsel %vm1755, %v2216, %v2217
  %v2219 = vsel %vm1758, %v2204, %v2218
  %v2220 = vsel %vm1760, %v2204, %v2219
  %v2221 = vsel %vm1762, %v2204, %v2220
  %v2222 = vsel %vm1764, %v2204, %v2221
  %2223 = vrot.lane.b32.xlu0 %v2222, 96
  %v2224 = vpop.permute.xlu0 %2223
  %2226 = vst.msk [vmem:[#allocation4 + $0xe] sm:$0x3] %vm1805, %v2224
  %v2230 = vunpack.c.l.s4 1983009808
  %v2231 = vunpack.c.0.s8 %v2230
  %v2232 = vlaneseq
  %v2233 = vshrl.u32 %v2232, 7
  %v2234 = vsub.s32 %v2231, %v2233
  %v2235 = vrot.slane %v1725, %v2234
  %v2237 = vunpack.c.l.s4 1983009808
  %v2238 = vunpack.c.0.s8 %v2237
  %v2239 = vlaneseq
  %v2240 = vshrl.u32 %v2239, 7
  %v2241 = vsub.s32 %v2238, %v2240
  %v2242 = vrot.slane %v1733, %v2241
  %v2243 = vsel %vm1753, %v2235, %v2235
  %v2244 = vsel %vm1755, %v2235, %v2243
  %v2245 = vrot.slane %v2242, 7
  %v2246 = vsel %vm1758, %v2245, %v2244
  %v2247 = vsel %vm1760, %v2245, %v2246
  %v2248 = vsel %vm1762, %v2245, %v2247
  %v2249 = vsel %vm1764, %v2245, %v2248
  %2251 = vst.msk [vmem:[#allocation4 + $0x10] sm:$0x3] %vm1767, %v2249
  %v2252 = vrot.slane %v2235, 1
  %v2253 = vsel %vm1753, %v2252, %v2252
  %v2254 = vsel %vm1755, %v2252, %v2253
  %v2255 = vsel %vm1758, %v2242, %v2254
  %v2256 = vsel %vm1760, %v2242, %v2255
  %v2257 = vsel %vm1762, %v2242, %v2256
  %v2258 = vsel %vm1764, %v2242, %v2257
  %2259 = vrot.lane.b32.xlu0 %v2258, 32
  %v2260 = vpop.permute.xlu0 %2259
  %2262 = vst.msk [vmem:[#allocation4 + $0x10] sm:$0x3] %vm1779, %v2260
  %v2263 = vcombine.high %v2235, %v2235
  %v2264 = vcombine.high %v2242, %v2242
  %v2265 = vsel %vm1753, %v2263, %v2263
  %v2266 = vsel %vm1755, %v2263, %v2265
  %v2267 = vrot.slane %v2264, 7
  %v2268 = vsel %vm1758, %v2267, %v2266
  %v2269 = vsel %vm1760, %v2267, %v2268
  %v2270 = vsel %vm1762, %v2267, %v2269
  %v2271 = vsel %vm1764, %v2267, %v2270
  %2272 = vrot.lane.b32.xlu0 %v2271, 64
  %v2273 = vpop.permute.xlu0 %2272
  %2275 = vst.msk [vmem:[#allocation4 + $0x10] sm:$0x3] %vm1793, %v2273
  %v2276 = vrot.slane %v2263, 1
  %v2277 = vsel %vm1753, %v2276, %v2276
  %v2278 = vsel %vm1755, %v2276, %v2277
  %v2279 = vsel %vm1758, %v2264, %v2278
  %v2280 = vsel %vm1760, %v2264, %v2279
  %v2281 = vsel %vm1762, %v2264, %v2280
  %v2282 = vsel %vm1764, %v2264, %v2281
  %2283 = vrot.lane.b32.xlu0 %v2282, 96
  %v2284 = vpop.permute.xlu0 %2283
  %2286 = vst.msk [vmem:[#allocation4 + $0x10] sm:$0x3] %vm1805, %v2284
  %v2287 = vcombine.high %v1725, %v1725
  %v2289 = vunpack.c.l.s4 1983009808
  %v2290 = vunpack.c.0.s8 %v2289
  %v2291 = vlaneseq
  %v2292 = vshrl.u32 %v2291, 7
  %v2293 = vsub.s32 %v2290, %v2292
  %v2294 = vrot.slane %v2287, %v2293
  %v2295 = vcombine.high %v1733, %v1733
  %v2297 = vunpack.c.l.s4 1983009808
  %v2298 = vunpack.c.0.s8 %v2297
  %v2299 = vlaneseq
  %v2300 = vshrl.u32 %v2299, 7
  %v2301 = vsub.s32 %v2298, %v2300
  %v2302 = vrot.slane %v2295, %v2301
  %v2303 = vsel %vm1753, %v2294, %v2294
  %v2304 = vsel %vm1755, %v2294, %v2303
  %v2305 = vrot.slane %v2302, 7
  %v2306 = vsel %vm1758, %v2305, %v2304
  %v2307 = vsel %vm1760, %v2305, %v2306
  %v2308 = vsel %vm1762, %v2305, %v2307
  %v2309 = vsel %vm1764, %v2305, %v2308
  %2311 = vst.msk [vmem:[#allocation4 + $0x12] sm:$0x3] %vm1767, %v2309
  %v2312 = vrot.slane %v2294, 1
  %v2313 = vsel %vm1753, %v2312, %v2312
  %v2314 = vsel %vm1755, %v2312, %v2313
  %v2315 = vsel %vm1758, %v2302, %v2314
  %v2316 = vsel %vm1760, %v2302, %v2315
  %v2317 = vsel %vm1762, %v2302, %v2316
  %v2318 = vsel %vm1764, %v2302, %v2317
  %2319 = vrot.lane.b32.xlu0 %v2318, 32
  %v2320 = vpop.permute.xlu0 %2319
  %2322 = vst.msk [vmem:[#allocation4 + $0x12] sm:$0x3] %vm1779, %v2320
  %v2323 = vcombine.high %v2294, %v2294
  %v2324 = vcombine.high %v2302, %v2302
  %v2325 = vsel %vm1753, %v2323, %v2323
  %v2326 = vsel %vm1755, %v2323, %v2325
  %v2327 = vrot.slane %v2324, 7
  %v2328 = vsel %vm1758, %v2327, %v2326
  %v2329 = vsel %vm1760, %v2327, %v2328
  %v2330 = vsel %vm1762, %v2327, %v2329
  %v2331 = vsel %vm1764, %v2327, %v2330
  %2332 = vrot.lane.b32.xlu0 %v2331, 64
  %v2333 = vpop.permute.xlu0 %2332
  %2335 = vst.msk [vmem:[#allocation4 + $0x12] sm:$0x3] %vm1793, %v2333
  %v2336 = vrot.slane %v2323, 1
  %v2337 = vsel %vm1753, %v2336, %v2336
  %v2338 = vsel %vm1755, %v2336, %v2337
  %v2339 = vsel %vm1758, %v2324, %v2338
  %v2340 = vsel %vm1760, %v2324, %v2339
  %v2341 = vsel %vm1762, %v2324, %v2340
  %v2342 = vsel %vm1764, %v2324, %v2341
  %2343 = vrot.lane.b32.xlu0 %v2342, 96
  %v2344 = vpop.permute.xlu0 %2343
  %2346 = vst.msk [vmem:[#allocation4 + $0x12] sm:$0x3] %vm1805, %v2344
  %v2350 = vunpack.c.l.s4 1983009808
  %v2351 = vunpack.c.0.s8 %v2350
  %v2352 = vlaneseq
  %v2353 = vshrl.u32 %v2352, 7
  %v2354 = vsub.s32 %v2351, %v2353
  %v2355 = vrot.slane %v1726, %v2354
  %v2357 = vunpack.c.l.s4 1983009808
  %v2358 = vunpack.c.0.s8 %v2357
  %v2359 = vlaneseq
  %v2360 = vshrl.u32 %v2359, 7
  %v2361 = vsub.s32 %v2358, %v2360
  %v2362 = vrot.slane %v1734, %v2361
  %v2363 = vsel %vm1753, %v2355, %v2355
  %v2364 = vsel %vm1755, %v2355, %v2363
  %v2365 = vrot.slane %v2362, 7
  %v2366 = vsel %vm1758, %v2365, %v2364
  %v2367 = vsel %vm1760, %v2365, %v2366
  %v2368 = vsel %vm1762, %v2365, %v2367
  %v2369 = vsel %vm1764, %v2365, %v2368
  %2371 = vst.msk [vmem:[#allocation4 + $0x14] sm:$0x3] %vm1767, %v2369
  %v2372 = vrot.slane %v2355, 1
  %v2373 = vsel %vm1753, %v2372, %v2372
  %v2374 = vsel %vm1755, %v2372, %v2373
  %v2375 = vsel %vm1758, %v2362, %v2374
  %v2376 = vsel %vm1760, %v2362, %v2375
  %v2377 = vsel %vm1762, %v2362, %v2376
  %v2378 = vsel %vm1764, %v2362, %v2377
  %2379 = vrot.lane.b32.xlu0 %v2378, 32
  %v2380 = vpop.permute.xlu0 %2379
  %2382 = vst.msk [vmem:[#allocation4 + $0x14] sm:$0x3] %vm1779, %v2380
  %v2383 = vcombine.high %v2355, %v2355
  %v2384 = vcombine.high %v2362, %v2362
  %v2385 = vsel %vm1753, %v2383, %v2383
  %v2386 = vsel %vm1755, %v2383, %v2385
  %v2387 = vrot.slane %v2384, 7
  %v2388 = vsel %vm1758, %v2387, %v2386
  %v2389 = vsel %vm1760, %v2387, %v2388
  %v2390 = vsel %vm1762, %v2387, %v2389
  %v2391 = vsel %vm1764, %v2387, %v2390
  %2392 = vrot.lane.b32.xlu0 %v2391, 64
  %v2393 = vpop.permute.xlu0 %2392
  %2395 = vst.msk [vmem:[#allocation4 + $0x14] sm:$0x3] %vm1793, %v2393
  %v2396 = vrot.slane %v2383, 1
  %v2397 = vsel %vm1753, %v2396, %v2396
  %v2398 = vsel %vm1755, %v2396, %v2397
  %v2399 = vsel %vm1758, %v2384, %v2398
  %v2400 = vsel %vm1760, %v2384, %v2399
  %v2401 = vsel %vm1762, %v2384, %v2400
  %v2402 = vsel %vm1764, %v2384, %v2401
  %2403 = vrot.lane.b32.xlu0 %v2402, 96
  %v2404 = vpop.permute.xlu0 %2403
  %2406 = vst.msk [vmem:[#allocation4 + $0x14] sm:$0x3] %vm1805, %v2404
  %v2407 = vcombine.high %v1726, %v1726
  %v2409 = vunpack.c.l.s4 1983009808
  %v2410 = vunpack.c.0.s8 %v2409
  %v2411 = vlaneseq
  %v2412 = vshrl.u32 %v2411, 7
  %v2413 = vsub.s32 %v2410, %v2412
  %v2414 = vrot.slane %v2407, %v2413
  %v2415 = vcombine.high %v1734, %v1734
  %v2417 = vunpack.c.l.s4 1983009808
  %v2418 = vunpack.c.0.s8 %v2417
  %v2419 = vlaneseq
  %v2420 = vshrl.u32 %v2419, 7
  %v2421 = vsub.s32 %v2418, %v2420
  %v2422 = vrot.slane %v2415, %v2421
  %v2423 = vsel %vm1753, %v2414, %v2414
  %v2424 = vsel %vm1755, %v2414, %v2423
  %v2425 = vrot.slane %v2422, 7
  %v2426 = vsel %vm1758, %v2425, %v2424
  %v2427 = vsel %vm1760, %v2425, %v2426
  %v2428 = vsel %vm1762, %v2425, %v2427
  %v2429 = vsel %vm1764, %v2425, %v2428
  %2431 = vst.msk [vmem:[#allocation4 + $0x16] sm:$0x3] %vm1767, %v2429
  %v2432 = vrot.slane %v2414, 1
  %v2433 = vsel %vm1753, %v2432, %v2432
  %v2434 = vsel %vm1755, %v2432, %v2433
  %v2435 = vsel %vm1758, %v2422, %v2434
  %v2436 = vsel %vm1760, %v2422, %v2435
  %v2437 = vsel %vm1762, %v2422, %v2436
  %v2438 = vsel %vm1764, %v2422, %v2437
  %2439 = vrot.lane.b32.xlu0 %v2438, 32
  %v2440 = vpop.permute.xlu0 %2439
  %2442 = vst.msk [vmem:[#allocation4 + $0x16] sm:$0x3] %vm1779, %v2440
  %v2443 = vcombine.high %v2414, %v2414
  %v2444 = vcombine.high %v2422, %v2422
  %v2445 = vsel %vm1753, %v2443, %v2443
  %v2446 = vsel %vm1755, %v2443, %v2445
  %v2447 = vrot.slane %v2444, 7
  %v2448 = vsel %vm1758, %v2447, %v2446
  %v2449 = vsel %vm1760, %v2447, %v2448
  %v2450 = vsel %vm1762, %v2447, %v2449
  %v2451 = vsel %vm1764, %v2447, %v2450
  %2452 = vrot.lane.b32.xlu0 %v2451, 64
  %v2453 = vpop.permute.xlu0 %2452
  %2455 = vst.msk [vmem:[#allocation4 + $0x16] sm:$0x3] %vm1793, %v2453
  %v2456 = vrot.slane %v2443, 1
  %v2457 = vsel %vm1753, %v2456, %v2456
  %v2458 = vsel %vm1755, %v2456, %v2457
  %v2459 = vsel %vm1758, %v2444, %v2458
  %v2460 = vsel %vm1760, %v2444, %v2459
  %v2461 = vsel %vm1762, %v2444, %v2460
  %v2462 = vsel %vm1764, %v2444, %v2461
  %2463 = vrot.lane.b32.xlu0 %v2462, 96
  %v2464 = vpop.permute.xlu0 %2463
  %2466 = vst.msk [vmem:[#allocation4 + $0x16] sm:$0x3] %vm1805, %v2464
  %v2470 = vunpack.c.l.s4 1983009808
  %v2471 = vunpack.c.0.s8 %v2470
  %v2472 = vlaneseq
  %v2473 = vshrl.u32 %v2472, 7
  %v2474 = vsub.s32 %v2471, %v2473
  %v2475 = vrot.slane %v1727, %v2474
  %v2477 = vunpack.c.l.s4 1983009808
  %v2478 = vunpack.c.0.s8 %v2477
  %v2479 = vlaneseq
  %v2480 = vshrl.u32 %v2479, 7
  %v2481 = vsub.s32 %v2478, %v2480
  %v2482 = vrot.slane %v1735, %v2481
  %v2483 = vsel %vm1753, %v2475, %v2475
  %v2484 = vsel %vm1755, %v2475, %v2483
  %v2485 = vrot.slane %v2482, 7
  %v2486 = vsel %vm1758, %v2485, %v2484
  %v2487 = vsel %vm1760, %v2485, %v2486
  %v2488 = vsel %vm1762, %v2485, %v2487
  %v2489 = vsel %vm1764, %v2485, %v2488
  %2491 = vst.msk [vmem:[#allocation4 + $0x18] sm:$0x3] %vm1767, %v2489
  %v2492 = vrot.slane %v2475, 1
  %v2493 = vsel %vm1753, %v2492, %v2492
  %v2494 = vsel %vm1755, %v2492, %v2493
  %v2495 = vsel %vm1758, %v2482, %v2494
  %v2496 = vsel %vm1760, %v2482, %v2495
  %v2497 = vsel %vm1762, %v2482, %v2496
  %v2498 = vsel %vm1764, %v2482, %v2497
  %2499 = vrot.lane.b32.xlu0 %v2498, 32
  %v2500 = vpop.permute.xlu0 %2499
  %2502 = vst.msk [vmem:[#allocation4 + $0x18] sm:$0x3] %vm1779, %v2500
  %v2503 = vcombine.high %v2475, %v2475
  %v2504 = vcombine.high %v2482, %v2482
  %v2505 = vsel %vm1753, %v2503, %v2503
  %v2506 = vsel %vm1755, %v2503, %v2505
  %v2507 = vrot.slane %v2504, 7
  %v2508 = vsel %vm1758, %v2507, %v2506
  %v2509 = vsel %vm1760, %v2507, %v2508
  %v2510 = vsel %vm1762, %v2507, %v2509
  %v2511 = vsel %vm1764, %v2507, %v2510
  %2512 = vrot.lane.b32.xlu0 %v2511, 64
  %v2513 = vpop.permute.xlu0 %2512
  %2515 = vst.msk [vmem:[#allocation4 + $0x18] sm:$0x3] %vm1793, %v2513
  %v2516 = vrot.slane %v2503, 1
  %v2517 = vsel %vm1753, %v2516, %v2516
  %v2518 = vsel %vm1755, %v2516, %v2517
  %v2519 = vsel %vm1758, %v2504, %v2518
  %v2520 = vsel %vm1760, %v2504, %v2519
  %v2521 = vsel %vm1762, %v2504, %v2520
  %v2522 = vsel %vm1764, %v2504, %v2521
  %2523 = vrot.lane.b32.xlu0 %v2522, 96
  %v2524 = vpop.permute.xlu0 %2523
  %2526 = vst.msk [vmem:[#allocation4 + $0x18] sm:$0x3] %vm1805, %v2524
  %v2527 = vcombine.high %v1727, %v1727
  %v2529 = vunpack.c.l.s4 1983009808
  %v2530 = vunpack.c.0.s8 %v2529
  %v2531 = vlaneseq
  %v2532 = vshrl.u32 %v2531, 7
  %v2533 = vsub.s32 %v2530, %v2532
  %v2534 = vrot.slane %v2527, %v2533
  %v2535 = vcombine.high %v1735, %v1735
  %v2537 = vunpack.c.l.s4 1983009808
  %v2538 = vunpack.c.0.s8 %v2537
  %v2539 = vlaneseq
  %v2540 = vshrl.u32 %v2539, 7
  %v2541 = vsub.s32 %v2538, %v2540
  %v2542 = vrot.slane %v2535, %v2541
  %v2543 = vsel %vm1753, %v2534, %v2534
  %v2544 = vsel %vm1755, %v2534, %v2543
  %v2545 = vrot.slane %v2542, 7
  %v2546 = vsel %vm1758, %v2545, %v2544
  %v2547 = vsel %vm1760, %v2545, %v2546
  %v2548 = vsel %vm1762, %v2545, %v2547
  %v2549 = vsel %vm1764, %v2545, %v2548
  %2551 = vst.msk [vmem:[#allocation4 + $0x1a] sm:$0x3] %vm1767, %v2549
  %v2552 = vrot.slane %v2534, 1
  %v2553 = vsel %vm1753, %v2552, %v2552
  %v2554 = vsel %vm1755, %v2552, %v2553
  %v2555 = vsel %vm1758, %v2542, %v2554
  %v2556 = vsel %vm1760, %v2542, %v2555
  %v2557 = vsel %vm1762, %v2542, %v2556
  %v2558 = vsel %vm1764, %v2542, %v2557
  %2559 = vrot.lane.b32.xlu0 %v2558, 32
  %v2560 = vpop.permute.xlu0 %2559
  %2562 = vst.msk [vmem:[#allocation4 + $0x1a] sm:$0x3] %vm1779, %v2560
  %v2563 = vcombine.high %v2534, %v2534
  %v2564 = vcombine.high %v2542, %v2542
  %v2565 = vsel %vm1753, %v2563, %v2563
  %v2566 = vsel %vm1755, %v2563, %v2565
  %v2567 = vrot.slane %v2564, 7
  %v2568 = vsel %vm1758, %v2567, %v2566
  %v2569 = vsel %vm1760, %v2567, %v2568
  %v2570 = vsel %vm1762, %v2567, %v2569
  %v2571 = vsel %vm1764, %v2567, %v2570
  %2572 = vrot.lane.b32.xlu0 %v2571, 64
  %v2573 = vpop.permute.xlu0 %2572
  %2575 = vst.msk [vmem:[#allocation4 + $0x1a] sm:$0x3] %vm1793, %v2573
  %v2576 = vrot.slane %v2563, 1
  %v2577 = vsel %vm1753, %v2576, %v2576
  %v2578 = vsel %vm1755, %v2576, %v2577
  %v2579 = vsel %vm1758, %v2564, %v2578
  %v2580 = vsel %vm1760, %v2564, %v2579
  %v2581 = vsel %vm1762, %v2564, %v2580
  %v2582 = vsel %vm1764, %v2564, %v2581
  %2583 = vrot.lane.b32.xlu0 %v2582, 96
  %v2584 = vpop.permute.xlu0 %2583
  %2586 = vst.msk [vmem:[#allocation4 + $0x1a] sm:$0x3] %vm1805, %v2584
  %v2590 = vunpack.c.l.s4 1983009808
  %v2591 = vunpack.c.0.s8 %v2590
  %v2592 = vlaneseq
  %v2593 = vshrl.u32 %v2592, 7
  %v2594 = vsub.s32 %v2591, %v2593
  %v2595 = vrot.slane %v1728, %v2594
  %v2597 = vunpack.c.l.s4 1983009808
  %v2598 = vunpack.c.0.s8 %v2597
  %v2599 = vlaneseq
  %v2600 = vshrl.u32 %v2599, 7
  %v2601 = vsub.s32 %v2598, %v2600
  %v2602 = vrot.slane %v1736, %v2601
  %v2603 = vsel %vm1753, %v2595, %v2595
  %v2604 = vsel %vm1755, %v2595, %v2603
  %v2605 = vrot.slane %v2602, 7
  %v2606 = vsel %vm1758, %v2605, %v2604
  %v2607 = vsel %vm1760, %v2605, %v2606
  %v2608 = vsel %vm1762, %v2605, %v2607
  %v2609 = vsel %vm1764, %v2605, %v2608
  %2611 = vst.msk [vmem:[#allocation4 + $0x1c] sm:$0x3] %vm1767, %v2609
  %v2612 = vrot.slane %v2595, 1
  %v2613 = vsel %vm1753, %v2612, %v2612
  %v2614 = vsel %vm1755, %v2612, %v2613
  %v2615 = vsel %vm1758, %v2602, %v2614
  %v2616 = vsel %vm1760, %v2602, %v2615
  %v2617 = vsel %vm1762, %v2602, %v2616
  %v2618 = vsel %vm1764, %v2602, %v2617
  %2619 = vrot.lane.b32.xlu0 %v2618, 32
  %v2620 = vpop.permute.xlu0 %2619
  %2622 = vst.msk [vmem:[#allocation4 + $0x1c] sm:$0x3] %vm1779, %v2620
  %v2623 = vcombine.high %v2595, %v2595
  %v2624 = vcombine.high %v2602, %v2602
  %v2625 = vsel %vm1753, %v2623, %v2623
  %v2626 = vsel %vm1755, %v2623, %v2625
  %v2627 = vrot.slane %v2624, 7
  %v2628 = vsel %vm1758, %v2627, %v2626
  %v2629 = vsel %vm1760, %v2627, %v2628
  %v2630 = vsel %vm1762, %v2627, %v2629
  %v2631 = vsel %vm1764, %v2627, %v2630
  %2632 = vrot.lane.b32.xlu0 %v2631, 64
  %v2633 = vpop.permute.xlu0 %2632
  %2635 = vst.msk [vmem:[#allocation4 + $0x1c] sm:$0x3] %vm1793, %v2633
  %v2636 = vrot.slane %v2623, 1
  %v2637 = vsel %vm1753, %v2636, %v2636
  %v2638 = vsel %vm1755, %v2636, %v2637
  %v2639 = vsel %vm1758, %v2624, %v2638
  %v2640 = vsel %vm1760, %v2624, %v2639
  %v2641 = vsel %vm1762, %v2624, %v2640
  %v2642 = vsel %vm1764, %v2624, %v2641
  %2643 = vrot.lane.b32.xlu0 %v2642, 96
  %v2644 = vpop.permute.xlu0 %2643
  %2646 = vst.msk [vmem:[#allocation4 + $0x1c] sm:$0x3] %vm1805, %v2644
  %v2647 = vcombine.high %v1728, %v1728
  %v2649 = vunpack.c.l.s4 1983009808
  %v2650 = vunpack.c.0.s8 %v2649
  %v2651 = vlaneseq
  %v2652 = vshrl.u32 %v2651, 7
  %v2653 = vsub.s32 %v2650, %v2652
  %v2654 = vrot.slane %v2647, %v2653
  %v2655 = vcombine.high %v1736, %v1736
  %v2657 = vunpack.c.l.s4 1983009808
  %v2658 = vunpack.c.0.s8 %v2657
  %v2659 = vlaneseq
  %v2660 = vshrl.u32 %v2659, 7
  %v2661 = vsub.s32 %v2658, %v2660
  %v2662 = vrot.slane %v2655, %v2661
  %v2663 = vsel %vm1753, %v2654, %v2654
  %v2664 = vsel %vm1755, %v2654, %v2663
  %v2665 = vrot.slane %v2662, 7
  %v2666 = vsel %vm1758, %v2665, %v2664
  %v2667 = vsel %vm1760, %v2665, %v2666
  %v2668 = vsel %vm1762, %v2665, %v2667
  %v2669 = vsel %vm1764, %v2665, %v2668
  %2671 = vst.msk [vmem:[#allocation4 + $0x1e] sm:$0x3] %vm1767, %v2669
  %v2672 = vrot.slane %v2654, 1
  %v2673 = vsel %vm1753, %v2672, %v2672
  %v2674 = vsel %vm1755, %v2672, %v2673
  %v2675 = vsel %vm1758, %v2662, %v2674
  %v2676 = vsel %vm1760, %v2662, %v2675
  %v2677 = vsel %vm1762, %v2662, %v2676
  %v2678 = vsel %vm1764, %v2662, %v2677
  %2679 = vrot.lane.b32.xlu0 %v2678, 32
  %v2680 = vpop.permute.xlu0 %2679
  %2682 = vst.msk [vmem:[#allocation4 + $0x1e] sm:$0x3] %vm1779, %v2680
  %v2683 = vcombine.high %v2654, %v2654
  %v2684 = vcombine.high %v2662, %v2662
  %v2685 = vsel %vm1753, %v2683, %v2683
  %v2686 = vsel %vm1755, %v2683, %v2685
  %v2687 = vrot.slane %v2684, 7
  %v2688 = vsel %vm1758, %v2687, %v2686
  %v2689 = vsel %vm1760, %v2687, %v2688
  %v2690 = vsel %vm1762, %v2687, %v2689
  %v2691 = vsel %vm1764, %v2687, %v2690
  %2692 = vrot.lane.b32.xlu0 %v2691, 64
  %v2693 = vpop.permute.xlu0 %2692
  %2695 = vst.msk [vmem:[#allocation4 + $0x1e] sm:$0x3] %vm1793, %v2693
  %v2696 = vrot.slane %v2683, 1
  %v2697 = vsel %vm1753, %v2696, %v2696
  %v2698 = vsel %vm1755, %v2696, %v2697
  %v2699 = vsel %vm1758, %v2684, %v2698
  %v2700 = vsel %vm1760, %v2684, %v2699
  %v2701 = vsel %vm1762, %v2684, %v2700
  %v2702 = vsel %vm1764, %v2684, %v2701
  %2703 = vrot.lane.b32.xlu0 %v2702, 96
  %v2704 = vpop.permute.xlu0 %2703
  %2706 = vst.msk [vmem:[#allocation4 + $0x1e] sm:$0x3] %vm1805, %v2704
  %v2707 = vld [vmem:[#allocation4] sm:$0xff]
  %v2708 = vld [vmem:[#allocation4 + $0x8] sm:$0xff]
  %v2709 = vld [vmem:[#allocation4 + $0x10] sm:$0xff]
  %v2710 = vld [vmem:[#allocation4 + $0x18] sm:$0xff]
  %v2711 = vld [vmem:[%s5] sm:$0xff]
  %v2712 = vld [vmem:[%s5 + $0x8] sm:$0xff]
  %v2713 = vld [vmem:[%s5 + $0x10] sm:$0xff]
  %v2714 = vld [vmem:[%s5 + $0x18] sm:$0xff]
  %v2715 = vld [vmem:[%s5 + $0x20] sm:$0xff]
  %v2716 = vld [vmem:[%s5 + $0x28] sm:$0xff]
  %v2717 = vld [vmem:[%s5 + $0x30] sm:$0xff]
  %v2718 = vld [vmem:[%s5 + $0x38] sm:$0xff]
  %v2719 = vld [vmem:[%s5 + $0x40] sm:$0xff]
  %v2720 = vld [vmem:[%s5 + $0x48] sm:$0xff]
  %v2721 = vld [vmem:[%s5 + $0x50] sm:$0xff]
  %v2722 = vld [vmem:[%s5 + $0x58] sm:$0xff]
  %v2723 = vld [vmem:[%s5 + $0x60] sm:$0xff]
  %v2724 = vld [vmem:[%s5 + $0x68] sm:$0xff]
  %v2725 = vld [vmem:[%s5 + $0x70] sm:$0xff]
  %v2726 = vld [vmem:[%s5 + $0x78] sm:$0xff]
  %v2727 = vld [vmem:[%s5 + $0x80] sm:$0xff]
  %v2728 = vld [vmem:[%s5 + $0x88] sm:$0xff]
  %v2729 = vld [vmem:[%s5 + $0x90] sm:$0xff]
  %v2730 = vld [vmem:[%s5 + $0x98] sm:$0xff]
  %v2731 = vld [vmem:[%s5 + $0xa0] sm:$0xff]
  %v2732 = vld [vmem:[%s5 + $0xa8] sm:$0xff]
  %v2733 = vld [vmem:[%s5 + $0xb0] sm:$0xff]
  %v2734 = vld [vmem:[%s5 + $0xb8] sm:$0xff]
  %v2735 = vld [vmem:[%s5 + $0xc0] sm:$0xff]
  %v2736 = vld [vmem:[%s5 + $0xc8] sm:$0xff]
  %v2737 = vld [vmem:[%s5 + $0xd0] sm:$0xff]
  %v2738 = vld [vmem:[%s5 + $0xd8] sm:$0xff]
  %v2739 = vld [vmem:[%s5 + $0xe0] sm:$0xff]
  %v2740 = vld [vmem:[%s5 + $0xe8] sm:$0xff]
  %v2741 = vld [vmem:[%s5 + $0xf0] sm:$0xff]
  %v2742 = vld [vmem:[%s5 + $0xf8] sm:$0xff]
  %v2743 = vld [vmem:[%s5 + $0x100] sm:$0xff]
  %v2744 = vld [vmem:[%s5 + $0x108] sm:$0xff]
  %v2745 = vld [vmem:[%s5 + $0x110] sm:$0xff]
  %v2746 = vld [vmem:[%s5 + $0x118] sm:$0xff]
  %v2747 = vld [vmem:[%s5 + $0x120] sm:$0xff]
  %v2748 = vld [vmem:[%s5 + $0x128] sm:$0xff]
  %v2749 = vld [vmem:[%s5 + $0x130] sm:$0xff]
  %v2750 = vld [vmem:[%s5 + $0x138] sm:$0xff]
  %v2751 = vld [vmem:[%s5 + $0x140] sm:$0xff]
  %v2752 = vld [vmem:[%s5 + $0x148] sm:$0xff]
  %v2753 = vld [vmem:[%s5 + $0x150] sm:$0xff]
  %v2754 = vld [vmem:[%s5 + $0x158] sm:$0xff]
  %v2755 = vld [vmem:[%s5 + $0x160] sm:$0xff]
  %v2756 = vld [vmem:[%s5 + $0x168] sm:$0xff]
  %v2757 = vld [vmem:[%s5 + $0x170] sm:$0xff]
  %v2758 = vld [vmem:[%s5 + $0x178] sm:$0xff]
  %v2759 = vld [vmem:[%s5 + $0x180] sm:$0xff]
  %v2760 = vld [vmem:[%s5 + $0x188] sm:$0xff]
  %v2761 = vld [vmem:[%s5 + $0x190] sm:$0xff]
  %v2762 = vld [vmem:[%s5 + $0x198] sm:$0xff]
  %v2763 = vld [vmem:[%s5 + $0x1a0] sm:$0xff]
  %v2764 = vld [vmem:[%s5 + $0x1a8] sm:$0xff]
  %v2765 = vld [vmem:[%s5 + $0x1b0] sm:$0xff]
  %v2766 = vld [vmem:[%s5 + $0x1b8] sm:$0xff]
  %v2767 = vld [vmem:[%s5 + $0x1c0] sm:$0xff]
  %v2768 = vld [vmem:[%s5 + $0x1c8] sm:$0xff]
  %v2769 = vld [vmem:[%s5 + $0x1d0] sm:$0xff]
  %v2770 = vld [vmem:[%s5 + $0x1d8] sm:$0xff]
  %v2771 = vld [vmem:[%s5 + $0x1e0] sm:$0xff]
  %v2772 = vld [vmem:[%s5 + $0x1e8] sm:$0xff]
  %v2773 = vld [vmem:[%s5 + $0x1f0] sm:$0xff]
  %v2774 = vld [vmem:[%s5 + $0x1f8] sm:$0xff]
  %v2775 = vld [vmem:[%s5 + $0x200] sm:$0xff]
  %v2776 = vld [vmem:[%s5 + $0x208] sm:$0xff]
  %v2777 = vld [vmem:[%s5 + $0x210] sm:$0xff]
  %v2778 = vld [vmem:[%s5 + $0x218] sm:$0xff]
  %v2779 = vld [vmem:[%s5 + $0x220] sm:$0xff]
  %v2780 = vld [vmem:[%s5 + $0x228] sm:$0xff]
  %v2781 = vld [vmem:[%s5 + $0x230] sm:$0xff]
  %v2782 = vld [vmem:[%s5 + $0x238] sm:$0xff]
  %v2783 = vld [vmem:[%s5 + $0x240] sm:$0xff]
  %v2784 = vld [vmem:[%s5 + $0x248] sm:$0xff]
  %v2785 = vld [vmem:[%s5 + $0x250] sm:$0xff]
  %v2786 = vld [vmem:[%s5 + $0x258] sm:$0xff]
  %v2787 = vld [vmem:[%s5 + $0x260] sm:$0xff]
  %v2788 = vld [vmem:[%s5 + $0x268] sm:$0xff]
  %v2789 = vld [vmem:[%s5 + $0x270] sm:$0xff]
  %v2790 = vld [vmem:[%s5 + $0x278] sm:$0xff]
  %v2791 = vld [vmem:[%s5 + $0x280] sm:$0xff]
  %v2792 = vld [vmem:[%s5 + $0x288] sm:$0xff]
  %v2793 = vld [vmem:[%s5 + $0x290] sm:$0xff]
  %v2794 = vld [vmem:[%s5 + $0x298] sm:$0xff]
  %v2795 = vld [vmem:[%s5 + $0x2a0] sm:$0xff]
  %v2796 = vld [vmem:[%s5 + $0x2a8] sm:$0xff]
  %v2797 = vld [vmem:[%s5 + $0x2b0] sm:$0xff]
  %v2798 = vld [vmem:[%s5 + $0x2b8] sm:$0xff]
  %v2799 = vld [vmem:[%s5 + $0x2c0] sm:$0xff]
  %v2800 = vld [vmem:[%s5 + $0x2c8] sm:$0xff]
  %v2801 = vld [vmem:[%s5 + $0x2d0] sm:$0xff]
  %v2802 = vld [vmem:[%s5 + $0x2d8] sm:$0xff]
  %v2803 = vld [vmem:[%s5 + $0x2e0] sm:$0xff]
  %v2804 = vld [vmem:[%s5 + $0x2e8] sm:$0xff]
  %v2805 = vld [vmem:[%s5 + $0x2f0] sm:$0xff]
  %v2806 = vld [vmem:[%s5 + $0x2f8] sm:$0xff]
  %v2807 = vld [vmem:[%s5 + $0x300] sm:$0xff]
  %v2808 = vld [vmem:[%s5 + $0x308] sm:$0xff]
  %v2809 = vld [vmem:[%s5 + $0x310] sm:$0xff]
  %v2810 = vld [vmem:[%s5 + $0x318] sm:$0xff]
  %v2811 = vld [vmem:[%s5 + $0x320] sm:$0xff]
  %v2812 = vld [vmem:[%s5 + $0x328] sm:$0xff]
  %v2813 = vld [vmem:[%s5 + $0x330] sm:$0xff]
  %v2814 = vld [vmem:[%s5 + $0x338] sm:$0xff]
  %v2815 = vld [vmem:[%s5 + $0x340] sm:$0xff]
  %v2816 = vld [vmem:[%s5 + $0x348] sm:$0xff]
  %v2817 = vld [vmem:[%s5 + $0x350] sm:$0xff]
  %v2818 = vld [vmem:[%s5 + $0x358] sm:$0xff]
  %v2819 = vld [vmem:[%s5 + $0x360] sm:$0xff]
  %v2820 = vld [vmem:[%s5 + $0x368] sm:$0xff]
  %v2821 = vld [vmem:[%s5 + $0x370] sm:$0xff]
  %v2822 = vld [vmem:[%s5 + $0x378] sm:$0xff]
  %v2823 = vld [vmem:[%s5 + $0x380] sm:$0xff]
  %v2824 = vld [vmem:[%s5 + $0x388] sm:$0xff]
  %v2825 = vld [vmem:[%s5 + $0x390] sm:$0xff]
  %v2826 = vld [vmem:[%s5 + $0x398] sm:$0xff]
  %v2827 = vld [vmem:[%s5 + $0x3a0] sm:$0xff]
  %v2828 = vld [vmem:[%s5 + $0x3a8] sm:$0xff]
  %v2829 = vld [vmem:[%s5 + $0x3b0] sm:$0xff]
  %v2830 = vld [vmem:[%s5 + $0x3b8] sm:$0xff]
  %v2831 = vld [vmem:[%s5 + $0x3c0] sm:$0xff]
  %v2832 = vld [vmem:[%s5 + $0x3c8] sm:$0xff]
  %v2833 = vld [vmem:[%s5 + $0x3d0] sm:$0xff]
  %v2834 = vld [vmem:[%s5 + $0x3d8] sm:$0xff]
  %v2835 = vld [vmem:[%s5 + $0x3e0] sm:$0xff]
  %v2836 = vld [vmem:[%s5 + $0x3e8] sm:$0xff]
  %v2837 = vld [vmem:[%s5 + $0x3f0] sm:$0xff]
  %v2838 = vld [vmem:[%s5 + $0x3f8] sm:$0xff]
  %v2839 = vld [vmem:[%s5 + $0x400] sm:$0xff]
  %v2840 = vld [vmem:[%s5 + $0x408] sm:$0xff]
  %v2841 = vld [vmem:[%s5 + $0x410] sm:$0xff]
  %v2842 = vld [vmem:[%s5 + $0x418] sm:$0xff]
  %v2843 = vld [vmem:[%s5 + $0x420] sm:$0xff]
  %v2844 = vld [vmem:[%s5 + $0x428] sm:$0xff]
  %v2845 = vld [vmem:[%s5 + $0x430] sm:$0xff]
  %v2846 = vld [vmem:[%s5 + $0x438] sm:$0xff]
  %v2847 = vld [vmem:[%s5 + $0x440] sm:$0xff]
  %v2848 = vld [vmem:[%s5 + $0x448] sm:$0xff]
  %v2849 = vld [vmem:[%s5 + $0x450] sm:$0xff]
  %v2850 = vld [vmem:[%s5 + $0x458] sm:$0xff]
  %v2851 = vld [vmem:[%s5 + $0x460] sm:$0xff]
  %v2852 = vld [vmem:[%s5 + $0x468] sm:$0xff]
  %v2853 = vld [vmem:[%s5 + $0x470] sm:$0xff]
  %v2854 = vld [vmem:[%s5 + $0x478] sm:$0xff]
  %v2855 = vld [vmem:[%s5 + $0x480] sm:$0xff]
  %v2856 = vld [vmem:[%s5 + $0x488] sm:$0xff]
  %v2857 = vld [vmem:[%s5 + $0x490] sm:$0xff]
  %v2858 = vld [vmem:[%s5 + $0x498] sm:$0xff]
  %v2859 = vld [vmem:[%s5 + $0x4a0] sm:$0xff]
  %v2860 = vld [vmem:[%s5 + $0x4a8] sm:$0xff]
  %v2861 = vld [vmem:[%s5 + $0x4b0] sm:$0xff]
  %v2862 = vld [vmem:[%s5 + $0x4b8] sm:$0xff]
  %v2863 = vld [vmem:[%s5 + $0x4c0] sm:$0xff]
  %v2864 = vld [vmem:[%s5 + $0x4c8] sm:$0xff]
  %v2865 = vld [vmem:[%s5 + $0x4d0] sm:$0xff]
  %v2866 = vld [vmem:[%s5 + $0x4d8] sm:$0xff]
  %v2867 = vld [vmem:[%s5 + $0x4e0] sm:$0xff]
  %v2868 = vld [vmem:[%s5 + $0x4e8] sm:$0xff]
  %v2869 = vld [vmem:[%s5 + $0x4f0] sm:$0xff]
  %v2870 = vld [vmem:[%s5 + $0x4f8] sm:$0xff]
  %v2871 = vld [vmem:[%s5 + $0x500] sm:$0xff]
  %v2872 = vld [vmem:[%s5 + $0x508] sm:$0xff]
  %v2873 = vld [vmem:[%s5 + $0x510] sm:$0xff]
  %v2874 = vld [vmem:[%s5 + $0x518] sm:$0xff]
  %v2875 = vld [vmem:[%s5 + $0x520] sm:$0xff]
  %v2876 = vld [vmem:[%s5 + $0x528] sm:$0xff]
  %v2877 = vld [vmem:[%s5 + $0x530] sm:$0xff]
  %v2878 = vld [vmem:[%s5 + $0x538] sm:$0xff]
  %v2879 = vld [vmem:[%s5 + $0x540] sm:$0xff]
  %v2880 = vld [vmem:[%s5 + $0x548] sm:$0xff]
  %v2881 = vld [vmem:[%s5 + $0x550] sm:$0xff]
  %v2882 = vld [vmem:[%s5 + $0x558] sm:$0xff]
  %v2883 = vld [vmem:[%s5 + $0x560] sm:$0xff]
  %v2884 = vld [vmem:[%s5 + $0x568] sm:$0xff]
  %v2885 = vld [vmem:[%s5 + $0x570] sm:$0xff]
  %v2886 = vld [vmem:[%s5 + $0x578] sm:$0xff]
  %v2887 = vld [vmem:[%s5 + $0x580] sm:$0xff]
  %v2888 = vld [vmem:[%s5 + $0x588] sm:$0xff]
  %v2889 = vld [vmem:[%s5 + $0x590] sm:$0xff]
  %v2890 = vld [vmem:[%s5 + $0x598] sm:$0xff]
  %v2891 = vld [vmem:[%s5 + $0x5a0] sm:$0xff]
  %v2892 = vld [vmem:[%s5 + $0x5a8] sm:$0xff]
  %v2893 = vld [vmem:[%s5 + $0x5b0] sm:$0xff]
  %v2894 = vld [vmem:[%s5 + $0x5b8] sm:$0xff]
  %v2895 = vld [vmem:[%s5 + $0x5c0] sm:$0xff]
  %v2896 = vld [vmem:[%s5 + $0x5c8] sm:$0xff]
  %v2897 = vld [vmem:[%s5 + $0x5d0] sm:$0xff]
  %v2898 = vld [vmem:[%s5 + $0x5d8] sm:$0xff]
  %v2899 = vld [vmem:[%s5 + $0x5e0] sm:$0xff]
  %v2900 = vld [vmem:[%s5 + $0x5e8] sm:$0xff]
  %v2901 = vld [vmem:[%s5 + $0x5f0] sm:$0xff]
  %v2902 = vld [vmem:[%s5 + $0x5f8] sm:$0xff]
  %v2903 = vld [vmem:[%s5 + $0x600] sm:$0xff]
  %v2904 = vld [vmem:[%s5 + $0x608] sm:$0xff]
  %v2905 = vld [vmem:[%s5 + $0x610] sm:$0xff]
  %v2906 = vld [vmem:[%s5 + $0x618] sm:$0xff]
  %v2907 = vld [vmem:[%s5 + $0x620] sm:$0xff]
  %v2908 = vld [vmem:[%s5 + $0x628] sm:$0xff]
  %v2909 = vld [vmem:[%s5 + $0x630] sm:$0xff]
  %v2910 = vld [vmem:[%s5 + $0x638] sm:$0xff]
  %v2911 = vld [vmem:[%s5 + $0x640] sm:$0xff]
  %v2912 = vld [vmem:[%s5 + $0x648] sm:$0xff]
  %v2913 = vld [vmem:[%s5 + $0x650] sm:$0xff]
  %v2914 = vld [vmem:[%s5 + $0x658] sm:$0xff]
  %v2915 = vld [vmem:[%s5 + $0x660] sm:$0xff]
  %v2916 = vld [vmem:[%s5 + $0x668] sm:$0xff]
  %v2917 = vld [vmem:[%s5 + $0x670] sm:$0xff]
  %v2918 = vld [vmem:[%s5 + $0x678] sm:$0xff]
  %v2919 = vld [vmem:[%s5 + $0x680] sm:$0xff]
  %v2920 = vld [vmem:[%s5 + $0x688] sm:$0xff]
  %v2921 = vld [vmem:[%s5 + $0x690] sm:$0xff]
  %v2922 = vld [vmem:[%s5 + $0x698] sm:$0xff]
  %v2923 = vld [vmem:[%s5 + $0x6a0] sm:$0xff]
  %v2924 = vld [vmem:[%s5 + $0x6a8] sm:$0xff]
  %v2925 = vld [vmem:[%s5 + $0x6b0] sm:$0xff]
  %v2926 = vld [vmem:[%s5 + $0x6b8] sm:$0xff]
  %v2927 = vld [vmem:[%s5 + $0x6c0] sm:$0xff]
  %v2928 = vld [vmem:[%s5 + $0x6c8] sm:$0xff]
  %v2929 = vld [vmem:[%s5 + $0x6d0] sm:$0xff]
  %v2930 = vld [vmem:[%s5 + $0x6d8] sm:$0xff]
  %v2931 = vld [vmem:[%s5 + $0x6e0] sm:$0xff]
  %v2932 = vld [vmem:[%s5 + $0x6e8] sm:$0xff]
  %v2933 = vld [vmem:[%s5 + $0x6f0] sm:$0xff]
  %v2934 = vld [vmem:[%s5 + $0x6f8] sm:$0xff]
  %v2935 = vld [vmem:[%s5 + $0x700] sm:$0xff]
  %v2936 = vld [vmem:[%s5 + $0x708] sm:$0xff]
  %v2937 = vld [vmem:[%s5 + $0x710] sm:$0xff]
  %v2938 = vld [vmem:[%s5 + $0x718] sm:$0xff]
  %v2939 = vld [vmem:[%s5 + $0x720] sm:$0xff]
  %v2940 = vld [vmem:[%s5 + $0x728] sm:$0xff]
  %v2941 = vld [vmem:[%s5 + $0x730] sm:$0xff]
  %v2942 = vld [vmem:[%s5 + $0x738] sm:$0xff]
  %v2943 = vld [vmem:[%s5 + $0x740] sm:$0xff]
  %v2944 = vld [vmem:[%s5 + $0x748] sm:$0xff]
  %v2945 = vld [vmem:[%s5 + $0x750] sm:$0xff]
  %v2946 = vld [vmem:[%s5 + $0x758] sm:$0xff]
  %v2947 = vld [vmem:[%s5 + $0x760] sm:$0xff]
  %v2948 = vld [vmem:[%s5 + $0x768] sm:$0xff]
  %v2949 = vld [vmem:[%s5 + $0x770] sm:$0xff]
  %v2950 = vld [vmem:[%s5 + $0x778] sm:$0xff]
  %v2951 = vld [vmem:[%s5 + $0x780] sm:$0xff]
  %v2952 = vld [vmem:[%s5 + $0x788] sm:$0xff]
  %v2953 = vld [vmem:[%s5 + $0x790] sm:$0xff]
  %v2954 = vld [vmem:[%s5 + $0x798] sm:$0xff]
  %v2955 = vld [vmem:[%s5 + $0x7a0] sm:$0xff]
  %v2956 = vld [vmem:[%s5 + $0x7a8] sm:$0xff]
  %v2957 = vld [vmem:[%s5 + $0x7b0] sm:$0xff]
  %v2958 = vld [vmem:[%s5 + $0x7b8] sm:$0xff]
  %v2959 = vld [vmem:[%s5 + $0x7c0] sm:$0xff]
  %v2960 = vld [vmem:[%s5 + $0x7c8] sm:$0xff]
  %v2961 = vld [vmem:[%s5 + $0x7d0] sm:$0xff]
  %v2962 = vld [vmem:[%s5 + $0x7d8] sm:$0xff]
  %v2963 = vld [vmem:[%s5 + $0x7e0] sm:$0xff]
  %v2964 = vld [vmem:[%s5 + $0x7e8] sm:$0xff]
  %v2965 = vld [vmem:[%s5 + $0x7f0] sm:$0xff]
  %v2966 = vld [vmem:[%s5 + $0x7f8] sm:$0xff]
  %v2967 = vld [vmem:[%s6] sm:$0x1]
  %v2969 = vlaneseq
  %v2970 = vshrl.u32 %v2969, 7
  %v2971 = vsub.s32 0, %v2970
  %v2972 = vrot.slane %v2967, %v2971
  %v2978 = vcombine.high %v2707, %v2707
  %v2980 = vunpack.c.l.s4 1983009808
  %v2981 = vunpack.c.0.s8 %v2980
  %v2982 = vlaneseq
  %v2983 = vshrl.u32 %v2982, 7
  %v2984 = vsub.s32 %v2981, %v2983
  %v2985 = vrot.slane %v2707, %v2984
  %v2987 = vunpack.c.l.s4 1983009808
  %v2988 = vunpack.c.0.s8 %v2987
  %v2989 = vlaneseq
  %v2990 = vshrl.u32 %v2989, 7
  %v2991 = vsub.s32 %v2988, %v2990
  %v2992 = vrot.slane %v2978, %v2991
  %v2993 = vcombine.high %v2985, %v2985
  %v2994 = vcombine.high %v2992, %v2992
  %v2995 = vcombine.high %v2708, %v2708
  %v2997 = vunpack.c.l.s4 1983009808
  %v2998 = vunpack.c.0.s8 %v2997
  %v2999 = vlaneseq
  %v3000 = vshrl.u32 %v2999, 7
  %v3001 = vsub.s32 %v2998, %v3000
  %v3002 = vrot.slane %v2708, %v3001
  %v3004 = vunpack.c.l.s4 1983009808
  %v3005 = vunpack.c.0.s8 %v3004
  %v3006 = vlaneseq
  %v3007 = vshrl.u32 %v3006, 7
  %v3008 = vsub.s32 %v3005, %v3007
  %v3009 = vrot.slane %v2995, %v3008
  %v3010 = vcombine.high %v3002, %v3002
  %v3011 = vcombine.high %v3009, %v3009
  %v3012 = vcombine.high %v2709, %v2709
  %v3014 = vunpack.c.l.s4 1983009808
  %v3015 = vunpack.c.0.s8 %v3014
  %v3016 = vlaneseq
  %v3017 = vshrl.u32 %v3016, 7
  %v3018 = vsub.s32 %v3015, %v3017
  %v3019 = vrot.slane %v2709, %v3018
  %v3021 = vunpack.c.l.s4 1983009808
  %v3022 = vunpack.c.0.s8 %v3021
  %v3023 = vlaneseq
  %v3024 = vshrl.u32 %v3023, 7
  %v3025 = vsub.s32 %v3022, %v3024
  %v3026 = vrot.slane %v3012, %v3025
  %v3027 = vcombine.high %v3019, %v3019
  %v3028 = vcombine.high %v3026, %v3026
  %v3029 = vcombine.high %v2710, %v2710
  %v3031 = vunpack.c.l.s4 1983009808
  %v3032 = vunpack.c.0.s8 %v3031
  %v3033 = vlaneseq
  %v3034 = vshrl.u32 %v3033, 7
  %v3035 = vsub.s32 %v3032, %v3034
  %v3036 = vrot.slane %v2710, %v3035
  %v3038 = vunpack.c.l.s4 1983009808
  %v3039 = vunpack.c.0.s8 %v3038
  %v3040 = vlaneseq
  %v3041 = vshrl.u32 %v3040, 7
  %v3042 = vsub.s32 %v3039, %v3041
  %v3043 = vrot.slane %v3029, %v3042
  %v3044 = vcombine.high %v3036, %v3036
  %v3045 = vcombine.high %v3043, %v3043
  %3062 = vmatprep.subr.mxu0 0.0
  %3063 = vmatpush1.msra.mxu0 %v2726
  %3064 = vmatprep.subr.mxu0 0.0
  %3065 = vmatpush1.msra.mxu0 %v2725
  %3066 = vmatprep.subr.mxu0 0.0
  %3067 = vmatpush1.msra.mxu0 %v2724
  %3068 = vmatprep.subr.mxu0 0.0
  %3069 = vmatpush1.msra.mxu0 %v2723
  %3070 = vmatprep.subr.mxu0 0.0
  %3071 = vmatpush1.msra.mxu0 %v2722
  %3072 = vmatprep.subr.mxu0 0.0
  %3073 = vmatpush1.msra.mxu0 %v2721
  %3074 = vmatprep.subr.mxu0 0.0
  %3075 = vmatpush1.msra.mxu0 %v2720
  %3076 = vmatprep.subr.mxu0 0.0
  %3077 = vmatpush1.msra.mxu0 %v2719
  %3078 = vmatprep.subr.mxu0 0.0
  %3079 = vmatpush1.msra.mxu0 %v2718
  %3080 = vmatprep.subr.mxu0 0.0
  %3081 = vmatpush1.msra.mxu0 %v2717
  %3082 = vmatprep.subr.mxu0 0.0
  %3083 = vmatpush1.msra.mxu0 %v2716
  %3084 = vmatprep.subr.mxu0 0.0
  %3085 = vmatpush1.msra.mxu0 %v2715
  %3086 = vmatprep.subr.mxu0 0.0
  %3087 = vmatpush1.msra.mxu0 %v2714
  %3088 = vmatprep.subr.mxu0 0.0
  %3089 = vmatpush1.msra.mxu0 %v2713
  %3090 = vmatprep.subr.mxu0 0.0
  %3091 = vmatpush1.msra.mxu0 %v2712
  %3092 = vmatprep.subr.mxu0 0.0
  %3093 = vmatpush1.msra.mxu0 %v2711
  %3094 = vmatprep.subr.mxu0 0.0
  %3095 = vmatpush2.msra.mxu0 %v2742
  %3096 = vmatprep.subr.mxu0 0.0
  %3097 = vmatpush2.msra.mxu0 %v2741
  %3098 = vmatprep.subr.mxu0 0.0
  %3099 = vmatpush2.msra.mxu0 %v2740
  %3100 = vmatprep.subr.mxu0 0.0
  %3101 = vmatpush2.msra.mxu0 %v2739
  %3102 = vmatprep.subr.mxu0 0.0
  %3103 = vmatpush2.msra.mxu0 %v2738
  %3104 = vmatprep.subr.mxu0 0.0
  %3105 = vmatpush2.msra.mxu0 %v2737
  %3106 = vmatprep.subr.mxu0 0.0
  %3107 = vmatpush2.msra.mxu0 %v2736
  %3108 = vmatprep.subr.mxu0 0.0
  %3109 = vmatpush2.msra.mxu0 %v2735
  %3110 = vmatprep.subr.mxu0 0.0
  %3111 = vmatpush2.msra.mxu0 %v2734
  %3112 = vmatprep.subr.mxu0 0.0
  %3113 = vmatpush2.msra.mxu0 %v2733
  %3114 = vmatprep.subr.mxu0 0.0
  %3115 = vmatpush2.msra.mxu0 %v2732
  %3116 = vmatprep.subr.mxu0 0.0
  %3117 = vmatpush2.msra.mxu0 %v2731
  %3118 = vmatprep.subr.mxu0 0.0
  %3119 = vmatpush2.msra.mxu0 %v2730
  %3120 = vmatprep.subr.mxu0 0.0
  %3121 = vmatpush2.msra.mxu0 %v2729
  %3122 = vmatprep.subr.mxu0 0.0
  %3123 = vmatpush2.msra.mxu0 %v2728
  %3124 = vmatprep.subr.mxu0 0.0
  %3125 = vmatpush2.msra.mxu0 %v2727
  %3126 = vmatprep.mubr.f32.mxu0 %v2993
  %3127 = vmatmul.mubr.f32.gmra.mxu0 %v2985
  %v3128 = vpop.f32.mrf.mxu0
  %v3129 = vadd.f32 %v2972, %v3128
  %v3130 = vpop.f32.mrf.mxu0
  %3131 = vdwg.mxu0
  %3132 = vmatprep.subr.mxu0 0.0
  %3133 = vmatpush1.msra.mxu0 %v2758
  %3134 = vmatprep.subr.mxu0 0.0
  %3135 = vmatpush1.msra.mxu0 %v2757
  %3136 = vmatprep.subr.mxu0 0.0
  %3137 = vmatpush1.msra.mxu0 %v2756
  %3138 = vmatprep.subr.mxu0 0.0
  %3139 = vmatpush1.msra.mxu0 %v2755
  %3140 = vmatprep.subr.mxu0 0.0
  %3141 = vmatpush1.msra.mxu0 %v2754
  %3142 = vmatprep.subr.mxu0 0.0
  %3143 = vmatpush1.msra.mxu0 %v2753
  %3144 = vmatprep.subr.mxu0 0.0
  %3145 = vmatpush1.msra.mxu0 %v2752
  %3146 = vmatprep.subr.mxu0 0.0
  %3147 = vmatpush1.msra.mxu0 %v2751
  %3148 = vmatprep.subr.mxu0 0.0
  %3149 = vmatpush1.msra.mxu0 %v2750
  %3150 = vmatprep.subr.mxu0 0.0
  %3151 = vmatpush1.msra.mxu0 %v2749
  %3152 = vmatprep.subr.mxu0 0.0
  %3153 = vmatpush1.msra.mxu0 %v2748
  %3154 = vmatprep.subr.mxu0 0.0
  %3155 = vmatpush1.msra.mxu0 %v2747
  %3156 = vmatprep.subr.mxu0 0.0
  %3157 = vmatpush1.msra.mxu0 %v2746
  %3158 = vmatprep.subr.mxu0 0.0
  %3159 = vmatpush1.msra.mxu0 %v2745
  %3160 = vmatprep.subr.mxu0 0.0
  %3161 = vmatpush1.msra.mxu0 %v2744
  %3162 = vmatprep.subr.mxu0 0.0
  %3163 = vmatpush1.msra.mxu0 %v2743
  %3164 = vmatprep.subr.mxu0 0.0
  %3165 = vmatpush2.msra.mxu0 %v2774
  %3166 = vmatprep.subr.mxu0 0.0
  %3167 = vmatpush2.msra.mxu0 %v2773
  %3168 = vmatprep.subr.mxu0 0.0
  %3169 = vmatpush2.msra.mxu0 %v2772
  %3170 = vmatprep.subr.mxu0 0.0
  %3171 = vmatpush2.msra.mxu0 %v2771
  %3172 = vmatprep.subr.mxu0 0.0
  %3173 = vmatpush2.msra.mxu0 %v2770
  %3174 = vmatprep.subr.mxu0 0.0
  %3175 = vmatpush2.msra.mxu0 %v2769
  %3176 = vmatprep.subr.mxu0 0.0
  %3177 = vmatpush2.msra.mxu0 %v2768
  %3178 = vmatprep.subr.mxu0 0.0
  %3179 = vmatpush2.msra.mxu0 %v2767
  %3180 = vmatprep.subr.mxu0 0.0
  %3181 = vmatpush2.msra.mxu0 %v2766
  %3182 = vmatprep.subr.mxu0 0.0
  %3183 = vmatpush2.msra.mxu0 %v2765
  %3184 = vmatprep.subr.mxu0 0.0
  %3185 = vmatpush2.msra.mxu0 %v2764
  %3186 = vmatprep.subr.mxu0 0.0
  %3187 = vmatpush2.msra.mxu0 %v2763
  %3188 = vmatprep.subr.mxu0 0.0
  %3189 = vmatpush2.msra.mxu0 %v2762
  %3190 = vmatprep.subr.mxu0 0.0
  %3191 = vmatpush2.msra.mxu0 %v2761
  %3192 = vmatprep.subr.mxu0 0.0
  %3193 = vmatpush2.msra.mxu0 %v2760
  %3194 = vmatprep.subr.mxu0 0.0
  %3195 = vmatpush2.msra.mxu0 %v2759
  %3196 = vmatprep.mubr.f32.mxu0 %v2994
  %3197 = vmatmul.mubr.f32.gmra.mxu0 %v2992
  %v3198 = vpop.f32.mrf.mxu0
  %v3199 = vadd.f32 %v3129, %v3198
  %v3200 = vpop.f32.mrf.mxu0
  %3201 = vdwg.mxu0
  %3202 = vmatprep.subr.mxu0 0.0
  %3203 = vmatpush1.msra.mxu0 %v2790
  %3204 = vmatprep.subr.mxu0 0.0
  %3205 = vmatpush1.msra.mxu0 %v2789
  %3206 = vmatprep.subr.mxu0 0.0
  %3207 = vmatpush1.msra.mxu0 %v2788
  %3208 = vmatprep.subr.mxu0 0.0
  %3209 = vmatpush1.msra.mxu0 %v2787
  %3210 = vmatprep.subr.mxu0 0.0
  %3211 = vmatpush1.msra.mxu0 %v2786
  %3212 = vmatprep.subr.mxu0 0.0
  %3213 = vmatpush1.msra.mxu0 %v2785
  %3214 = vmatprep.subr.mxu0 0.0
  %3215 = vmatpush1.msra.mxu0 %v2784
  %3216 = vmatprep.subr.mxu0 0.0
  %3217 = vmatpush1.msra.mxu0 %v2783
  %3218 = vmatprep.subr.mxu0 0.0
  %3219 = vmatpush1.msra.mxu0 %v2782
  %3220 = vmatprep.subr.mxu0 0.0
  %3221 = vmatpush1.msra.mxu0 %v2781
  %3222 = vmatprep.subr.mxu0 0.0
  %3223 = vmatpush1.msra.mxu0 %v2780
  %3224 = vmatprep.subr.mxu0 0.0
  %3225 = vmatpush1.msra.mxu0 %v2779
  %3226 = vmatprep.subr.mxu0 0.0
  %3227 = vmatpush1.msra.mxu0 %v2778
  %3228 = vmatprep.subr.mxu0 0.0
  %3229 = vmatpush1.msra.mxu0 %v2777
  %3230 = vmatprep.subr.mxu0 0.0
  %3231 = vmatpush1.msra.mxu0 %v2776
  %3232 = vmatprep.subr.mxu0 0.0
  %3233 = vmatpush1.msra.mxu0 %v2775
  %3234 = vmatprep.subr.mxu0 0.0
  %3235 = vmatpush2.msra.mxu0 %v2806
  %3236 = vmatprep.subr.mxu0 0.0
  %3237 = vmatpush2.msra.mxu0 %v2805
  %3238 = vmatprep.subr.mxu0 0.0
  %3239 = vmatpush2.msra.mxu0 %v2804
  %3240 = vmatprep.subr.mxu0 0.0
  %3241 = vmatpush2.msra.mxu0 %v2803
  %3242 = vmatprep.subr.mxu0 0.0
  %3243 = vmatpush2.msra.mxu0 %v2802
  %3244 = vmatprep.subr.mxu0 0.0
  %3245 = vmatpush2.msra.mxu0 %v2801
  %3246 = vmatprep.subr.mxu0 0.0
  %3247 = vmatpush2.msra.mxu0 %v2800
  %3248 = vmatprep.subr.mxu0 0.0
  %3249 = vmatpush2.msra.mxu0 %v2799
  %3250 = vmatprep.subr.mxu0 0.0
  %3251 = vmatpush2.msra.mxu0 %v2798
  %3252 = vmatprep.subr.mxu0 0.0
  %3253 = vmatpush2.msra.mxu0 %v2797
  %3254 = vmatprep.subr.mxu0 0.0
  %3255 = vmatpush2.msra.mxu0 %v2796
  %3256 = vmatprep.subr.mxu0 0.0
  %3257 = vmatpush2.msra.mxu0 %v2795
  %3258 = vmatprep.subr.mxu0 0.0
  %3259 = vmatpush2.msra.mxu0 %v2794
  %3260 = vmatprep.subr.mxu0 0.0
  %3261 = vmatpush2.msra.mxu0 %v2793
  %3262 = vmatprep.subr.mxu0 0.0
  %3263 = vmatpush2.msra.mxu0 %v2792
  %3264 = vmatprep.subr.mxu0 0.0
  %3265 = vmatpush2.msra.mxu0 %v2791
  %3266 = vmatprep.mubr.f32.mxu0 %v3010
  %3267 = vmatmul.mubr.f32.gmra.mxu0 %v3002
  %v3268 = vpop.f32.mrf.mxu0
  %v3269 = vadd.f32 %v3199, %v3268
  %v3270 = vpop.f32.mrf.mxu0
  %3271 = vdwg.mxu0
  %3272 = vmatprep.subr.mxu0 0.0
  %3273 = vmatpush1.msra.mxu0 %v2822
  %3274 = vmatprep.subr.mxu0 0.0
  %3275 = vmatpush1.msra.mxu0 %v2821
  %3276 = vmatprep.subr.mxu0 0.0
  %3277 = vmatpush1.msra.mxu0 %v2820
  %3278 = vmatprep.subr.mxu0 0.0
  %3279 = vmatpush1.msra.mxu0 %v2819
  %3280 = vmatprep.subr.mxu0 0.0
  %3281 = vmatpush1.msra.mxu0 %v2818
  %3282 = vmatprep.subr.mxu0 0.0
  %3283 = vmatpush1.msra.mxu0 %v2817
  %3284 = vmatprep.subr.mxu0 0.0
  %3285 = vmatpush1.msra.mxu0 %v2816
  %3286 = vmatprep.subr.mxu0 0.0
  %3287 = vmatpush1.msra.mxu0 %v2815
  %3288 = vmatprep.subr.mxu0 0.0
  %3289 = vmatpush1.msra.mxu0 %v2814
  %3290 = vmatprep.subr.mxu0 0.0
  %3291 = vmatpush1.msra.mxu0 %v2813
  %3292 = vmatprep.subr.mxu0 0.0
  %3293 = vmatpush1.msra.mxu0 %v2812
  %3294 = vmatprep.subr.mxu0 0.0
  %3295 = vmatpush1.msra.mxu0 %v2811
  %3296 = vmatprep.subr.mxu0 0.0
  %3297 = vmatpush1.msra.mxu0 %v2810
  %3298 = vmatprep.subr.mxu0 0.0
  %3299 = vmatpush1.msra.mxu0 %v2809
  %3300 = vmatprep.subr.mxu0 0.0
  %3301 = vmatpush1.msra.mxu0 %v2808
  %3302 = vmatprep.subr.mxu0 0.0
  %3303 = vmatpush1.msra.mxu0 %v2807
  %3304 = vmatprep.subr.mxu0 0.0
  %3305 = vmatpush2.msra.mxu0 %v2838
  %3306 = vmatprep.subr.mxu0 0.0
  %3307 = vmatpush2.msra.mxu0 %v2837
  %3308 = vmatprep.subr.mxu0 0.0
  %3309 = vmatpush2.msra.mxu0 %v2836
  %3310 = vmatprep.subr.mxu0 0.0
  %3311 = vmatpush2.msra.mxu0 %v2835
  %3312 = vmatprep.subr.mxu0 0.0
  %3313 = vmatpush2.msra.mxu0 %v2834
  %3314 = vmatprep.subr.mxu0 0.0
  %3315 = vmatpush2.msra.mxu0 %v2833
  %3316 = vmatprep.subr.mxu0 0.0
  %3317 = vmatpush2.msra.mxu0 %v2832
  %3318 = vmatprep.subr.mxu0 0.0
  %3319 = vmatpush2.msra.mxu0 %v2831
  %3320 = vmatprep.subr.mxu0 0.0
  %3321 = vmatpush2.msra.mxu0 %v2830
  %3322 = vmatprep.subr.mxu0 0.0
  %3323 = vmatpush2.msra.mxu0 %v2829
  %3324 = vmatprep.subr.mxu0 0.0
  %3325 = vmatpush2.msra.mxu0 %v2828
  %3326 = vmatprep.subr.mxu0 0.0
  %3327 = vmatpush2.msra.mxu0 %v2827
  %3328 = vmatprep.subr.mxu0 0.0
  %3329 = vmatpush2.msra.mxu0 %v2826
  %3330 = vmatprep.subr.mxu0 0.0
  %3331 = vmatpush2.msra.mxu0 %v2825
  %3332 = vmatprep.subr.mxu0 0.0
  %3333 = vmatpush2.msra.mxu0 %v2824
  %3334 = vmatprep.subr.mxu0 0.0
  %3335 = vmatpush2.msra.mxu0 %v2823
  %3336 = vmatprep.mubr.f32.mxu0 %v3011
  %3337 = vmatmul.mubr.f32.gmra.mxu0 %v3009
  %v3338 = vpop.f32.mrf.mxu0
  %v3339 = vadd.f32 %v3269, %v3338
  %v3340 = vpop.f32.mrf.mxu0
  %3341 = vdwg.mxu0
  %3342 = vmatprep.subr.mxu0 0.0
  %3343 = vmatpush1.msra.mxu0 %v2854
  %3344 = vmatprep.subr.mxu0 0.0
  %3345 = vmatpush1.msra.mxu0 %v2853
  %3346 = vmatprep.subr.mxu0 0.0
  %3347 = vmatpush1.msra.mxu0 %v2852
  %3348 = vmatprep.subr.mxu0 0.0
  %3349 = vmatpush1.msra.mxu0 %v2851
  %3350 = vmatprep.subr.mxu0 0.0
  %3351 = vmatpush1.msra.mxu0 %v2850
  %3352 = vmatprep.subr.mxu0 0.0
  %3353 = vmatpush1.msra.mxu0 %v2849
  %3354 = vmatprep.subr.mxu0 0.0
  %3355 = vmatpush1.msra.mxu0 %v2848
  %3356 = vmatprep.subr.mxu0 0.0
  %3357 = vmatpush1.msra.mxu0 %v2847
  %3358 = vmatprep.subr.mxu0 0.0
  %3359 = vmatpush1.msra.mxu0 %v2846
  %3360 = vmatprep.subr.mxu0 0.0
  %3361 = vmatpush1.msra.mxu0 %v2845
  %3362 = vmatprep.subr.mxu0 0.0
  %3363 = vmatpush1.msra.mxu0 %v2844
  %3364 = vmatprep.subr.mxu0 0.0
  %3365 = vmatpush1.msra.mxu0 %v2843
  %3366 = vmatprep.subr.mxu0 0.0
  %3367 = vmatpush1.msra.mxu0 %v2842
  %3368 = vmatprep.subr.mxu0 0.0
  %3369 = vmatpush1.msra.mxu0 %v2841
  %3370 = vmatprep.subr.mxu0 0.0
  %3371 = vmatpush1.msra.mxu0 %v2840
  %3372 = vmatprep.subr.mxu0 0.0
  %3373 = vmatpush1.msra.mxu0 %v2839
  %3374 = vmatprep.subr.mxu0 0.0
  %3375 = vmatpush2.msra.mxu0 %v2870
  %3376 = vmatprep.subr.mxu0 0.0
  %3377 = vmatpush2.msra.mxu0 %v2869
  %3378 = vmatprep.subr.mxu0 0.0
  %3379 = vmatpush2.msra.mxu0 %v2868
  %3380 = vmatprep.subr.mxu0 0.0
  %3381 = vmatpush2.msra.mxu0 %v2867
  %3382 = vmatprep.subr.mxu0 0.0
  %3383 = vmatpush2.msra.mxu0 %v2866
  %3384 = vmatprep.subr.mxu0 0.0
  %3385 = vmatpush2.msra.mxu0 %v2865
  %3386 = vmatprep.subr.mxu0 0.0
  %3387 = vmatpush2.msra.mxu0 %v2864
  %3388 = vmatprep.subr.mxu0 0.0
  %3389 = vmatpush2.msra.mxu0 %v2863
  %3390 = vmatprep.subr.mxu0 0.0
  %3391 = vmatpush2.msra.mxu0 %v2862
  %3392 = vmatprep.subr.mxu0 0.0
  %3393 = vmatpush2.msra.mxu0 %v2861
  %3394 = vmatprep.subr.mxu0 0.0
  %3395 = vmatpush2.msra.mxu0 %v2860
  %3396 = vmatprep.subr.mxu0 0.0
  %3397 = vmatpush2.msra.mxu0 %v2859
  %3398 = vmatprep.subr.mxu0 0.0
  %3399 = vmatpush2.msra.mxu0 %v2858
  %3400 = vmatprep.subr.mxu0 0.0
  %3401 = vmatpush2.msra.mxu0 %v2857
  %3402 = vmatprep.subr.mxu0 0.0
  %3403 = vmatpush2.msra.mxu0 %v2856
  %3404 = vmatprep.subr.mxu0 0.0
  %3405 = vmatpush2.msra.mxu0 %v2855
  %3406 = vmatprep.mubr.f32.mxu0 %v3027
  %3407 = vmatmul.mubr.f32.gmra.mxu0 %v3019
  %v3408 = vpop.f32.mrf.mxu0
  %v3409 = vadd.f32 %v3339, %v3408
  %v3410 = vpop.f32.mrf.mxu0
  %3411 = vdwg.mxu0
  %3412 = vmatprep.subr.mxu0 0.0
  %3413 = vmatpush1.msra.mxu0 %v2886
  %3414 = vmatprep.subr.mxu0 0.0
  %3415 = vmatpush1.msra.mxu0 %v2885
  %3416 = vmatprep.subr.mxu0 0.0
  %3417 = vmatpush1.msra.mxu0 %v2884
  %3418 = vmatprep.subr.mxu0 0.0
  %3419 = vmatpush1.msra.mxu0 %v2883
  %3420 = vmatprep.subr.mxu0 0.0
  %3421 = vmatpush1.msra.mxu0 %v2882
  %3422 = vmatprep.subr.mxu0 0.0
  %3423 = vmatpush1.msra.mxu0 %v2881
  %3424 = vmatprep.subr.mxu0 0.0
  %3425 = vmatpush1.msra.mxu0 %v2880
  %3426 = vmatprep.subr.mxu0 0.0
  %3427 = vmatpush1.msra.mxu0 %v2879
  %3428 = vmatprep.subr.mxu0 0.0
  %3429 = vmatpush1.msra.mxu0 %v2878
  %3430 = vmatprep.subr.mxu0 0.0
  %3431 = vmatpush1.msra.mxu0 %v2877
  %3432 = vmatprep.subr.mxu0 0.0
  %3433 = vmatpush1.msra.mxu0 %v2876
  %3434 = vmatprep.subr.mxu0 0.0
  %3435 = vmatpush1.msra.mxu0 %v2875
  %3436 = vmatprep.subr.mxu0 0.0
  %3437 = vmatpush1.msra.mxu0 %v2874
  %3438 = vmatprep.subr.mxu0 0.0
  %3439 = vmatpush1.msra.mxu0 %v2873
  %3440 = vmatprep.subr.mxu0 0.0
  %3441 = vmatpush1.msra.mxu0 %v2872
  %3442 = vmatprep.subr.mxu0 0.0
  %3443 = vmatpush1.msra.mxu0 %v2871
  %3444 = vmatprep.subr.mxu0 0.0
  %3445 = vmatpush2.msra.mxu0 %v2902
  %3446 = vmatprep.subr.mxu0 0.0
  %3447 = vmatpush2.msra.mxu0 %v2901
  %3448 = vmatprep.subr.mxu0 0.0
  %3449 = vmatpush2.msra.mxu0 %v2900
  %3450 = vmatprep.subr.mxu0 0.0
  %3451 = vmatpush2.msra.mxu0 %v2899
  %3452 = vmatprep.subr.mxu0 0.0
  %3453 = vmatpush2.msra.mxu0 %v2898
  %3454 = vmatprep.subr.mxu0 0.0
  %3455 = vmatpush2.msra.mxu0 %v2897
  %3456 = vmatprep.subr.mxu0 0.0
  %3457 = vmatpush2.msra.mxu0 %v2896
  %3458 = vmatprep.subr.mxu0 0.0
  %3459 = vmatpush2.msra.mxu0 %v2895
  %3460 = vmatprep.subr.mxu0 0.0
  %3461 = vmatpush2.msra.mxu0 %v2894
  %3462 = vmatprep.subr.mxu0 0.0
  %3463 = vmatpush2.msra.mxu0 %v2893
  %3464 = vmatprep.subr.mxu0 0.0
  %3465 = vmatpush2.msra.mxu0 %v2892
  %3466 = vmatprep.subr.mxu0 0.0
  %3467 = vmatpush2.msra.mxu0 %v2891
  %3468 = vmatprep.subr.mxu0 0.0
  %3469 = vmatpush2.msra.mxu0 %v2890
  %3470 = vmatprep.subr.mxu0 0.0
  %3471 = vmatpush2.msra.mxu0 %v2889
  %3472 = vmatprep.subr.mxu0 0.0
  %3473 = vmatpush2.msra.mxu0 %v2888
  %3474 = vmatprep.subr.mxu0 0.0
  %3475 = vmatpush2.msra.mxu0 %v2887
  %3476 = vmatprep.mubr.f32.mxu0 %v3028
  %3477 = vmatmul.mubr.f32.gmra.mxu0 %v3026
  %v3478 = vpop.f32.mrf.mxu0
  %v3479 = vadd.f32 %v3409, %v3478
  %v3480 = vpop.f32.mrf.mxu0
  %3481 = vdwg.mxu0
  %3482 = vmatprep.subr.mxu0 0.0
  %3483 = vmatpush1.msra.mxu0 %v2918
  %3484 = vmatprep.subr.mxu0 0.0
  %3485 = vmatpush1.msra.mxu0 %v2917
  %3486 = vmatprep.subr.mxu0 0.0
  %3487 = vmatpush1.msra.mxu0 %v2916
  %3488 = vmatprep.subr.mxu0 0.0
  %3489 = vmatpush1.msra.mxu0 %v2915
  %3490 = vmatprep.subr.mxu0 0.0
  %3491 = vmatpush1.msra.mxu0 %v2914
  %3492 = vmatprep.subr.mxu0 0.0
  %3493 = vmatpush1.msra.mxu0 %v2913
  %3494 = vmatprep.subr.mxu0 0.0
  %3495 = vmatpush1.msra.mxu0 %v2912
  %3496 = vmatprep.subr.mxu0 0.0
  %3497 = vmatpush1.msra.mxu0 %v2911
  %3498 = vmatprep.subr.mxu0 0.0
  %3499 = vmatpush1.msra.mxu0 %v2910
  %3500 = vmatprep.subr.mxu0 0.0
  %3501 = vmatpush1.msra.mxu0 %v2909
  %3502 = vmatprep.subr.mxu0 0.0
  %3503 = vmatpush1.msra.mxu0 %v2908
  %3504 = vmatprep.subr.mxu0 0.0
  %3505 = vmatpush1.msra.mxu0 %v2907
  %3506 = vmatprep.subr.mxu0 0.0
  %3507 = vmatpush1.msra.mxu0 %v2906
  %3508 = vmatprep.subr.mxu0 0.0
  %3509 = vmatpush1.msra.mxu0 %v2905
  %3510 = vmatprep.subr.mxu0 0.0
  %3511 = vmatpush1.msra.mxu0 %v2904
  %3512 = vmatprep.subr.mxu0 0.0
  %3513 = vmatpush1.msra.mxu0 %v2903
  %3514 = vmatprep.subr.mxu0 0.0
  %3515 = vmatpush2.msra.mxu0 %v2934
  %3516 = vmatprep.subr.mxu0 0.0
  %3517 = vmatpush2.msra.mxu0 %v2933
  %3518 = vmatprep.subr.mxu0 0.0
  %3519 = vmatpush2.msra.mxu0 %v2932
  %3520 = vmatprep.subr.mxu0 0.0
  %3521 = vmatpush2.msra.mxu0 %v2931
  %3522 = vmatprep.subr.mxu0 0.0
  %3523 = vmatpush2.msra.mxu0 %v2930
  %3524 = vmatprep.subr.mxu0 0.0
  %3525 = vmatpush2.msra.mxu0 %v2929
  %3526 = vmatprep.subr.mxu0 0.0
  %3527 = vmatpush2.msra.mxu0 %v2928
  %3528 = vmatprep.subr.mxu0 0.0
  %3529 = vmatpush2.msra.mxu0 %v2927
  %3530 = vmatprep.subr.mxu0 0.0
  %3531 = vmatpush2.msra.mxu0 %v2926
  %3532 = vmatprep.subr.mxu0 0.0
  %3533 = vmatpush2.msra.mxu0 %v2925
  %3534 = vmatprep.subr.mxu0 0.0
  %3535 = vmatpush2.msra.mxu0 %v2924
  %3536 = vmatprep.subr.mxu0 0.0
  %3537 = vmatpush2.msra.mxu0 %v2923
  %3538 = vmatprep.subr.mxu0 0.0
  %3539 = vmatpush2.msra.mxu0 %v2922
  %3540 = vmatprep.subr.mxu0 0.0
  %3541 = vmatpush2.msra.mxu0 %v2921
  %3542 = vmatprep.subr.mxu0 0.0
  %3543 = vmatpush2.msra.mxu0 %v2920
  %3544 = vmatprep.subr.mxu0 0.0
  %3545 = vmatpush2.msra.mxu0 %v2919
  %3546 = vmatprep.mubr.f32.mxu0 %v3044
  %3547 = vmatmul.mubr.f32.gmra.mxu0 %v3036
  %v3548 = vpop.f32.mrf.mxu0
  %v3549 = vadd.f32 %v3479, %v3548
  %v3550 = vpop.f32.mrf.mxu0
  %3551 = vdwg.mxu0
  %3552 = vmatprep.subr.mxu0 0.0
  %3553 = vmatpush1.msra.mxu0 %v2950
  %3554 = vmatprep.subr.mxu0 0.0
  %3555 = vmatpush1.msra.mxu0 %v2949
  %3556 = vmatprep.subr.mxu0 0.0
  %3557 = vmatpush1.msra.mxu0 %v2948
  %3558 = vmatprep.subr.mxu0 0.0
  %3559 = vmatpush1.msra.mxu0 %v2947
  %3560 = vmatprep.subr.mxu0 0.0
  %3561 = vmatpush1.msra.mxu0 %v2946
  %3562 = vmatprep.subr.mxu0 0.0
  %3563 = vmatpush1.msra.mxu0 %v2945
  %3564 = vmatprep.subr.mxu0 0.0
  %3565 = vmatpush1.msra.mxu0 %v2944
  %3566 = vmatprep.subr.mxu0 0.0
  %3567 = vmatpush1.msra.mxu0 %v2943
  %3568 = vmatprep.subr.mxu0 0.0
  %3569 = vmatpush1.msra.mxu0 %v2942
  %3570 = vmatprep.subr.mxu0 0.0
  %3571 = vmatpush1.msra.mxu0 %v2941
  %3572 = vmatprep.subr.mxu0 0.0
  %3573 = vmatpush1.msra.mxu0 %v2940
  %3574 = vmatprep.subr.mxu0 0.0
  %3575 = vmatpush1.msra.mxu0 %v2939
  %3576 = vmatprep.subr.mxu0 0.0
  %3577 = vmatpush1.msra.mxu0 %v2938
  %3578 = vmatprep.subr.mxu0 0.0
  %3579 = vmatpush1.msra.mxu0 %v2937
  %3580 = vmatprep.subr.mxu0 0.0
  %3581 = vmatpush1.msra.mxu0 %v2936
  %3582 = vmatprep.subr.mxu0 0.0
  %3583 = vmatpush1.msra.mxu0 %v2935
  %3584 = vmatprep.subr.mxu0 0.0
  %3585 = vmatpush2.msra.mxu0 %v2966
  %3586 = vmatprep.subr.mxu0 0.0
  %3587 = vmatpush2.msra.mxu0 %v2965
  %3588 = vmatprep.subr.mxu0 0.0
  %3589 = vmatpush2.msra.mxu0 %v2964
  %3590 = vmatprep.subr.mxu0 0.0
  %3591 = vmatpush2.msra.mxu0 %v2963
  %3592 = vmatprep.subr.mxu0 0.0
  %3593 = vmatpush2.msra.mxu0 %v2962
  %3594 = vmatprep.subr.mxu0 0.0
  %3595 = vmatpush2.msra.mxu0 %v2961
  %3596 = vmatprep.subr.mxu0 0.0
  %3597 = vmatpush2.msra.mxu0 %v2960
  %3598 = vmatprep.subr.mxu0 0.0
  %3599 = vmatpush2.msra.mxu0 %v2959
  %3600 = vmatprep.subr.mxu0 0.0
  %3601 = vmatpush2.msra.mxu0 %v2958
  %3602 = vmatprep.subr.mxu0 0.0
  %3603 = vmatpush2.msra.mxu0 %v2957
  %3604 = vmatprep.subr.mxu0 0.0
  %3605 = vmatpush2.msra.mxu0 %v2956
  %3606 = vmatprep.subr.mxu0 0.0
  %3607 = vmatpush2.msra.mxu0 %v2955
  %3608 = vmatprep.subr.mxu0 0.0
  %3609 = vmatpush2.msra.mxu0 %v2954
  %3610 = vmatprep.subr.mxu0 0.0
  %3611 = vmatpush2.msra.mxu0 %v2953
  %3612 = vmatprep.subr.mxu0 0.0
  %3613 = vmatpush2.msra.mxu0 %v2952
  %3614 = vmatprep.subr.mxu0 0.0
  %3615 = vmatpush2.msra.mxu0 %v2951
  %3616 = vmatprep.mubr.f32.mxu0 %v3045
  %3617 = vmatmul.mubr.f32.gmra.mxu0 %v3043
  %v3618 = vpop.f32.mrf.mxu0
  %v3619 = vadd.f32 %v3549, %v3618
  %v3620 = vpop.f32.mrf.mxu0
  %3621 = vdwg.mxu0
  %v3622 = vmax.f32 %v3619, 0.0
  %v3623 = vld [vmem:[%s7] sm:$0xff]
  %v3624 = vld [vmem:[%s7 + $0x8] sm:$0xff]
  %v3625 = vld [vmem:[%s7 + $0x10] sm:$0xff]
  %v3626 = vld [vmem:[%s7 + $0x18] sm:$0xff]
  %v3627 = vld [vmem:[%s7 + $0x20] sm:$0xff]
  %v3628 = vld [vmem:[%s7 + $0x28] sm:$0xff]
  %v3629 = vld [vmem:[%s7 + $0x30] sm:$0xff]
  %v3630 = vld [vmem:[%s7 + $0x38] sm:$0xff]
  %v3631 = vld [vmem:[%s8] sm:$0x1]
  %v3633 = vlaneseq
  %v3634 = vshrl.u32 %v3633, 7
  %v3635 = vsub.s32 0, %v3634
  %v3636 = vrot.slane %v3631, %v3635
  %vm3638 = vcmask 523264
  %v3640 = vsel %vm3638, %v3622, 0
  %3642 = vmatprep.subr.mxu0 0.0
  %3643 = vmatpush1.msra.mxu0 0.0
  %3644 = vmatprep.subr.mxu0 0.0
  %3645 = vmatpush1.msra.mxu0 0.0
  %3646 = vmatprep.subr.mxu0 0.0
  %3647 = vmatpush1.msra.mxu0 0.0
  %3648 = vmatprep.subr.mxu0 0.0
  %3649 = vmatpush1.msra.mxu0 0.0
  %3650 = vmatprep.subr.mxu0 0.0
  %3651 = vmatpush1.msra.mxu0 0.0
  %3652 = vmatprep.subr.mxu0 0.0
  %3653 = vmatpush1.msra.mxu0 0.0
  %3654 = vmatprep.subr.mxu0 0.0
  %3655 = vmatpush1.msra.mxu0 0.0
  %3656 = vmatprep.subr.mxu0 0.0
  %3657 = vmatpush1.msra.mxu0 0.0
  %3658 = vmatprep.subr.mxu0 0.0
  %3659 = vmatpush1.msra.mxu0 %v3630
  %3660 = vmatprep.subr.mxu0 0.0
  %3661 = vmatpush1.msra.mxu0 %v3629
  %3662 = vmatprep.subr.mxu0 0.0
  %3663 = vmatpush1.msra.mxu0 %v3628
  %3664 = vmatprep.subr.mxu0 0.0
  %3665 = vmatpush1.msra.mxu0 %v3627
  %3666 = vmatprep.subr.mxu0 0.0
  %3667 = vmatpush1.msra.mxu0 %v3626
  %3668 = vmatprep.subr.mxu0 0.0
  %3669 = vmatpush1.msra.mxu0 %v3625
  %3670 = vmatprep.subr.mxu0 0.0
  %3671 = vmatpush1.msra.mxu0 %v3624
  %3672 = vmatprep.subr.mxu0 0.0
  %3673 = vmatpush1.msra.mxu0 %v3623
  %3674 = vmatprep.subr.mxu0 0.0
  %3675 = vmatpush2.msra.mxu0 0.0
  %3676 = vmatprep.subr.mxu0 0.0
  %3677 = vmatpush2.msra.mxu0 0.0
  %3678 = vmatprep.subr.mxu0 0.0
  %3679 = vmatpush2.msra.mxu0 0.0
  %3680 = vmatprep.subr.mxu0 0.0
  %3681 = vmatpush2.msra.mxu0 0.0
  %3682 = vmatprep.subr.mxu0 0.0
  %3683 = vmatpush2.msra.mxu0 0.0
  %3684 = vmatprep.subr.mxu0 0.0
  %3685 = vmatpush2.msra.mxu0 0.0
  %3686 = vmatprep.subr.mxu0 0.0
  %3687 = vmatpush2.msra.mxu0 0.0
  %3688 = vmatprep.subr.mxu0 0.0
  %3689 = vmatpush2.msra.mxu0 0.0
  %3690 = vmatprep.subr.mxu0 0.0
  %3691 = vmatpush2.msra.mxu0 0.0
  %3692 = vmatprep.subr.mxu0 0.0
  %3693 = vmatpush2.msra.mxu0 0.0
  %3694 = vmatprep.subr.mxu0 0.0
  %3695 = vmatpush2.msra.mxu0 0.0
  %3696 = vmatprep.subr.mxu0 0.0
  %3697 = vmatpush2.msra.mxu0 0.0
  %3698 = vmatprep.subr.mxu0 0.0
  %3699 = vmatpush2.msra.mxu0 0.0
  %3700 = vmatprep.subr.mxu0 0.0
  %3701 = vmatpush2.msra.mxu0 0.0
  %3702 = vmatprep.subr.mxu0 0.0
  %3703 = vmatpush2.msra.mxu0 0.0
  %3704 = vmatprep.subr.mxu0 0.0
  %3705 = vmatpush2.msra.mxu0 0.0
  %3706 = vmatprep.mubr.f32.mxu0 0.0
  %3707 = vmatmul.mubr.f32.gmra.mxu0 %v3640
  %v3708 = vpop.f32.mrf.mxu0
  %v3709 = vadd.f32 %v3636, %v3708
  %v3710 = vpop.f32.mrf.mxu0
  %3711 = vdwg.mxu0
  %v3712 = vmax.f32 %v3709, 0.0
  %v3713 = vld [vmem:[%s9] sm:$0x1]
  %v3715 = vlaneseq
  %v3716 = vshrl.u32 %v3715, 7
  %v3717 = vsub.s32 0, %v3716
  %v3718 = vrot.slane %v3713, %v3717
  %v3720 = vmul.f32 %v3712, %v3718
  %vm3721 = vcmask 517120
  %v3722 = vsel %vm3721, %v3720, 0.0
  %3723 = vadd.xlane.f32.xlu0 %v3722
  %v3724 = vpop.xlane.xlu0 %3723
  %v3725 = vld [vmem:[#allocation5] sm:$0x1]
  %v3727 = vlaneseq
  %v3728 = vshrl.u32 %v3727, 7
  %v3729 = vsub.s32 0, %v3728
  %v3730 = vrot.slane %v3725, %v3729
  %v3732 = vadd.f32 %v3724, %v3730
  %v3733 = vtanh.pop %v3732
  %vm3734 = vcmask 1024
  %3735 = vst.msk [vmem:[%s11] sm:$0x3] %vm3734, %v3733
  // Predicated region
  $region46: #{value_nn_forward.1} parent=0 // pred_check
    _
  $region47: #{value_nn_forward.1} parent=0 // pred_check_branch
    %3737 = sbr.rel (0) target = $region49
  $region48: #{value_nn_forward.1} parent=0 // pred_region
    _
  $region49: #{value_nn_forward.1} parent=0 // pred_fallthru
    _
  // Predicated region
  $region50: #{value_nn_forward.1} parent=0 // pred_check
    _
  $region51: #{value_nn_forward.1} parent=0 // pred_check_branch
    %3739 = sbr.rel (0) target = $region53
  $region52: #{value_nn_forward.1} parent=0 // pred_region
    _
  $region53: #{value_nn_forward.1} parent=0 // pred_fallthru
    _

</llo_original>
